<compile_context>
chip_gen: v7x
topology: tpu7x:2x2x1
jax: 0.10.0
libtpu: 0.0.40
codegen_flags: <defaults>
</compile_context>

<pallas_src>
import functools

import jax
import jax.numpy as jnp
from jax import lax
from jax.experimental import pallas as pl
from jax.experimental.pallas import tpu as pltpu


def _round_up(x, m):
    return ((x + m - 1) // m) * m


def _wsconv_kernel(x_ref, xh_ref, w_ref, b_ref, o_ref, xs_ref, acc_ref, *,
                   kh_sz, kw_sz):
    # x_ref  : (TH,    Wp, Cp)        main row tile of the padded NHWC input
    # xh_ref : (KH-1,  Wp, Cp)        halo rows (first rows of the next tile)
    # w_ref  : (KH*KW, Cp, Coutp)     scale already folded in
    # b_ref  : (1, Coutp)             f32 bias
    # o_ref  : (TH, WoP, Coutp)
    # xs_ref : (KW, TH+KH-1, WoP, Cp) width-shifted slabs   (VMEM scratch)
    # acc_ref: (TH*WoP, Coutp) f32    accumulator           (VMEM scratch)
    TH = x_ref.shape[0]
    Cp = x_ref.shape[2]
    _, WoP, Coutp = o_ref.shape

    # Bias-as-init: folds the bias add into the accumulator initialization.
    acc_ref[...] = jnp.broadcast_to(b_ref[...], (TH * WoP, Coutp))

    # Hoist the kw (sublane) shift out of the tap loop: KW shifted copies
    # instead of KH*KW, and no concatenate of main + halo rows.
    for kw in range(kw_sz):
        xs_ref[kw, :TH, :, :] = x_ref[:, kw:kw + WoP, :]
        xs_ref[kw, TH:, :, :] = xh_ref[:, kw:kw + WoP, :]

    # 3x3 conv = 9 accumulated (TH*WoP, Cp) @ (Cp, Coutp) MXU matmuls with f32
    # accumulation.  kh slices are along xs_ref's leading axis -> free views,
    # and the reshape is layout-preserving because WoP is a sublane multiple.
    for kh in range(kh_sz):
        for kw in range(kw_sz):
            patch = xs_ref[kw, kh:kh + TH, :, :].reshape(TH * WoP, Cp)
            acc_ref[...] += jnp.dot(patch, w_ref[kh * kw_sz + kw],
                                    preferred_element_type=jnp.float32)

    o_ref[...] = acc_ref[...].reshape(TH, WoP, Coutp).astype(o_ref.dtype)


def wsconv2d(x_nchw, weight, bias, *, stride=1, padding=1, row_tile=16,
             mxu_dtype=jnp.bfloat16):
    """Weight-scaled conv2d.  x_nchw: (N, Cin, H, W); weight: (Cout, Cin, kh, kw);
    bias: (Cout,).  Returns (N, Cout, H_out, W_out) in x_nchw.dtype."""
    assert stride == 1, "TODO(synk): only stride=1 implemented (ProGAN default)"
    N, Cin, H, W = x_nchw.shape
    Cout, Cin_w, KH, KW = weight.shape
    assert Cin == Cin_w
    scale = (2.0 / (Cin * KH * KW)) ** 0.5

    out_dtype = x_nchw.dtype
    LANE = 128
    in_itemsize = jnp.dtype(mxu_dtype).itemsize
    SUB = 8 * max(1, 4 // in_itemsize)    # sublane multiple (8 f32 / 16 bf16)

    Cp = _round_up(Cin, LANE)             # lane-dense contraction dim
    Coutp = _round_up(Cout, LANE)         # lane-dense output stores

    Ho = H + 2 * padding - KH + 1
    Wo = W + 2 * padding - KW + 1
    WoP = _round_up(Wo, SUB)              # sublane-dense output width
    Wp = WoP + KW - 1                     # padded input width

    # Row-tile sizing: TH must be a multiple of the halo height so the halo
    # BlockSpec (block size KH-1 along H) can address block (i+1)*halo_stride.
    n_halo = max(KH - 1, 1)
    TH = max(n_halo, (min(row_tile, Ho) // n_halo) * n_halo)
    HoT = _round_up(Ho, TH)
    nT = HoT // TH
    Hx = HoT + TH                         # extra zero rows feed the last halo
    halo_stride = TH // n_halo

    # ---- glue (plain JAX): layout, zero-pad, fold scale into W, cast bf16 ----
    x_nhwc = jnp.transpose(x_nchw, (0, 2, 3, 1))
    x_pad = jnp.pad(
        x_nhwc.astype(jnp.float32),
        ((0, 0),
         (padding, Hx - H - padding),     # top pad + bottom pad up to Hx rows
         (padding, Wp - W - padding),     # left pad + right pad up to Wp cols
         (0, Cp - Cin))).astype(mxu_dtype)

    w_k = jnp.transpose(weight.astype(jnp.float32) * scale, (2, 3, 1, 0))
    w_k = w_k.reshape(KH * KW, Cin, Cout)
    w_k = jnp.pad(w_k, ((0, 0), (0, Cp - Cin), (0, Coutp - Cout))).astype(mxu_dtype)
    b2 = jnp.pad(bias.astype(jnp.float32), (0, Coutp - Cout)).reshape(1, Coutp)

    kernel = functools.partial(_wsconv_kernel, kh_sz=KH, kw_sz=KW)

    # Generation-aware VMEM budget: ~48 MiB on v7x (64 MiB/TC), 96 MiB on
    # v5e/v6e (128 MiB).
    try:
        vmem_cap = int(pltpu.get_tpu_info().vmem_capacity_bytes)
    except Exception:
        vmem_cap = 64 * 1024 * 1024
    vmem_limit = min(vmem_cap * 3 // 4, 96 * 1024 * 1024)

    flops = 2 * N * HoT * WoP * Cp * Coutp * KH * KW
    bytes_accessed = (N * nT * (TH + n_halo) * Wp * Cp * in_itemsize   # incl. halo re-fetch
                      + KH * KW * Cp * Coutp * in_itemsize
                      + Coutp * 4
                      + N * HoT * WoP * Coutp * jnp.dtype(out_dtype).itemsize)

    out_nhwc = pl.pallas_call(
        kernel,
        out_shape=jax.ShapeDtypeStruct((N, HoT, WoP, Coutp), out_dtype),
        grid=(N, nT),
        in_specs=[
            # main row tile (size-1 batch dim squeezed out)
            pl.BlockSpec((None, TH, Wp, Cp), lambda n, i: (n, i, 0, 0)),
            # KH-1 halo rows (= first rows of the next tile)
            pl.BlockSpec((None, n_halo, Wp, Cp),
                         lambda n, i: (n, (i + 1) * halo_stride, 0, 0)),
            # weights / bias: constant block index -> resident, no re-DMA
            pl.BlockSpec((KH * KW, Cp, Coutp), lambda n, i: (0, 0, 0)),
            pl.BlockSpec((1, Coutp), lambda n, i: (0, 0)),
        ],
        out_specs=pl.BlockSpec((None, TH, WoP, Coutp), lambda n, i: (n, i, 0, 0)),
        scratch_shapes=[
            pltpu.VMEM((KW, TH + n_halo, WoP, Cp), mxu_dtype),  # shifted slabs
            pltpu.VMEM((TH * WoP, Coutp), jnp.float32),         # f32 accumulator
        ],
        compiler_params=pltpu.CompilerParams(
            dimension_semantics=("parallel", "parallel"),
            vmem_limit_bytes=vmem_limit),
        cost_estimate=pl.CostEstimate(
            flops=flops, transcendentals=0, bytes_accessed=int(bytes_accessed)),
    )(x_pad, x_pad, w_k, b2)

    out = out_nhwc[:, :Ho, :Wo, :Cout]
    return jnp.transpose(out, (0, 3, 1, 2))      # back to NCHW


def _reference(x_nchw, weight, bias, *, padding=1):
    Cin = x_nchw.shape[1]
    KH, KW = weight.shape[2], weight.shape[3]
    scale = (2.0 / (Cin * KH * KW)) ** 0.5
    out = lax.conv_general_dilated(
        x_nchw * scale, weight, window_strides=(1, 1),
        padding=((padding, padding), (padding, padding)),
        dimension_numbers=("NCHW", "OIHW", "NCHW"))
    return out + bias.reshape(1, -1, 1, 1)


if __name__ == "__main__":
    key = jax.random.PRNGKey(0)
    k_x, k_w, k_x2, k_w2, k_b2 = jax.random.split(key, 5)

    # --- module-spec shapes: WSConv2d(4, 8, kernel_size=3, stride=1, padding=1) ---
    N, Cin, H, W = 2, 4, 16, 16
    Cout, K = 8, 3
    x = jax.random.normal(k_x, (N, Cin, H, W), dtype=jnp.float32)
    weight = jax.random.normal(k_w, (Cout, Cin, K, K), dtype=jnp.float32)  # nn.init.normal_
    bias = jnp.zeros((Cout,), dtype=jnp.float32)                           # nn.init.zeros_
    ref = _reference(x, weight, bias)

    # exactness check (f32 MXU path)
    out32 = jax.block_until_ready(wsconv2d(x, weight, bias, mxu_dtype=jnp.float32))
    assert out32.shape == (N, Cout, H, W)
    assert jnp.allclose(out32, ref, atol=1e-4, rtol=1e-4)

    # production path: bf16 MXU feeds, f32 accumulation
    outbf = jax.block_until_ready(wsconv2d(x, weight, bias))
    assert outbf.shape == (N, Cout, H, W)
    assert jnp.allclose(outbf, ref, atol=5e-2, rtol=5e-2)

    # multi-row-tile / full-lane-channel / ragged-width / nonzero-bias case
    N2, C2, H2, W2 = 1, 128, 40, 21
    x2 = jax.random.normal(k_x2, (N2, C2, H2, W2), dtype=jnp.float32)
    w2 = jax.random.normal(k_w2, (C2, C2, K, K), dtype=jnp.float32)
    b2 = 0.1 * jax.random.normal(k_b2, (C2,), dtype=jnp.float32)
    out2 = jax.block_until_ready(wsconv2d(x2, w2, b2))
    ref2 = _reference(x2, w2, b2)
    assert out2.shape == ref2.shape
    assert jnp.allclose(out2, ref2, atol=5e-2, rtol=5e-2)

    print("KERNEL_OK")
</pallas_src>

<mosaic_0001>
module attributes {stable_mosaic.version = 11 : i64} {
  func.func @_wsconv_kernel(%arg0: i32, %arg1: i32, %arg2: memref<1x16x18x128xf32, #tpu.memory_space<vmem>>, %arg3: memref<1x2x18x128xf32, #tpu.memory_space<vmem>>, %arg4: memref<9x128x128xf32, #tpu.memory_space<vmem>>, %arg5: memref<1x128xf32, #tpu.memory_space<vmem>>, %arg6: memref<1x16x16x128xf32, #tpu.memory_space<vmem>>, %arg7: memref<3x18x16x128xf32, #tpu.memory_space<vmem>>, %arg8: memref<256x128xf32, #tpu.memory_space<vmem>>) attributes {dimension_semantics = [#tpu.dimension_semantics<parallel>, #tpu.dimension_semantics<parallel>], iteration_bounds = array<i64: 2, 1>, scalar_prefetch = 0 : i64, scratch_operands = 2 : i64, tpu.core_type = #tpu.core_type<tc>, window_params = [{transform_indices = @transform_0, window_bounds = array<i64: 1, 16, 18, 128>}, {transform_indices = @transform_1, window_bounds = array<i64: 1, 2, 18, 128>}, {pipeline_mode = #tpu.pipeline_mode<synchronous>, transform_indices = @transform_2, window_bounds = array<i64: 9, 128, 128>}, {pipeline_mode = #tpu.pipeline_mode<synchronous>, transform_indices = @transform_3, window_bounds = array<i64: 1, 128>}, {transform_indices = @transform_4, window_bounds = array<i64: 1, 16, 16, 128>}]} {
    %c0 = arith.constant 0 : index
    %c0_0 = arith.constant 0 : index
    %0 = vector.load %arg5[%c0, %c0_0] : memref<1x128xf32, #tpu.memory_space<vmem>>, vector<1x128xf32>
    %1 = vector.shape_cast %0 : vector<1x128xf32> to vector<1x128xf32>
    %2 = vector.broadcast %1 : vector<1x128xf32> to vector<256x128xf32>
    %c0_1 = arith.constant 0 : index
    %c0_2 = arith.constant 0 : index
    %3 = vector.load %arg8[%c0_1, %c0_2] : memref<256x128xf32, #tpu.memory_space<vmem>>, vector<256x128xf32>
    tpu.vector_store %arg8[%c0_1, %c0_2], %2 {strides = array<i32>} : memref<256x128xf32, #tpu.memory_space<vmem>>, vector<256x128xf32>,
    %c0_3 = arith.constant 0 : index
    %c0_4 = arith.constant 0 : index
    %c0_5 = arith.constant 0 : index
    %c0_6 = arith.constant 0 : index
    %4 = vector.load %arg2[%c0_3, %c0_4, %c0_5, %c0_6] : memref<1x16x18x128xf32, #tpu.memory_space<vmem>>, vector<1x16x16x128xf32>
    %5 = vector.shape_cast %4 : vector<1x16x16x128xf32> to vector<16x16x128xf32>
    %c0_7 = arith.constant 0 : index
    %c0_8 = arith.constant 0 : index
    %c0_9 = arith.constant 0 : index
    %c0_10 = arith.constant 0 : index
    %6 = vector.load %arg7[%c0_7, %c0_8, %c0_9, %c0_10] : memref<3x18x16x128xf32, #tpu.memory_space<vmem>>, vector<1x16x16x128xf32>
    %7 = vector.shape_cast %6 : vector<1x16x16x128xf32> to vector<16x16x128xf32>
    %8 = vector.shape_cast %5 : vector<16x16x128xf32> to vector<1x16x16x128xf32>
    tpu.vector_store %arg7[%c0_7, %c0_8, %c0_9, %c0_10], %8 {strides = array<i32>} : memref<3x18x16x128xf32, #tpu.memory_space<vmem>>, vector<1x16x16x128xf32>,
    %c0_11 = arith.constant 0 : index
    %c0_12 = arith.constant 0 : index
    %c0_13 = arith.constant 0 : index
    %c0_14 = arith.constant 0 : index
    %9 = vector.load %arg3[%c0_11, %c0_12, %c0_13, %c0_14] : memref<1x2x18x128xf32, #tpu.memory_space<vmem>>, vector<1x2x16x128xf32>
    %10 = vector.shape_cast %9 : vector<1x2x16x128xf32> to vector<2x16x128xf32>
    %c0_15 = arith.constant 0 : index
    %c16 = arith.constant 16 : index
    %c0_16 = arith.constant 0 : index
    %c0_17 = arith.constant 0 : index
    %11 = vector.load %arg7[%c0_15, %c16, %c0_16, %c0_17] : memref<3x18x16x128xf32, #tpu.memory_space<vmem>>, vector<1x2x16x128xf32>
    %12 = vector.shape_cast %11 : vector<1x2x16x128xf32> to vector<2x16x128xf32>
    %13 = vector.shape_cast %10 : vector<2x16x128xf32> to vector<1x2x16x128xf32>
    tpu.vector_store %arg7[%c0_15, %c16, %c0_16, %c0_17], %13 {strides = array<i32>} : memref<3x18x16x128xf32, #tpu.memory_space<vmem>>, vector<1x2x16x128xf32>,
    %c0_18 = arith.constant 0 : index
    %c0_19 = arith.constant 0 : index
    %c1 = arith.constant 1 : index
    %c0_20 = arith.constant 0 : index
    %14 = vector.load %arg2[%c0_18, %c0_19, %c1, %c0_20] : memref<1x16x18x128xf32, #tpu.memory_space<vmem>>, vector<1x16x16x128xf32>
    %15 = vector.shape_cast %14 : vector<1x16x16x128xf32> to vector<16x16x128xf32>
    %c1_21 = arith.constant 1 : index
    %c0_22 = arith.constant 0 : index
    %c0_23 = arith.constant 0 : index
    %c0_24 = arith.constant 0 : index
    %16 = vector.load %arg7[%c1_21, %c0_22, %c0_23, %c0_24] : memref<3x18x16x128xf32, #tpu.memory_space<vmem>>, vector<1x16x16x128xf32>
    %17 = vector.shape_cast %16 : vector<1x16x16x128xf32> to vector<16x16x128xf32>
    %18 = vector.shape_cast %15 : vector<16x16x128xf32> to vector<1x16x16x128xf32>
    tpu.vector_store %arg7[%c1_21, %c0_22, %c0_23, %c0_24], %18 {strides = array<i32>} : memref<3x18x16x128xf32, #tpu.memory_space<vmem>>, vector<1x16x16x128xf32>,
    %c0_25 = arith.constant 0 : index
    %c0_26 = arith.constant 0 : index
    %c1_27 = arith.constant 1 : index
    %c0_28 = arith.constant 0 : index
    %19 = vector.load %arg3[%c0_25, %c0_26, %c1_27, %c0_28] : memref<1x2x18x128xf32, #tpu.memory_space<vmem>>, vector<1x2x16x128xf32>
    %20 = vector.shape_cast %19 : vector<1x2x16x128xf32> to vector<2x16x128xf32>
    %c1_29 = arith.constant 1 : index
    %c16_30 = arith.constant 16 : index
    %c0_31 = arith.constant 0 : index
    %c0_32 = arith.constant 0 : index
    %21 = vector.load %arg7[%c1_29, %c16_30, %c0_31, %c0_32] : memref<3x18x16x128xf32, #tpu.memory_space<vmem>>, vector<1x2x16x128xf32>
    %22 = vector.shape_cast %21 : vector<1x2x16x128xf32> to vector<2x16x128xf32>
    %23 = vector.shape_cast %20 : vector<2x16x128xf32> to vector<1x2x16x128xf32>
    tpu.vector_store %arg7[%c1_29, %c16_30, %c0_31, %c0_32], %23 {strides = array<i32>} : memref<3x18x16x128xf32, #tpu.memory_space<vmem>>, vector<1x2x16x128xf32>,
    %c0_33 = arith.constant 0 : index
    %c0_34 = arith.constant 0 : index
    %c2 = arith.constant 2 : index
    %c0_35 = arith.constant 0 : index
    %24 = vector.load %arg2[%c0_33, %c0_34, %c2, %c0_35] : memref<1x16x18x128xf32, #tpu.memory_space<vmem>>, vector<1x16x16x128xf32>
    %25 = vector.shape_cast %24 : vector<1x16x16x128xf32> to vector<16x16x128xf32>
    %c2_36 = arith.constant 2 : index
    %c0_37 = arith.constant 0 : index
    %c0_38 = arith.constant 0 : index
    %c0_39 = arith.constant 0 : index
    %26 = vector.load %arg7[%c2_36, %c0_37, %c0_38, %c0_39] : memref<3x18x16x128xf32, #tpu.memory_space<vmem>>, vector<1x16x16x128xf32>
    %27 = vector.shape_cast %26 : vector<1x16x16x128xf32> to vector<16x16x128xf32>
    %28 = vector.shape_cast %25 : vector<16x16x128xf32> to vector<1x16x16x128xf32>
    tpu.vector_store %arg7[%c2_36, %c0_37, %c0_38, %c0_39], %28 {strides = array<i32>} : memref<3x18x16x128xf32, #tpu.memory_space<vmem>>, vector<1x16x16x128xf32>,
    %c0_40 = arith.constant 0 : index
    %c0_41 = arith.constant 0 : index
    %c2_42 = arith.constant 2 : index
    %c0_43 = arith.constant 0 : index
    %29 = vector.load %arg3[%c0_40, %c0_41, %c2_42, %c0_43] : memref<1x2x18x128xf32, #tpu.memory_space<vmem>>, vector<1x2x16x128xf32>
    %30 = vector.shape_cast %29 : vector<1x2x16x128xf32> to vector<2x16x128xf32>
    %c2_44 = arith.constant 2 : index
    %c16_45 = arith.constant 16 : index
    %c0_46 = arith.constant 0 : index
    %c0_47 = arith.constant 0 : index
    %31 = vector.load %arg7[%c2_44, %c16_45, %c0_46, %c0_47] : memref<3x18x16x128xf32, #tpu.memory_space<vmem>>, vector<1x2x16x128xf32>
    %32 = vector.shape_cast %31 : vector<1x2x16x128xf32> to vector<2x16x128xf32>
    %33 = vector.shape_cast %30 : vector<2x16x128xf32> to vector<1x2x16x128xf32>
    tpu.vector_store %arg7[%c2_44, %c16_45, %c0_46, %c0_47], %33 {strides = array<i32>} : memref<3x18x16x128xf32, #tpu.memory_space<vmem>>, vector<1x2x16x128xf32>,
    %c0_48 = arith.constant 0 : index
    %c0_49 = arith.constant 0 : index
    %c0_50 = arith.constant 0 : index
    %c0_51 = arith.constant 0 : index
    %34 = vector.load %arg7[%c0_48, %c0_49, %c0_50, %c0_51] : memref<3x18x16x128xf32, #tpu.memory_space<vmem>>, vector<1x16x16x128xf32>
    %35 = vector.shape_cast %34 : vector<1x16x16x128xf32> to vector<16x16x128xf32>
    %36 = vector.shape_cast %35 : vector<16x16x128xf32> to vector<256x128xf32>
    %c0_52 = arith.constant 0 : index
    %c0_53 = arith.constant 0 : index
    %37 = vector.load %arg8[%c0_52, %c0_53] : memref<256x128xf32, #tpu.memory_space<vmem>>, vector<256x128xf32>
    %c0_54 = arith.constant 0 : index
    %c0_55 = arith.constant 0 : index
    %c0_56 = arith.constant 0 : index
    %38 = vector.load %arg4[%c0_54, %c0_55, %c0_56] : memref<9x128x128xf32, #tpu.memory_space<vmem>>, vector<1x128x128xf32>
    %39 = vector.shape_cast %38 : vector<1x128x128xf32> to vector<128x128xf32>
    %cst = arith.constant dense<0.000000e+00> : vector<256x128xf32>
    %40 = tpu.matmul %36, %39, %cst {dimension_numbers = #tpu.dot_dimension_numbers<[1], [0], [0], [1], [0, 0, 1, 1], [], []>} : vector<256x128xf32>, vector<128x128xf32>, vector<256x128xf32> -> vector<256x128xf32>
    %41 = arith.addf %37, %40 : vector<256x128xf32>
    %c0_57 = arith.constant 0 : index
    %c0_58 = arith.constant 0 : index
    %42 = vector.load %arg8[%c0_57, %c0_58] : memref<256x128xf32, #tpu.memory_space<vmem>>, vector<256x128xf32>
    tpu.vector_store %arg8[%c0_57, %c0_58], %41 {strides = array<i32>} : memref<256x128xf32, #tpu.memory_space<vmem>>, vector<256x128xf32>,
    %c1_59 = arith.constant 1 : index
    %c0_60 = arith.constant 0 : index
    %c0_61 = arith.constant 0 : index
    %c0_62 = arith.constant 0 : index
    %43 = vector.load %arg7[%c1_59, %c0_60, %c0_61, %c0_62] : memref<3x18x16x128xf32, #tpu.memory_space<vmem>>, vector<1x16x16x128xf32>
    %44 = vector.shape_cast %43 : vector<1x16x16x128xf32> to vector<16x16x128xf32>
    %45 = vector.shape_cast %44 : vector<16x16x128xf32> to vector<256x128xf32>
    %c0_63 = arith.constant 0 : index
    %c0_64 = arith.constant 0 : index
    %46 = vector.load %arg8[%c0_63, %c0_64] : memref<256x128xf32, #tpu.memory_space<vmem>>, vector<256x128xf32>
    %c1_65 = arith.constant 1 : index
    %c0_66 = arith.constant 0 : index
    %c0_67 = arith.constant 0 : index
    %47 = vector.load %arg4[%c1_65, %c0_66, %c0_67] : memref<9x128x128xf32, #tpu.memory_space<vmem>>, vector<1x128x128xf32>
    %48 = vector.shape_cast %47 : vector<1x128x128xf32> to vector<128x128xf32>
    %cst_68 = arith.constant dense<0.000000e+00> : vector<256x128xf32>
    %49 = tpu.matmul %45, %48, %cst_68 {dimension_numbers = #tpu.dot_dimension_numbers<[1], [0], [0], [1], [0, 0, 1, 1], [], []>} : vector<256x128xf32>, vector<128x128xf32>, vector<256x128xf32> -> vector<256x128xf32>
    %50 = arith.addf %46, %49 : vector<256x128xf32>
    %c0_69 = arith.constant 0 : index
    %c0_70 = arith.constant 0 : index
    %51 = vector.load %arg8[%c0_69, %c0_70] : memref<256x128xf32, #tpu.memory_space<vmem>>, vector<256x128xf32>
    tpu.vector_store %arg8[%c0_69, %c0_70], %50 {strides = array<i32>} : memref<256x128xf32, #tpu.memory_space<vmem>>, vector<256x128xf32>,
    %c2_71 = arith.constant 2 : index
    %c0_72 = arith.constant 0 : index
    %c0_73 = arith.constant 0 : index
    %c0_74 = arith.constant 0 : index
    %52 = vector.load %arg7[%c2_71, %c0_72, %c0_73, %c0_74] : memref<3x18x16x128xf32, #tpu.memory_space<vmem>>, vector<1x16x16x128xf32>
    %53 = vector.shape_cast %52 : vector<1x16x16x128xf32> to vector<16x16x128xf32>
    %54 = vector.shape_cast %53 : vector<16x16x128xf32> to vector<256x128xf32>
    %c0_75 = arith.constant 0 : index
    %c0_76 = arith.constant 0 : index
    %55 = vector.load %arg8[%c0_75, %c0_76] : memref<256x128xf32, #tpu.memory_space<vmem>>, vector<256x128xf32>
    %c2_77 = arith.constant 2 : index
    %c0_78 = arith.constant 0 : index
    %c0_79 = arith.constant 0 : index
    %56 = vector.load %arg4[%c2_77, %c0_78, %c0_79] : memref<9x128x128xf32, #tpu.memory_space<vmem>>, vector<1x128x128xf32>
    %57 = vector.shape_cast %56 : vector<1x128x128xf32> to vector<128x128xf32>
    %cst_80 = arith.constant dense<0.000000e+00> : vector<256x128xf32>
    %58 = tpu.matmul %54, %57, %cst_80 {dimension_numbers = #tpu.dot_dimension_numbers<[1], [0], [0], [1], [0, 0, 1, 1], [], []>} : vector<256x128xf32>, vector<128x128xf32>, vector<256x128xf32> -> vector<256x128xf32>
    %59 = arith.addf %55, %58 : vector<256x128xf32>
    %c0_81 = arith.constant 0 : index
    %c0_82 = arith.constant 0 : index
    %60 = vector.load %arg8[%c0_81, %c0_82] : memref<256x128xf32, #tpu.memory_space<vmem>>, vector<256x128xf32>
    tpu.vector_store %arg8[%c0_81, %c0_82], %59 {strides = array<i32>} : memref<256x128xf32, #tpu.memory_space<vmem>>, vector<256x128xf32>,
    %c0_83 = arith.constant 0 : index
    %c1_84 = arith.constant 1 : index
    %c0_85 = arith.constant 0 : index
    %c0_86 = arith.constant 0 : index
    %61 = vector.load %arg7[%c0_83, %c1_84, %c0_85, %c0_86] : memref<3x18x16x128xf32, #tpu.memory_space<vmem>>, vector<1x16x16x128xf32>
    %62 = vector.shape_cast %61 : vector<1x16x16x128xf32> to vector<16x16x128xf32>
    %63 = vector.shape_cast %62 : vector<16x16x128xf32> to vector<256x128xf32>
    %c0_87 = arith.constant 0 : index
    %c0_88 = arith.constant 0 : index
    %64 = vector.load %arg8[%c0_87, %c0_88] : memref<256x128xf32, #tpu.memory_space<vmem>>, vector<256x128xf32>
    %c3 = arith.constant 3 : index
    %c0_89 = arith.constant 0 : index
    %c0_90 = arith.constant 0 : index
    %65 = vector.load %arg4[%c3, %c0_89, %c0_90] : memref<9x128x128xf32, #tpu.memory_space<vmem>>, vector<1x128x128xf32>
    %66 = vector.shape_cast %65 : vector<1x128x128xf32> to vector<128x128xf32>
    %cst_91 = arith.constant dense<0.000000e+00> : vector<256x128xf32>
    %67 = tpu.matmul %63, %66, %cst_91 {dimension_numbers = #tpu.dot_dimension_numbers<[1], [0], [0], [1], [0, 0, 1, 1], [], []>} : vector<256x128xf32>, vector<128x128xf32>, vector<256x128xf32> -> vector<256x128xf32>
    %68 = arith.addf %64, %67 : vector<256x128xf32>
    %c0_92 = arith.constant 0 : index
    %c0_93 = arith.constant 0 : index
    %69 = vector.load %arg8[%c0_92, %c0_93] : memref<256x128xf32, #tpu.memory_space<vmem>>, vector<256x128xf32>
    tpu.vector_store %arg8[%c0_92, %c0_93], %68 {strides = array<i32>} : memref<256x128xf32, #tpu.memory_space<vmem>>, vector<256x128xf32>,
    %c1_94 = arith.constant 1 : index
    %c1_95 = arith.constant 1 : index
    %c0_96 = arith.constant 0 : index
    %c0_97 = arith.constant 0 : index
    %70 = vector.load %arg7[%c1_94, %c1_95, %c0_96, %c0_97] : memref<3x18x16x128xf32, #tpu.memory_space<vmem>>, vector<1x16x16x128xf32>
    %71 = vector.shape_cast %70 : vector<1x16x16x128xf32> to vector<16x16x128xf32>
    %72 = vector.shape_cast %71 : vector<16x16x128xf32> to vector<256x128xf32>
    %c0_98 = arith.constant 0 : index
    %c0_99 = arith.constant 0 : index
    %73 = vector.load %arg8[%c0_98, %c0_99] : memref<256x128xf32, #tpu.memory_space<vmem>>, vector<256x128xf32>
    %c4 = arith.constant 4 : index
    %c0_100 = arith.constant 0 : index
    %c0_101 = arith.constant 0 : index
    %74 = vector.load %arg4[%c4, %c0_100, %c0_101] : memref<9x128x128xf32, #tpu.memory_space<vmem>>, vector<1x128x128xf32>
    %75 = vector.shape_cast %74 : vector<1x128x128xf32> to vector<128x128xf32>
    %cst_102 = arith.constant dense<0.000000e+00> : vector<256x128xf32>
    %76 = tpu.matmul %72, %75, %cst_102 {dimension_numbers = #tpu.dot_dimension_numbers<[1], [0], [0], [1], [0, 0, 1, 1], [], []>} : vector<256x128xf32>, vector<128x128xf32>, vector<256x128xf32> -> vector<256x128xf32>
    %77 = arith.addf %73, %76 : vector<256x128xf32>
    %c0_103 = arith.constant 0 : index
    %c0_104 = arith.constant 0 : index
    %78 = vector.load %arg8[%c0_103, %c0_104] : memref<256x128xf32, #tpu.memory_space<vmem>>, vector<256x128xf32>
    tpu.vector_store %arg8[%c0_103, %c0_104], %77 {strides = array<i32>} : memref<256x128xf32, #tpu.memory_space<vmem>>, vector<256x128xf32>,
    %c2_105 = arith.constant 2 : index
    %c1_106 = arith.constant 1 : index
    %c0_107 = arith.constant 0 : index
    %c0_108 = arith.constant 0 : index
    %79 = vector.load %arg7[%c2_105, %c1_106, %c0_107, %c0_108] : memref<3x18x16x128xf32, #tpu.memory_space<vmem>>, vector<1x16x16x128xf32>
    %80 = vector.shape_cast %79 : vector<1x16x16x128xf32> to vector<16x16x128xf32>
    %81 = vector.shape_cast %80 : vector<16x16x128xf32> to vector<256x128xf32>
    %c0_109 = arith.constant 0 : index
    %c0_110 = arith.constant 0 : index
    %82 = vector.load %arg8[%c0_109, %c0_110] : memref<256x128xf32, #tpu.memory_space<vmem>>, vector<256x128xf32>
    %c5 = arith.constant 5 : index
    %c0_111 = arith.constant 0 : index
    %c0_112 = arith.constant 0 : index
    %83 = vector.load %arg4[%c5, %c0_111, %c0_112] : memref<9x128x128xf32, #tpu.memory_space<vmem>>, vector<1x128x128xf32>
    %84 = vector.shape_cast %83 : vector<1x128x128xf32> to vector<128x128xf32>
    %cst_113 = arith.constant dense<0.000000e+00> : vector<256x128xf32>
    %85 = tpu.matmul %81, %84, %cst_113 {dimension_numbers = #tpu.dot_dimension_numbers<[1], [0], [0], [1], [0, 0, 1, 1], [], []>} : vector<256x128xf32>, vector<128x128xf32>, vector<256x128xf32> -> vector<256x128xf32>
    %86 = arith.addf %82, %85 : vector<256x128xf32>
    %c0_114 = arith.constant 0 : index
    %c0_115 = arith.constant 0 : index
    %87 = vector.load %arg8[%c0_114, %c0_115] : memref<256x128xf32, #tpu.memory_space<vmem>>, vector<256x128xf32>
    tpu.vector_store %arg8[%c0_114, %c0_115], %86 {strides = array<i32>} : memref<256x128xf32, #tpu.memory_space<vmem>>, vector<256x128xf32>,
    %c0_116 = arith.constant 0 : index
    %c2_117 = arith.constant 2 : index
    %c0_118 = arith.constant 0 : index
    %c0_119 = arith.constant 0 : index
    %88 = vector.load %arg7[%c0_116, %c2_117, %c0_118, %c0_119] : memref<3x18x16x128xf32, #tpu.memory_space<vmem>>, vector<1x16x16x128xf32>
    %89 = vector.shape_cast %88 : vector<1x16x16x128xf32> to vector<16x16x128xf32>
    %90 = vector.shape_cast %89 : vector<16x16x128xf32> to vector<256x128xf32>
    %c0_120 = arith.constant 0 : index
    %c0_121 = arith.constant 0 : index
    %91 = vector.load %arg8[%c0_120, %c0_121] : memref<256x128xf32, #tpu.memory_space<vmem>>, vector<256x128xf32>
    %c6 = arith.constant 6 : index
    %c0_122 = arith.constant 0 : index
    %c0_123 = arith.constant 0 : index
    %92 = vector.load %arg4[%c6, %c0_122, %c0_123] : memref<9x128x128xf32, #tpu.memory_space<vmem>>, vector<1x128x128xf32>
    %93 = vector.shape_cast %92 : vector<1x128x128xf32> to vector<128x128xf32>
    %cst_124 = arith.constant dense<0.000000e+00> : vector<256x128xf32>
    %94 = tpu.matmul %90, %93, %cst_124 {dimension_numbers = #tpu.dot_dimension_numbers<[1], [0], [0], [1], [0, 0, 1, 1], [], []>} : vector<256x128xf32>, vector<128x128xf32>, vector<256x128xf32> -> vector<256x128xf32>
    %95 = arith.addf %91, %94 : vector<256x128xf32>
    %c0_125 = arith.constant 0 : index
    %c0_126 = arith.constant 0 : index
    %96 = vector.load %arg8[%c0_125, %c0_126] : memref<256x128xf32, #tpu.memory_space<vmem>>, vector<256x128xf32>
    tpu.vector_store %arg8[%c0_125, %c0_126], %95 {strides = array<i32>} : memref<256x128xf32, #tpu.memory_space<vmem>>, vector<256x128xf32>,
    %c1_127 = arith.constant 1 : index
    %c2_128 = arith.constant 2 : index
    %c0_129 = arith.constant 0 : index
    %c0_130 = arith.constant 0 : index
    %97 = vector.load %arg7[%c1_127, %c2_128, %c0_129, %c0_130] : memref<3x18x16x128xf32, #tpu.memory_space<vmem>>, vector<1x16x16x128xf32>
    %98 = vector.shape_cast %97 : vector<1x16x16x128xf32> to vector<16x16x128xf32>
    %99 = vector.shape_cast %98 : vector<16x16x128xf32> to vector<256x128xf32>
    %c0_131 = arith.constant 0 : index
    %c0_132 = arith.constant 0 : index
    %100 = vector.load %arg8[%c0_131, %c0_132] : memref<256x128xf32, #tpu.memory_space<vmem>>, vector<256x128xf32>
    %c7 = arith.constant 7 : index
    %c0_133 = arith.constant 0 : index
    %c0_134 = arith.constant 0 : index
    %101 = vector.load %arg4[%c7, %c0_133, %c0_134] : memref<9x128x128xf32, #tpu.memory_space<vmem>>, vector<1x128x128xf32>
    %102 = vector.shape_cast %101 : vector<1x128x128xf32> to vector<128x128xf32>
    %cst_135 = arith.constant dense<0.000000e+00> : vector<256x128xf32>
    %103 = tpu.matmul %99, %102, %cst_135 {dimension_numbers = #tpu.dot_dimension_numbers<[1], [0], [0], [1], [0, 0, 1, 1], [], []>} : vector<256x128xf32>, vector<128x128xf32>, vector<256x128xf32> -> vector<256x128xf32>
    %104 = arith.addf %100, %103 : vector<256x128xf32>
    %c0_136 = arith.constant 0 : index
    %c0_137 = arith.constant 0 : index
    %105 = vector.load %arg8[%c0_136, %c0_137] : memref<256x128xf32, #tpu.memory_space<vmem>>, vector<256x128xf32>
    tpu.vector_store %arg8[%c0_136, %c0_137], %104 {strides = array<i32>} : memref<256x128xf32, #tpu.memory_space<vmem>>, vector<256x128xf32>,
    %c2_138 = arith.constant 2 : index
    %c2_139 = arith.constant 2 : index
    %c0_140 = arith.constant 0 : index
    %c0_141 = arith.constant 0 : index
    %106 = vector.load %arg7[%c2_138, %c2_139, %c0_140, %c0_141] : memref<3x18x16x128xf32, #tpu.memory_space<vmem>>, vector<1x16x16x128xf32>
    %107 = vector.shape_cast %106 : vector<1x16x16x128xf32> to vector<16x16x128xf32>
    %108 = vector.shape_cast %107 : vector<16x16x128xf32> to vector<256x128xf32>
    %c0_142 = arith.constant 0 : index
    %c0_143 = arith.constant 0 : index
    %109 = vector.load %arg8[%c0_142, %c0_143] : memref<256x128xf32, #tpu.memory_space<vmem>>, vector<256x128xf32>
    %c8 = arith.constant 8 : index
    %c0_144 = arith.constant 0 : index
    %c0_145 = arith.constant 0 : index
    %110 = vector.load %arg4[%c8, %c0_144, %c0_145] : memref<9x128x128xf32, #tpu.memory_space<vmem>>, vector<1x128x128xf32>
    %111 = vector.shape_cast %110 : vector<1x128x128xf32> to vector<128x128xf32>
    %cst_146 = arith.constant dense<0.000000e+00> : vector<256x128xf32>
    %112 = tpu.matmul %108, %111, %cst_146 {dimension_numbers = #tpu.dot_dimension_numbers<[1], [0], [0], [1], [0, 0, 1, 1], [], []>} : vector<256x128xf32>, vector<128x128xf32>, vector<256x128xf32> -> vector<256x128xf32>
    %113 = arith.addf %109, %112 : vector<256x128xf32>
    %c0_147 = arith.constant 0 : index
    %c0_148 = arith.constant 0 : index
    %114 = vector.load %arg8[%c0_147, %c0_148] : memref<256x128xf32, #tpu.memory_space<vmem>>, vector<256x128xf32>
    tpu.vector_store %arg8[%c0_147, %c0_148], %113 {strides = array<i32>} : memref<256x128xf32, #tpu.memory_space<vmem>>, vector<256x128xf32>,
    %c0_149 = arith.constant 0 : index
    %c0_150 = arith.constant 0 : index
    %115 = vector.load %arg8[%c0_149, %c0_150] : memref<256x128xf32, #tpu.memory_space<vmem>>, vector<256x128xf32>
    %116 = vector.shape_cast %115 : vector<256x128xf32> to vector<16x16x128xf32>
    %c0_151 = arith.constant 0 : index
    %c0_152 = arith.constant 0 : index
    %c0_153 = arith.constant 0 : index
    %c0_154 = arith.constant 0 : index
    %117 = vector.load %arg6[%c0_151, %c0_152, %c0_153, %c0_154] : memref<1x16x16x128xf32, #tpu.memory_space<vmem>>, vector<1x16x16x128xf32>
    %118 = vector.shape_cast %117 : vector<1x16x16x128xf32> to vector<16x16x128xf32>
    %119 = vector.shape_cast %116 : vector<16x16x128xf32> to vector<1x16x16x128xf32>
    tpu.vector_store %arg6[%c0_151, %c0_152, %c0_153, %c0_154], %119 {strides = array<i32>} : memref<1x16x16x128xf32, #tpu.memory_space<vmem>>, vector<1x16x16x128xf32>,
    return
  }
  func.func @transform_0(%arg0: i32, %arg1: i32) -> (i32, i32, i32, i32) {
    %c0_i32 = arith.constant 0 : i32
    %c0_i32_0 = arith.constant 0 : i32
    %c0_i32_1 = arith.constant 0 : i32
    return %arg0, %arg1, %c0_i32, %c0_i32_0 : i32, i32, i32, i32
  }
  func.func @transform_1(%arg0: i32, %arg1: i32) -> (i32, i32, i32, i32) {
    %c1_i32 = arith.constant 1 : i32
    %0 = arith.addi %arg1, %c1_i32 : i32
    %c8_i32 = arith.constant 8 : i32
    %1 = arith.muli %0, %c8_i32 : i32
    %c0_i32 = arith.constant 0 : i32
    %c0_i32_0 = arith.constant 0 : i32
    %c0_i32_1 = arith.constant 0 : i32
    return %arg0, %1, %c0_i32, %c0_i32_0 : i32, i32, i32, i32
  }
  func.func @transform_2(%arg0: i32, %arg1: i32) -> (i32, i32, i32) {
    %c0_i32 = arith.constant 0 : i32
    %c0_i32_0 = arith.constant 0 : i32
    %c0_i32_1 = arith.constant 0 : i32
    %c0_i32_2 = arith.constant 0 : i32
    return %c0_i32, %c0_i32_0, %c0_i32_1 : i32, i32, i32
  }
  func.func @transform_3(%arg0: i32, %arg1: i32) -> (i32, i32) {
    %c0_i32 = arith.constant 0 : i32
    %c0_i32_0 = arith.constant 0 : i32
    %c0_i32_1 = arith.constant 0 : i32
    return %c0_i32, %c0_i32_0 : i32, i32
  }
  func.func @transform_4(%arg0: i32, %arg1: i32) -> (i32, i32, i32, i32) {
    %c0_i32 = arith.constant 0 : i32
    %c0_i32_0 = arith.constant 0 : i32
    %c0_i32_1 = arith.constant 0 : i32
    return %arg0, %arg1, %c0_i32, %c0_i32_0 : i32, i32, i32, i32
  }
}

</mosaic_0001>

<llo_original>
// kernel: tpu_custom_call.1
$region0: #{tpu_custom_call.1}
  #allocation0 [shape = 'u32[]', space=smem, size = 0x4, offset = 0x4, fixed_abs, tag = 'smem constant byte address 0x4 - core index']
  #allocation1 [shape = 'u32[144,128]{1,0:T(1,128)}', space=vmem, size = 0x12000, scoped, tag = 'internal scratch']
  #allocation2 [shape = 'f32[3,18,16,128]{3,2,1,0:T(8,128)}', space=vmem, size = 0x6c000, scoped, tag = 'scratch operand']
  #allocation3 [shape = 'f32[256,128]{1,0:T(8,128)}', space=vmem, size = 0x20000, scoped, tag = 'scratch operand']
  %s0 = inlined_call_operand.vmem [shape: f32[2,32,18,128], index: 0, kind: input, shape index: {}]
  %s1 = inlined_call_operand.vmem [shape: f32[2,32,18,128], index: 1, kind: input, shape index: {}]
  %s2 = inlined_call_operand.vmem [shape: f32[9,128,128], index: 2, kind: input, shape index: {}]
  %s3 = inlined_call_operand.vmem [shape: f32[1,128], index: 3, kind: input, shape index: {}]
  %s4 = inlined_call_operand.hbm [shape: f32[2,16,16,128], index: 4, kind: output, shape index: {}]
  %s5 = sld [smem:[#allocation0]]
  $region49: #{tpu_custom_call.1} parent=0
    _
  %s7 = ssub.s32 1, %s5
  %s8 = scalar_select 0, %s7, %s5
  $region1: #{tpu_custom_call.1} parent=0
    #allocation4 [shape = 'u8[262144]{0}', space=vmem, size = 0x40000, scoped, tag = 'output window, operand 0']
    #allocation5 [shape = 's32[2]{0}', space=sflag, size = 0x8, scoped, tag = 'scoped memory for tpu_custom_call.1']
    %9 = vsyncpa [#allocation5], 0
    %s10 = scalar_lea.sflag [#allocation5], 1
    %11 = vsyncpa %s10, 0
    loop: start=0, step=1, limit=4
    $region2: #{tpu_custom_call.1} parent=1 // loop_pre_header
      _
    $region3: #{tpu_custom_call.1} parent=1 // loop_header
      %s13 = sphi 0, %s17
      %p14 = scmp.ge.s32.totalorder %s13, 4
      %s20 = sphi 0, %s32
      %s21 = sphi 0, %s28
      %s22 = sphi 0, %s20
      %s23 = sphi 0, %s21
      %s24 = sphi 0, %s22
      %s25 = sphi 0, %s23
      %s37 = sphi 0, %s39
      %s40 = sphi 0, %s37
      %s41 = sphi 0, %s40
      %s57 = sphi 0, %s41
      %s69 = sphi 0, %s71
      %s72 = sphi 0, %s69
      %s73 = sphi 0, %s72
      %s89 = sphi 0, %s73
      %s93 = sphi 0, %s93
      %s95 = sphi 0, %s93
      %s96 = sphi 0, %s95
      %s110 = sphi 0, %s96
      %s114 = sphi 0, %s114
      %s116 = sphi 0, %s114
      %s117 = sphi 0, %s116
      %s131 = sphi 0, %s117
      %s139 = sphi 0, %s141
      %s142 = sphi 0, %s139
      %s143 = sphi 0, %s142
      %s159 = sphi 0, %s143
    $region4: #{tpu_custom_call.1} parent=1 // loop_header_branch
      %16 = sbr.rel (%p14) target = $region8
    $region5: #{tpu_custom_call.1} parent=1 // loop_body
      %s18 = ssub.s32 %s13, 1
      %s19 = ssub.s32 %s13, 2
      %s26 = sadd.s32 1, %s21
      %p27 = scmp.ge.s32.totalorder %s26, 1
      %s28 = scalar_select %p27, 0, %s26
      %s29 = sadd.s32 1, %s20
      %s30 = scalar_select %p27, %s29, %s20
      %p31 = scmp.ge.s32.totalorder %s30, 2
      %s32 = scalar_select %p31, 0, %s30
      %s33 = ssub.s32 %s20, %s32
      %s34 = ssub.s32 %s21, %s28
      %s35 = sor.u32 %s33, %s34
      %p36 = scmp.eq.s32.totalorder %s35, 0
      %s38 = sadd.s32 %s37, 1
      %s39 = scalar_select %p36, %s37, %s38
      %p42 = pneg %p36
      %p43 = scmp.eq.s32.totalorder %s13, 1
      %p44 = por %p42, %p43
      %p45 = scmp.ne.s32.totalorder %s37, %s40
      %p46 = scmp.eq.s32.totalorder %s13, 0
      %p47 = por %p45, %p46
      %p48 = scmp.ne.s32.totalorder %s37, %s40
      %p49 = scmp.eq.s32.totalorder %s18, 1
      %p50 = por %p48, %p49
      %p51 = scmp.ne.s32.totalorder %s40, %s41
      %p52 = scmp.eq.s32.totalorder %s18, 0
      %p53 = por %p51, %p52
      %p54 = scmp.ne.s32.totalorder %s40, %s41
      %p55 = scmp.eq.s32.totalorder %s19, 1
      %p56 = por %p54, %p55
      %p58 = scmp.ne.s32.totalorder %s41, %s57
      %p59 = scmp.eq.s32.totalorder %s19, 0
      %p60 = por %p58, %p59
      %s61 = sadd.s32 %s21, 1
      %s62 = smul.u32 %s61, 8
      %s63 = sadd.s32 %s28, 1
      %s64 = smul.u32 %s63, 8
      %s65 = ssub.s32 %s20, %s32
      %s66 = ssub.s32 %s62, %s64
      %s67 = sor.u32 %s65, %s66
      %p68 = scmp.eq.s32.totalorder %s67, 0
      %s70 = sadd.s32 %s69, 1
      %s71 = scalar_select %p68, %s69, %s70
      %p74 = pneg %p68
      %p75 = scmp.eq.s32.totalorder %s13, 1
      %p76 = por %p74, %p75
      %p77 = scmp.ne.s32.totalorder %s69, %s72
      %p78 = scmp.eq.s32.totalorder %s13, 0
      %p79 = por %p77, %p78
      %p80 = scmp.ne.s32.totalorder %s69, %s72
      %p81 = scmp.eq.s32.totalorder %s18, 1
      %p82 = por %p80, %p81
      %p83 = scmp.ne.s32.totalorder %s72, %s73
      %p84 = scmp.eq.s32.totalorder %s18, 0
      %p85 = por %p83, %p84
      %p86 = scmp.ne.s32.totalorder %s72, %s73
      %p87 = scmp.eq.s32.totalorder %s19, 1
      %p88 = por %p86, %p87
      %p90 = scmp.ne.s32.totalorder %s73, %s89
      %p91 = scmp.eq.s32.totalorder %s19, 0
      %p92 = por %p90, %p91
      %s94 = sadd.s32 %s93, 1
      %p97 = scmp.eq.s32.totalorder %s13, 1
      %p98 = scmp.ne.s32.totalorder %s93, %s95
      %p99 = scmp.eq.s32.totalorder %s13, 0
      %p100 = por %p98, %p99
      %p101 = scmp.ne.s32.totalorder %s93, %s95
      %p102 = scmp.eq.s32.totalorder %s18, 1
      %p103 = por %p101, %p102
      %p104 = scmp.ne.s32.totalorder %s95, %s96
      %p105 = scmp.eq.s32.totalorder %s18, 0
      %p106 = por %p104, %p105
      %p107 = scmp.ne.s32.totalorder %s95, %s96
      %p108 = scmp.eq.s32.totalorder %s19, 1
      %p109 = por %p107, %p108
      %p111 = scmp.ne.s32.totalorder %s96, %s110
      %p112 = scmp.eq.s32.totalorder %s19, 0
      %p113 = por %p111, %p112
      %s115 = sadd.s32 %s114, 1
      %p118 = scmp.eq.s32.totalorder %s13, 1
      %p119 = scmp.ne.s32.totalorder %s114, %s116
      %p120 = scmp.eq.s32.totalorder %s13, 0
      %p121 = por %p119, %p120
      %p122 = scmp.ne.s32.totalorder %s114, %s116
      %p123 = scmp.eq.s32.totalorder %s18, 1
      %p124 = por %p122, %p123
      %p125 = scmp.ne.s32.totalorder %s116, %s117
      %p126 = scmp.eq.s32.totalorder %s18, 0
      %p127 = por %p125, %p126
      %p128 = scmp.ne.s32.totalorder %s116, %s117
      %p129 = scmp.eq.s32.totalorder %s19, 1
      %p130 = por %p128, %p129
      %p132 = scmp.ne.s32.totalorder %s117, %s131
      %p133 = scmp.eq.s32.totalorder %s19, 0
      %p134 = por %p132, %p133
      %s135 = ssub.s32 %s20, %s32
      %s136 = ssub.s32 %s21, %s28
      %s137 = sor.u32 %s135, %s136
      %p138 = scmp.eq.s32.totalorder %s137, 0
      %s140 = sadd.s32 %s139, 1
      %s141 = scalar_select %p138, %s139, %s140
      %p144 = pneg %p138
      %p145 = scmp.eq.s32.totalorder %s13, 1
      %p146 = por %p144, %p145
      %p147 = scmp.ne.s32.totalorder %s139, %s142
      %p148 = scmp.eq.s32.totalorder %s13, 0
      %p149 = por %p147, %p148
      %p150 = scmp.ne.s32.totalorder %s139, %s142
      %p151 = scmp.eq.s32.totalorder %s18, 1
      %p152 = por %p150, %p151
      %p153 = scmp.ne.s32.totalorder %s142, %s143
      %p154 = scmp.eq.s32.totalorder %s18, 0
      %p155 = por %p153, %p154
      %p156 = scmp.ne.s32.totalorder %s142, %s143
      %p157 = scmp.eq.s32.totalorder %s19, 1
      %p158 = por %p156, %p157
      %p160 = scmp.ne.s32.totalorder %s143, %s159
      %p161 = scmp.eq.s32.totalorder %s19, 0
      %p162 = por %p160, %p161
      %p163 = scmp.le.s32.totalorder 1, %s13
      %p164 = scmp.lt.s32.totalorder %s13, 3
      %p165 = pnand %p163, %p164
      %p166 = pneg %p165
      // Predicated region
      $region9: #{tpu_custom_call.1} parent=5 // pred_check
        _
      $region10: #{tpu_custom_call.1} parent=5 // pred_check_branch
        %168 = sbr.rel (%p165) target = $region12
      $region11: #{tpu_custom_call.1} parent=5 // pred_region
        %s169 = ssub.s32 %s13, 1
        // Predicated region
        $region13: #{tpu_custom_call.1} parent=11 // pred_check
          %p170 = pneg %p106
        $region14: #{tpu_custom_call.1} parent=11 // pred_check_branch
          %172 = sbr.rel (%p170) target = $region16
        $region15: #{tpu_custom_call.1} parent=11 // pred_region
          _
        $region16: #{tpu_custom_call.1} parent=11 // pred_fallthru
          _
        // Predicated region
        $region17: #{tpu_custom_call.1} parent=11 // pred_check
          %p173 = pneg %p127
        $region18: #{tpu_custom_call.1} parent=11 // pred_check_branch
          %175 = sbr.rel (%p173) target = $region20
        $region19: #{tpu_custom_call.1} parent=11 // pred_region
          _
        $region20: #{tpu_custom_call.1} parent=11 // pred_fallthru
          _
      $region12: #{tpu_custom_call.1} parent=5 // pred_fallthru
        _
      %p176 = scmp.lt.s32.totalorder %s13, 2
      // Predicated region
      $region21: #{tpu_custom_call.1} parent=5 // pred_check
        %p177 = pneg %p176
      $region22: #{tpu_custom_call.1} parent=5 // pred_check_branch
        %179 = sbr.rel (%p177) target = $region24
      $region23: #{tpu_custom_call.1} parent=5 // pred_region
        // Predicated region
        $region25: #{tpu_custom_call.1} parent=23 // pred_check
          %p180 = pneg %p47
        $region26: #{tpu_custom_call.1} parent=23 // pred_check_branch
          %182 = sbr.rel (%p180) target = $region28
        $region27: #{tpu_custom_call.1} parent=23 // pred_region
          %s183 = smul.u32 16, %s21
          %p184 = scmp.lt.s32.totalorder %s20, 1
          %s185 = scalar_select %p184, %s20, 1
          %p186 = scmp.lt.s32.totalorder %s183, 31
          %s187 = scalar_select %p186, %s183, 31
          %s188 = smul.addr %s187, 3
          %s189 = smul.addr %s185, 96
          %s190 = sadd.s32 %s188, %s189
          %s191 = smul.addr %s190, 8
          %s192 = scalar_lea.vmem %s0, %s191
          %s193 = smul.u32 16, %s21
        $region28: #{tpu_custom_call.1} parent=23 // pred_fallthru
          _
        // Predicated region
        $region29: #{tpu_custom_call.1} parent=23 // pred_check
          %p194 = pneg %p79
        $region30: #{tpu_custom_call.1} parent=23 // pred_check_branch
          %196 = sbr.rel (%p194) target = $region32
        $region31: #{tpu_custom_call.1} parent=23 // pred_region
          %s197 = sadd.s32 %s21, 1
          %s198 = smul.u32 %s197, 8
          %s199 = smul.u32 2, %s198
          %p200 = scmp.lt.s32.totalorder %s20, 1
          %s201 = scalar_select %p200, %s20, 1
          %p202 = scmp.lt.s32.totalorder %s199, 31
          %s203 = scalar_select %p202, %s199, 31
          %s204 = smul.addr %s203, 3
          %s205 = smul.addr %s201, 96
          %s206 = sadd.s32 %s204, %s205
          %s207 = smul.addr %s206, 8
          %s208 = scalar_lea.vmem %s1, %s207
          %s209 = sadd.s32 %s21, 1
          %s210 = smul.u32 %s209, 8
          %s211 = smul.u32 2, %s210
        $region32: #{tpu_custom_call.1} parent=23 // pred_fallthru
          _
      $region24: #{tpu_custom_call.1} parent=5 // pred_fallthru
        _
      %p212 = scmp.le.s32.totalorder 1, %s13
      %p213 = scmp.lt.s32.totalorder %s13, 3
      %p214 = pnand %p212, %p213
      %p215 = pneg %p214
      // Predicated region
      $region33: #{tpu_custom_call.1} parent=5 // pred_check
        _
      $region34: #{tpu_custom_call.1} parent=5 // pred_check_branch
        %217 = sbr.rel (%p214) target = $region36
      $region35: #{tpu_custom_call.1} parent=5 // pred_region
        %s218 = ssub.s32 %s13, 1
        %s219 = smul.u32 16, %s23
        %p220 = scmp.lt.s32.totalorder %s22, 1
        %s221 = scalar_select %p220, %s22, 1
        %p222 = scmp.lt.s32.totalorder %s219, 31
        %s223 = scalar_select %p222, %s219, 31
        %s224 = smul.addr %s223, 3
        %s225 = smul.addr %s221, 96
        %s226 = sadd.s32 %s224, %s225
        %s227 = smul.addr %s226, 8
        %s228 = scalar_lea.vmem %s0, %s227
        %p229 = pneg %p53
        %p230 = pneg %p50
        %s231 = sadd.s32 %s23, 1
        %s232 = smul.u32 %s231, 8
        %s233 = smul.u32 2, %s232
        %p234 = scmp.lt.s32.totalorder %s22, 1
        %s235 = scalar_select %p234, %s22, 1
        %p236 = scmp.lt.s32.totalorder %s233, 31
        %s237 = scalar_select %p236, %s233, 31
        %s238 = smul.addr %s237, 3
        %s239 = smul.addr %s235, 96
        %s240 = sadd.s32 %s238, %s239
        %s241 = smul.addr %s240, 8
        %s242 = scalar_lea.vmem %s1, %s241
        %p243 = pneg %p85
        %p244 = pneg %p82
        %p245 = pneg %p106
        %p246 = pneg %p103
        %p247 = pneg %p127
        %p248 = pneg %p124
        %p249 = pneg %p155
        %p250 = pneg %p152
        %s251 = sand.u32 %s142, 1
        %s252 = scalar_lea.sflag [#allocation5], %s251
        %s253 = sand.u32 %s142, 1
        %s254 = smul.addr %s253, 256
        %s255 = scalar_lea.vmem [#allocation4], %s254
        %s256 = smul.u32 16, %s23
        %p257 = scmp.lt.s32.totalorder %s22, 1
        %s258 = scalar_select %p257, %s22, 1
        %p259 = scmp.lt.s32.totalorder %s256, 31
        %s260 = scalar_select %p259, %s256, 31
        %s261 = smul.addr %s260, 3
        %s262 = smul.addr %s258, 96
        %s263 = sadd.s32 %s261, %s262
        %s264 = smul.addr %s263, 8
        %s265 = scalar_lea.vmem %s0, %s264
        %s266 = smul.u32 16, %s23
        %s267 = sadd.s32 %s23, 1
        %s268 = smul.u32 %s267, 8
        %s269 = smul.u32 2, %s268
        %p270 = scmp.lt.s32.totalorder %s22, 1
        %s271 = scalar_select %p270, %s22, 1
        %p272 = scmp.lt.s32.totalorder %s269, 31
        %s273 = scalar_select %p272, %s269, 31
        %s274 = smul.addr %s273, 3
        %s275 = smul.addr %s271, 96
        %s276 = sadd.s32 %s274, %s275
        %s277 = smul.addr %s276, 8
        %s278 = scalar_lea.vmem %s1, %s277
        %s279 = sadd.s32 %s23, 1
        %s280 = smul.u32 %s279, 8
        %s281 = smul.u32 2, %s280
        %s282 = smul.u32 16, %s23
        %v283 = vld [vmem:[%s3] sm:$0x1]
        %v285 = vlaneseq
        %v286 = vshrl.u32 %v285, 7
        %v287 = vsub.s32 0, %v286
        %v288 = vrot.slane %v283, %v287
        %290 = vst [vmem:[#allocation3] sm:$0xff] %v288
        %291 = vst [vmem:[#allocation3 + $0x8] sm:$0xff] %v288
        %292 = vst [vmem:[#allocation3 + $0x10] sm:$0xff] %v288
        %293 = vst [vmem:[#allocation3 + $0x18] sm:$0xff] %v288
        %294 = vst [vmem:[#allocation3 + $0x20] sm:$0xff] %v288
        %295 = vst [vmem:[#allocation3 + $0x28] sm:$0xff] %v288
        %296 = vst [vmem:[#allocation3 + $0x30] sm:$0xff] %v288
        %297 = vst [vmem:[#allocation3 + $0x38] sm:$0xff] %v288
        %298 = vst [vmem:[#allocation3 + $0x40] sm:$0xff] %v288
        %299 = vst [vmem:[#allocation3 + $0x48] sm:$0xff] %v288
        %300 = vst [vmem:[#allocation3 + $0x50] sm:$0xff] %v288
        %301 = vst [vmem:[#allocation3 + $0x58] sm:$0xff] %v288
        %302 = vst [vmem:[#allocation3 + $0x60] sm:$0xff] %v288
        %303 = vst [vmem:[#allocation3 + $0x68] sm:$0xff] %v288
        %304 = vst [vmem:[#allocation3 + $0x70] sm:$0xff] %v288
        %305 = vst [vmem:[#allocation3 + $0x78] sm:$0xff] %v288
        %306 = vst [vmem:[#allocation3 + $0x80] sm:$0xff] %v288
        %307 = vst [vmem:[#allocation3 + $0x88] sm:$0xff] %v288
        %308 = vst [vmem:[#allocation3 + $0x90] sm:$0xff] %v288
        %309 = vst [vmem:[#allocation3 + $0x98] sm:$0xff] %v288
        %310 = vst [vmem:[#allocation3 + $0xa0] sm:$0xff] %v288
        %311 = vst [vmem:[#allocation3 + $0xa8] sm:$0xff] %v288
        %312 = vst [vmem:[#allocation3 + $0xb0] sm:$0xff] %v288
        %313 = vst [vmem:[#allocation3 + $0xb8] sm:$0xff] %v288
        %314 = vst [vmem:[#allocation3 + $0xc0] sm:$0xff] %v288
        %315 = vst [vmem:[#allocation3 + $0xc8] sm:$0xff] %v288
        %316 = vst [vmem:[#allocation3 + $0xd0] sm:$0xff] %v288
        %317 = vst [vmem:[#allocation3 + $0xd8] sm:$0xff] %v288
        %318 = vst [vmem:[#allocation3 + $0xe0] sm:$0xff] %v288
        %319 = vst [vmem:[#allocation3 + $0xe8] sm:$0xff] %v288
        %320 = vst [vmem:[#allocation3 + $0xf0] sm:$0xff] %v288
        %321 = vst [vmem:[#allocation3 + $0xf8] sm:$0xff] %v288
        %v322 = vld [vmem:[%s265] sm:$0xff]
        %v323 = vld [vmem:[%s265 + $0x8] sm:$0xff]
        %v324 = vld [vmem:[%s265 + $0x18] sm:$0xff]
        %v325 = vld [vmem:[%s265 + $0x20] sm:$0xff]
        %v326 = vld [vmem:[%s265 + $0x30] sm:$0xff]
        %v327 = vld [vmem:[%s265 + $0x38] sm:$0xff]
        %v328 = vld [vmem:[%s265 + $0x48] sm:$0xff]
        %v329 = vld [vmem:[%s265 + $0x50] sm:$0xff]
        %v330 = vld [vmem:[%s265 + $0x60] sm:$0xff]
        %v331 = vld [vmem:[%s265 + $0x68] sm:$0xff]
        %v332 = vld [vmem:[%s265 + $0x78] sm:$0xff]
        %v333 = vld [vmem:[%s265 + $0x80] sm:$0xff]
        %v334 = vld [vmem:[%s265 + $0x90] sm:$0xff]
        %v335 = vld [vmem:[%s265 + $0x98] sm:$0xff]
        %v336 = vld [vmem:[%s265 + $0xa8] sm:$0xff]
        %v337 = vld [vmem:[%s265 + $0xb0] sm:$0xff]
        %v338 = vld [vmem:[%s265 + $0xc0] sm:$0xff]
        %v339 = vld [vmem:[%s265 + $0xc8] sm:$0xff]
        %v340 = vld [vmem:[%s265 + $0xd8] sm:$0xff]
        %v341 = vld [vmem:[%s265 + $0xe0] sm:$0xff]
        %v342 = vld [vmem:[%s265 + $0xf0] sm:$0xff]
        %v343 = vld [vmem:[%s265 + $0xf8] sm:$0xff]
        %v344 = vld [vmem:[%s265 + $0x108] sm:$0xff]
        %v345 = vld [vmem:[%s265 + $0x110] sm:$0xff]
        %v346 = vld [vmem:[%s265 + $0x120] sm:$0xff]
        %v347 = vld [vmem:[%s265 + $0x128] sm:$0xff]
        %v348 = vld [vmem:[%s265 + $0x138] sm:$0xff]
        %v349 = vld [vmem:[%s265 + $0x140] sm:$0xff]
        %v350 = vld [vmem:[%s265 + $0x150] sm:$0xff]
        %v351 = vld [vmem:[%s265 + $0x158] sm:$0xff]
        %v352 = vld [vmem:[%s265 + $0x168] sm:$0xff]
        %v353 = vld [vmem:[%s265 + $0x170] sm:$0xff]
        %354 = vst [vmem:[#allocation2] sm:$0xff] %v322
        %355 = vst [vmem:[#allocation2 + $0x8] sm:$0xff] %v323
        %356 = vst [vmem:[#allocation2 + $0x10] sm:$0xff] %v324
        %357 = vst [vmem:[#allocation2 + $0x18] sm:$0xff] %v325
        %358 = vst [vmem:[#allocation2 + $0x20] sm:$0xff] %v326
        %359 = vst [vmem:[#allocation2 + $0x28] sm:$0xff] %v327
        %360 = vst [vmem:[#allocation2 + $0x30] sm:$0xff] %v328
        %361 = vst [vmem:[#allocation2 + $0x38] sm:$0xff] %v329
        %362 = vst [vmem:[#allocation2 + $0x40] sm:$0xff] %v330
        %363 = vst [vmem:[#allocation2 + $0x48] sm:$0xff] %v331
        %364 = vst [vmem:[#allocation2 + $0x50] sm:$0xff] %v332
        %365 = vst [vmem:[#allocation2 + $0x58] sm:$0xff] %v333
        %366 = vst [vmem:[#allocation2 + $0x60] sm:$0xff] %v334
        %367 = vst [vmem:[#allocation2 + $0x68] sm:$0xff] %v335
        %368 = vst [vmem:[#allocation2 + $0x70] sm:$0xff] %v336
        %369 = vst [vmem:[#allocation2 + $0x78] sm:$0xff] %v337
        %370 = vst [vmem:[#allocation2 + $0x80] sm:$0xff] %v338
        %371 = vst [vmem:[#allocation2 + $0x88] sm:$0xff] %v339
        %372 = vst [vmem:[#allocation2 + $0x90] sm:$0xff] %v340
        %373 = vst [vmem:[#allocation2 + $0x98] sm:$0xff] %v341
        %374 = vst [vmem:[#allocation2 + $0xa0] sm:$0xff] %v342
        %375 = vst [vmem:[#allocation2 + $0xa8] sm:$0xff] %v343
        %376 = vst [vmem:[#allocation2 + $0xb0] sm:$0xff] %v344
        %377 = vst [vmem:[#allocation2 + $0xb8] sm:$0xff] %v345
        %378 = vst [vmem:[#allocation2 + $0xc0] sm:$0xff] %v346
        %379 = vst [vmem:[#allocation2 + $0xc8] sm:$0xff] %v347
        %380 = vst [vmem:[#allocation2 + $0xd0] sm:$0xff] %v348
        %381 = vst [vmem:[#allocation2 + $0xd8] sm:$0xff] %v349
        %382 = vst [vmem:[#allocation2 + $0xe0] sm:$0xff] %v350
        %383 = vst [vmem:[#allocation2 + $0xe8] sm:$0xff] %v351
        %384 = vst [vmem:[#allocation2 + $0xf0] sm:$0xff] %v352
        %385 = vst [vmem:[#allocation2 + $0xf8] sm:$0xff] %v353
        %v386 = vld [vmem:[%s278] sm:$0xff]
        %v387 = vld [vmem:[%s278 + $0x8] sm:$0xff]
        %v388 = vld [vmem:[%s278 + $0x18] sm:$0xff]
        %v389 = vld [vmem:[%s278 + $0x20] sm:$0xff]
        %s390 = scalar_lea.vmem [#allocation2], 256
        %391 = vst [vmem:[%s390] sm:$0xff] %v386
        %392 = vst [vmem:[%s390 + $0x8] sm:$0xff] %v387
        %393 = vst [vmem:[%s390 + $0x10] sm:$0xff] %v388
        %394 = vst [vmem:[%s390 + $0x18] sm:$0xff] %v389
        %v395 = vld [vmem:[%s265 + $0x1] sm:$0xff]
        %v396 = vld [vmem:[%s265 + $0x9] sm:$0xff]
        %v397 = vld [vmem:[%s265 + $0x19] sm:$0xff]
        %v398 = vld [vmem:[%s265 + $0x21] sm:$0xff]
        %v399 = vld [vmem:[%s265 + $0x31] sm:$0xff]
        %v400 = vld [vmem:[%s265 + $0x39] sm:$0xff]
        %v401 = vld [vmem:[%s265 + $0x49] sm:$0xff]
        %v402 = vld [vmem:[%s265 + $0x51] sm:$0xff]
        %v403 = vld [vmem:[%s265 + $0x61] sm:$0xff]
        %v404 = vld [vmem:[%s265 + $0x69] sm:$0xff]
        %v405 = vld [vmem:[%s265 + $0x79] sm:$0xff]
        %v406 = vld [vmem:[%s265 + $0x81] sm:$0xff]
        %v407 = vld [vmem:[%s265 + $0x91] sm:$0xff]
        %v408 = vld [vmem:[%s265 + $0x99] sm:$0xff]
        %v409 = vld [vmem:[%s265 + $0xa9] sm:$0xff]
        %v410 = vld [vmem:[%s265 + $0xb1] sm:$0xff]
        %v411 = vld [vmem:[%s265 + $0xc1] sm:$0xff]
        %v412 = vld [vmem:[%s265 + $0xc9] sm:$0xff]
        %v413 = vld [vmem:[%s265 + $0xd9] sm:$0xff]
        %v414 = vld [vmem:[%s265 + $0xe1] sm:$0xff]
        %v415 = vld [vmem:[%s265 + $0xf1] sm:$0xff]
        %v416 = vld [vmem:[%s265 + $0xf9] sm:$0xff]
        %v417 = vld [vmem:[%s265 + $0x109] sm:$0xff]
        %v418 = vld [vmem:[%s265 + $0x111] sm:$0xff]
        %v419 = vld [vmem:[%s265 + $0x121] sm:$0xff]
        %v420 = vld [vmem:[%s265 + $0x129] sm:$0xff]
        %v421 = vld [vmem:[%s265 + $0x139] sm:$0xff]
        %v422 = vld [vmem:[%s265 + $0x141] sm:$0xff]
        %v423 = vld [vmem:[%s265 + $0x151] sm:$0xff]
        %v424 = vld [vmem:[%s265 + $0x159] sm:$0xff]
        %v425 = vld [vmem:[%s265 + $0x169] sm:$0xff]
        %v426 = vld [vmem:[%s265 + $0x171] sm:$0xff]
        %s427 = scalar_lea.vmem [#allocation2], 288
        %428 = vst [vmem:[%s427] sm:$0xff] %v395
        %429 = vst [vmem:[%s427 + $0x8] sm:$0xff] %v396
        %430 = vst [vmem:[%s427 + $0x10] sm:$0xff] %v397
        %431 = vst [vmem:[%s427 + $0x18] sm:$0xff] %v398
        %432 = vst [vmem:[%s427 + $0x20] sm:$0xff] %v399
        %433 = vst [vmem:[%s427 + $0x28] sm:$0xff] %v400
        %434 = vst [vmem:[%s427 + $0x30] sm:$0xff] %v401
        %435 = vst [vmem:[%s427 + $0x38] sm:$0xff] %v402
        %436 = vst [vmem:[%s427 + $0x40] sm:$0xff] %v403
        %437 = vst [vmem:[%s427 + $0x48] sm:$0xff] %v404
        %438 = vst [vmem:[%s427 + $0x50] sm:$0xff] %v405
        %439 = vst [vmem:[%s427 + $0x58] sm:$0xff] %v406
        %440 = vst [vmem:[%s427 + $0x60] sm:$0xff] %v407
        %441 = vst [vmem:[%s427 + $0x68] sm:$0xff] %v408
        %442 = vst [vmem:[%s427 + $0x70] sm:$0xff] %v409
        %443 = vst [vmem:[%s427 + $0x78] sm:$0xff] %v410
        %444 = vst [vmem:[%s427 + $0x80] sm:$0xff] %v411
        %445 = vst [vmem:[%s427 + $0x88] sm:$0xff] %v412
        %446 = vst [vmem:[%s427 + $0x90] sm:$0xff] %v413
        %447 = vst [vmem:[%s427 + $0x98] sm:$0xff] %v414
        %448 = vst [vmem:[%s427 + $0xa0] sm:$0xff] %v415
        %449 = vst [vmem:[%s427 + $0xa8] sm:$0xff] %v416
        %450 = vst [vmem:[%s427 + $0xb0] sm:$0xff] %v417
        %451 = vst [vmem:[%s427 + $0xb8] sm:$0xff] %v418
        %452 = vst [vmem:[%s427 + $0xc0] sm:$0xff] %v419
        %453 = vst [vmem:[%s427 + $0xc8] sm:$0xff] %v420
        %454 = vst [vmem:[%s427 + $0xd0] sm:$0xff] %v421
        %455 = vst [vmem:[%s427 + $0xd8] sm:$0xff] %v422
        %456 = vst [vmem:[%s427 + $0xe0] sm:$0xff] %v423
        %457 = vst [vmem:[%s427 + $0xe8] sm:$0xff] %v424
        %458 = vst [vmem:[%s427 + $0xf0] sm:$0xff] %v425
        %459 = vst [vmem:[%s427 + $0xf8] sm:$0xff] %v426
        %v460 = vld [vmem:[%s278 + $0x1] sm:$0xff]
        %v461 = vld [vmem:[%s278 + $0x9] sm:$0xff]
        %v462 = vld [vmem:[%s278 + $0x19] sm:$0xff]
        %v463 = vld [vmem:[%s278 + $0x21] sm:$0xff]
        %s464 = scalar_lea.vmem [#allocation2], 544
        %465 = vst [vmem:[%s464] sm:$0xff] %v460
        %466 = vst [vmem:[%s464 + $0x8] sm:$0xff] %v461
        %467 = vst [vmem:[%s464 + $0x10] sm:$0xff] %v462
        %468 = vst [vmem:[%s464 + $0x18] sm:$0xff] %v463
        %v469 = vld [vmem:[%s265 + $0x2] sm:$0xff]
        %v470 = vld [vmem:[%s265 + $0xa] sm:$0xff]
        %v471 = vld [vmem:[%s265 + $0x1a] sm:$0xff]
        %v472 = vld [vmem:[%s265 + $0x22] sm:$0xff]
        %v473 = vld [vmem:[%s265 + $0x32] sm:$0xff]
        %v474 = vld [vmem:[%s265 + $0x3a] sm:$0xff]
        %v475 = vld [vmem:[%s265 + $0x4a] sm:$0xff]
        %v476 = vld [vmem:[%s265 + $0x52] sm:$0xff]
        %v477 = vld [vmem:[%s265 + $0x62] sm:$0xff]
        %v478 = vld [vmem:[%s265 + $0x6a] sm:$0xff]
        %v479 = vld [vmem:[%s265 + $0x7a] sm:$0xff]
        %v480 = vld [vmem:[%s265 + $0x82] sm:$0xff]
        %v481 = vld [vmem:[%s265 + $0x92] sm:$0xff]
        %v482 = vld [vmem:[%s265 + $0x9a] sm:$0xff]
        %v483 = vld [vmem:[%s265 + $0xaa] sm:$0xff]
        %v484 = vld [vmem:[%s265 + $0xb2] sm:$0xff]
        %v485 = vld [vmem:[%s265 + $0xc2] sm:$0xff]
        %v486 = vld [vmem:[%s265 + $0xca] sm:$0xff]
        %v487 = vld [vmem:[%s265 + $0xda] sm:$0xff]
        %v488 = vld [vmem:[%s265 + $0xe2] sm:$0xff]
        %v489 = vld [vmem:[%s265 + $0xf2] sm:$0xff]
        %v490 = vld [vmem:[%s265 + $0xfa] sm:$0xff]
        %v491 = vld [vmem:[%s265 + $0x10a] sm:$0xff]
        %v492 = vld [vmem:[%s265 + $0x112] sm:$0xff]
        %v493 = vld [vmem:[%s265 + $0x122] sm:$0xff]
        %v494 = vld [vmem:[%s265 + $0x12a] sm:$0xff]
        %v495 = vld [vmem:[%s265 + $0x13a] sm:$0xff]
        %v496 = vld [vmem:[%s265 + $0x142] sm:$0xff]
        %v497 = vld [vmem:[%s265 + $0x152] sm:$0xff]
        %v498 = vld [vmem:[%s265 + $0x15a] sm:$0xff]
        %v499 = vld [vmem:[%s265 + $0x16a] sm:$0xff]
        %v500 = vld [vmem:[%s265 + $0x172] sm:$0xff]
        %s501 = scalar_lea.vmem [#allocation2], 576
        %502 = vst [vmem:[%s501] sm:$0xff] %v469
        %503 = vst [vmem:[%s501 + $0x8] sm:$0xff] %v470
        %504 = vst [vmem:[%s501 + $0x10] sm:$0xff] %v471
        %505 = vst [vmem:[%s501 + $0x18] sm:$0xff] %v472
        %506 = vst [vmem:[%s501 + $0x20] sm:$0xff] %v473
        %507 = vst [vmem:[%s501 + $0x28] sm:$0xff] %v474
        %508 = vst [vmem:[%s501 + $0x30] sm:$0xff] %v475
        %509 = vst [vmem:[%s501 + $0x38] sm:$0xff] %v476
        %510 = vst [vmem:[%s501 + $0x40] sm:$0xff] %v477
        %511 = vst [vmem:[%s501 + $0x48] sm:$0xff] %v478
        %512 = vst [vmem:[%s501 + $0x50] sm:$0xff] %v479
        %513 = vst [vmem:[%s501 + $0x58] sm:$0xff] %v480
        %514 = vst [vmem:[%s501 + $0x60] sm:$0xff] %v481
        %515 = vst [vmem:[%s501 + $0x68] sm:$0xff] %v482
        %516 = vst [vmem:[%s501 + $0x70] sm:$0xff] %v483
        %517 = vst [vmem:[%s501 + $0x78] sm:$0xff] %v484
        %518 = vst [vmem:[%s501 + $0x80] sm:$0xff] %v485
        %519 = vst [vmem:[%s501 + $0x88] sm:$0xff] %v486
        %520 = vst [vmem:[%s501 + $0x90] sm:$0xff] %v487
        %521 = vst [vmem:[%s501 + $0x98] sm:$0xff] %v488
        %522 = vst [vmem:[%s501 + $0xa0] sm:$0xff] %v489
        %523 = vst [vmem:[%s501 + $0xa8] sm:$0xff] %v490
        %524 = vst [vmem:[%s501 + $0xb0] sm:$0xff] %v491
        %525 = vst [vmem:[%s501 + $0xb8] sm:$0xff] %v492
        %526 = vst [vmem:[%s501 + $0xc0] sm:$0xff] %v493
        %527 = vst [vmem:[%s501 + $0xc8] sm:$0xff] %v494
        %528 = vst [vmem:[%s501 + $0xd0] sm:$0xff] %v495
        %529 = vst [vmem:[%s501 + $0xd8] sm:$0xff] %v496
        %530 = vst [vmem:[%s501 + $0xe0] sm:$0xff] %v497
        %531 = vst [vmem:[%s501 + $0xe8] sm:$0xff] %v498
        %532 = vst [vmem:[%s501 + $0xf0] sm:$0xff] %v499
        %533 = vst [vmem:[%s501 + $0xf8] sm:$0xff] %v500
        %v534 = vld [vmem:[%s278 + $0x2] sm:$0xff]
        %v535 = vld [vmem:[%s278 + $0xa] sm:$0xff]
        %v536 = vld [vmem:[%s278 + $0x1a] sm:$0xff]
        %v537 = vld [vmem:[%s278 + $0x22] sm:$0xff]
        %s538 = scalar_lea.vmem [#allocation2], 832
        %539 = vst [vmem:[%s538] sm:$0xff] %v534
        %540 = vst [vmem:[%s538 + $0x8] sm:$0xff] %v535
        %541 = vst [vmem:[%s538 + $0x10] sm:$0xff] %v536
        %542 = vst [vmem:[%s538 + $0x18] sm:$0xff] %v537
        %v543 = vld [vmem:[#allocation2] sm:$0xff]
        %v544 = vld [vmem:[#allocation2 + $0x8] sm:$0xff]
        %v545 = vld [vmem:[#allocation2 + $0x10] sm:$0xff]
        %v546 = vld [vmem:[#allocation2 + $0x18] sm:$0xff]
        %v547 = vld [vmem:[#allocation2 + $0x20] sm:$0xff]
        %v548 = vld [vmem:[#allocation2 + $0x28] sm:$0xff]
        %v549 = vld [vmem:[#allocation2 + $0x30] sm:$0xff]
        %v550 = vld [vmem:[#allocation2 + $0x38] sm:$0xff]
        %v551 = vld [vmem:[#allocation2 + $0x40] sm:$0xff]
        %v552 = vld [vmem:[#allocation2 + $0x48] sm:$0xff]
        %v553 = vld [vmem:[#allocation2 + $0x50] sm:$0xff]
        %v554 = vld [vmem:[#allocation2 + $0x58] sm:$0xff]
        %v555 = vld [vmem:[#allocation2 + $0x60] sm:$0xff]
        %v556 = vld [vmem:[#allocation2 + $0x68] sm:$0xff]
        %v557 = vld [vmem:[#allocation2 + $0x70] sm:$0xff]
        %v558 = vld [vmem:[#allocation2 + $0x78] sm:$0xff]
        %v559 = vld [vmem:[#allocation2 + $0x80] sm:$0xff]
        %v560 = vld [vmem:[#allocation2 + $0x88] sm:$0xff]
        %v561 = vld [vmem:[#allocation2 + $0x90] sm:$0xff]
        %v562 = vld [vmem:[#allocation2 + $0x98] sm:$0xff]
        %v563 = vld [vmem:[#allocation2 + $0xa0] sm:$0xff]
        %v564 = vld [vmem:[#allocation2 + $0xa8] sm:$0xff]
        %v565 = vld [vmem:[#allocation2 + $0xb0] sm:$0xff]
        %v566 = vld [vmem:[#allocation2 + $0xb8] sm:$0xff]
        %v567 = vld [vmem:[#allocation2 + $0xc0] sm:$0xff]
        %v568 = vld [vmem:[#allocation2 + $0xc8] sm:$0xff]
        %v569 = vld [vmem:[#allocation2 + $0xd0] sm:$0xff]
        %v570 = vld [vmem:[#allocation2 + $0xd8] sm:$0xff]
        %v571 = vld [vmem:[#allocation2 + $0xe0] sm:$0xff]
        %v572 = vld [vmem:[#allocation2 + $0xe8] sm:$0xff]
        %v573 = vld [vmem:[#allocation2 + $0xf0] sm:$0xff]
        %v574 = vld [vmem:[#allocation2 + $0xf8] sm:$0xff]
        %v575 = vld [vmem:[#allocation3] sm:$0xff]
        %v576 = vld [vmem:[#allocation3 + $0x8] sm:$0xff]
        %v577 = vld [vmem:[#allocation3 + $0x10] sm:$0xff]
        %v578 = vld [vmem:[#allocation3 + $0x18] sm:$0xff]
        %v579 = vld [vmem:[#allocation3 + $0x20] sm:$0xff]
        %v580 = vld [vmem:[#allocation3 + $0x28] sm:$0xff]
        %v581 = vld [vmem:[#allocation3 + $0x30] sm:$0xff]
        %v582 = vld [vmem:[#allocation3 + $0x38] sm:$0xff]
        %v583 = vld [vmem:[#allocation3 + $0x40] sm:$0xff]
        %v584 = vld [vmem:[#allocation3 + $0x48] sm:$0xff]
        %v585 = vld [vmem:[#allocation3 + $0x50] sm:$0xff]
        %v586 = vld [vmem:[#allocation3 + $0x58] sm:$0xff]
        %v587 = vld [vmem:[#allocation3 + $0x60] sm:$0xff]
        %v588 = vld [vmem:[#allocation3 + $0x68] sm:$0xff]
        %v589 = vld [vmem:[#allocation3 + $0x70] sm:$0xff]
        %v590 = vld [vmem:[#allocation3 + $0x78] sm:$0xff]
        %v591 = vld [vmem:[#allocation3 + $0x80] sm:$0xff]
        %v592 = vld [vmem:[#allocation3 + $0x88] sm:$0xff]
        %v593 = vld [vmem:[#allocation3 + $0x90] sm:$0xff]
        %v594 = vld [vmem:[#allocation3 + $0x98] sm:$0xff]
        %v595 = vld [vmem:[#allocation3 + $0xa0] sm:$0xff]
        %v596 = vld [vmem:[#allocation3 + $0xa8] sm:$0xff]
        %v597 = vld [vmem:[#allocation3 + $0xb0] sm:$0xff]
        %v598 = vld [vmem:[#allocation3 + $0xb8] sm:$0xff]
        %v599 = vld [vmem:[#allocation3 + $0xc0] sm:$0xff]
        %v600 = vld [vmem:[#allocation3 + $0xc8] sm:$0xff]
        %v601 = vld [vmem:[#allocation3 + $0xd0] sm:$0xff]
        %v602 = vld [vmem:[#allocation3 + $0xd8] sm:$0xff]
        %v603 = vld [vmem:[#allocation3 + $0xe0] sm:$0xff]
        %v604 = vld [vmem:[#allocation3 + $0xe8] sm:$0xff]
        %v605 = vld [vmem:[#allocation3 + $0xf0] sm:$0xff]
        %v606 = vld [vmem:[#allocation3 + $0xf8] sm:$0xff]
        %v607 = vld [vmem:[%s2] sm:$0xff]
        %v608 = vld [vmem:[%s2 + $0x8] sm:$0xff]
        %v609 = vld [vmem:[%s2 + $0x10] sm:$0xff]
        %v610 = vld [vmem:[%s2 + $0x18] sm:$0xff]
        %v611 = vld [vmem:[%s2 + $0x20] sm:$0xff]
        %v612 = vld [vmem:[%s2 + $0x28] sm:$0xff]
        %v613 = vld [vmem:[%s2 + $0x30] sm:$0xff]
        %v614 = vld [vmem:[%s2 + $0x38] sm:$0xff]
        %v615 = vld [vmem:[%s2 + $0x40] sm:$0xff]
        %v616 = vld [vmem:[%s2 + $0x48] sm:$0xff]
        %v617 = vld [vmem:[%s2 + $0x50] sm:$0xff]
        %v618 = vld [vmem:[%s2 + $0x58] sm:$0xff]
        %v619 = vld [vmem:[%s2 + $0x60] sm:$0xff]
        %v620 = vld [vmem:[%s2 + $0x68] sm:$0xff]
        %v621 = vld [vmem:[%s2 + $0x70] sm:$0xff]
        %v622 = vld [vmem:[%s2 + $0x78] sm:$0xff]
        %623 = vmatprep.subr.mxu0 0.0
        %624 = vmatpush1.msra.mxu0 %v607
        %625 = vmatprep.subr.mxu0 0.0
        %626 = vmatpush1.msra.mxu0 %v608
        %627 = vmatprep.subr.mxu0 0.0
        %628 = vmatpush1.msra.mxu0 %v609
        %629 = vmatprep.subr.mxu0 0.0
        %630 = vmatpush1.msra.mxu0 %v610
        %631 = vmatprep.subr.mxu0 0.0
        %632 = vmatpush1.msra.mxu0 %v611
        %633 = vmatprep.subr.mxu0 0.0
        %634 = vmatpush1.msra.mxu0 %v612
        %635 = vmatprep.subr.mxu0 0.0
        %636 = vmatpush1.msra.mxu0 %v613
        %637 = vmatprep.subr.mxu0 0.0
        %638 = vmatpush1.msra.mxu0 %v614
        %639 = vmatprep.subr.mxu0 0.0
        %640 = vmatpush1.msra.mxu0 %v615
        %641 = vmatprep.subr.mxu0 0.0
        %642 = vmatpush1.msra.mxu0 %v616
        %643 = vmatprep.subr.mxu0 0.0
        %644 = vmatpush1.msra.mxu0 %v617
        %645 = vmatprep.subr.mxu0 0.0
        %646 = vmatpush1.msra.mxu0 %v618
        %647 = vmatprep.subr.mxu0 0.0
        %648 = vmatpush1.msra.mxu0 %v619
        %649 = vmatprep.subr.mxu0 0.0
        %650 = vmatpush1.msra.mxu0 %v620
        %651 = vmatprep.subr.mxu0 0.0
        %652 = vmatpush1.msra.mxu0 %v621
        %653 = vmatprep.subr.mxu0 0.0
        %654 = vmatpush1.msra.mxu0 %v622
        %655 = vmatprep.subr.mxu0 0.0
        %656 = vmatpush1.msra.mxu0 0.0
        %657 = vmatprep.subr.mxu0 0.0
        %658 = vmatpush1.msra.mxu0 0.0
        %659 = vmatprep.subr.mxu0 0.0
        %660 = vmatpush1.msra.mxu0 0.0
        %661 = vmatprep.subr.mxu0 0.0
        %662 = vmatpush1.msra.mxu0 0.0
        %663 = vmatprep.subr.mxu0 0.0
        %664 = vmatpush1.msra.mxu0 0.0
        %665 = vmatprep.subr.mxu0 0.0
        %666 = vmatpush1.msra.mxu0 0.0
        %667 = vmatprep.subr.mxu0 0.0
        %668 = vmatpush1.msra.mxu0 0.0
        %669 = vmatprep.subr.mxu0 0.0
        %670 = vmatpush1.msra.mxu0 0.0
        %671 = vmatprep.subr.mxu0 0.0
        %672 = vmatpush1.msra.mxu0 0.0
        %673 = vmatprep.subr.mxu0 0.0
        %674 = vmatpush1.msra.mxu0 0.0
        %675 = vmatprep.subr.mxu0 0.0
        %676 = vmatpush1.msra.mxu0 0.0
        %677 = vmatprep.subr.mxu0 0.0
        %678 = vmatpush1.msra.mxu0 0.0
        %679 = vmatprep.subr.mxu0 0.0
        %680 = vmatpush1.msra.mxu0 0.0
        %681 = vmatprep.subr.mxu0 0.0
        %682 = vmatpush1.msra.mxu0 0.0
        %683 = vmatprep.subr.mxu0 0.0
        %684 = vmatpush1.msra.mxu0 0.0
        %685 = vmatprep.subr.mxu0 0.0
        %686 = vmatpush1.msra.mxu0 0.0
        %687 = vmatprep.mubr.f32.mxu0 0.0
        %688 = vmatmul.mubr.f32.gmra.mrb[0].mxu0 %v543
        %v689 = vpop.f32.mrb[0].mxu0
        %v690 = vadd.f32 0.0, %v689
        %v691 = vpop.f32.mrb[0].mxu0
        %692 = vmatprep.mubr.f32.mxu0 0.0
        %693 = vmatmul.mubr.f32.gmra.mrb[0].mxu0 %v544
        %v694 = vpop.f32.mrb[0].mxu0
        %v695 = vadd.f32 0.0, %v694
        %v696 = vpop.f32.mrb[0].mxu0
        %697 = vmatprep.mubr.f32.mxu0 0.0
        %698 = vmatmul.mubr.f32.gmra.mrb[0].mxu0 %v545
        %v699 = vpop.f32.mrb[0].mxu0
        %v700 = vadd.f32 0.0, %v699
        %v701 = vpop.f32.mrb[0].mxu0
        %702 = vmatprep.mubr.f32.mxu0 0.0
        %703 = vmatmul.mubr.f32.gmra.mrb[0].mxu0 %v546
        %v704 = vpop.f32.mrb[0].mxu0
        %v705 = vadd.f32 0.0, %v704
        %v706 = vpop.f32.mrb[0].mxu0
        %707 = vmatprep.mubr.f32.mxu0 0.0
        %708 = vmatmul.mubr.f32.gmra.mrb[0].mxu0 %v547
        %v709 = vpop.f32.mrb[0].mxu0
        %v710 = vadd.f32 0.0, %v709
        %v711 = vpop.f32.mrb[0].mxu0
        %712 = vmatprep.mubr.f32.mxu0 0.0
        %713 = vmatmul.mubr.f32.gmra.mrb[0].mxu0 %v548
        %v714 = vpop.f32.mrb[0].mxu0
        %v715 = vadd.f32 0.0, %v714
        %v716 = vpop.f32.mrb[0].mxu0
        %717 = vmatprep.mubr.f32.mxu0 0.0
        %718 = vmatmul.mubr.f32.gmra.mrb[0].mxu0 %v549
        %v719 = vpop.f32.mrb[0].mxu0
        %v720 = vadd.f32 0.0, %v719
        %v721 = vpop.f32.mrb[0].mxu0
        %722 = vmatprep.mubr.f32.mxu0 0.0
        %723 = vmatmul.mubr.f32.gmra.mrb[0].mxu0 %v550
        %v724 = vpop.f32.mrb[0].mxu0
        %v725 = vadd.f32 0.0, %v724
        %v726 = vpop.f32.mrb[0].mxu0
        %727 = vmatprep.mubr.f32.mxu0 0.0
        %728 = vmatmul.mubr.f32.gmra.mrb[0].mxu0 %v551
        %v729 = vpop.f32.mrb[0].mxu0
        %v730 = vadd.f32 0.0, %v729
        %v731 = vpop.f32.mrb[0].mxu0
        %732 = vmatprep.mubr.f32.mxu0 0.0
        %733 = vmatmul.mubr.f32.gmra.mrb[0].mxu0 %v552
        %v734 = vpop.f32.mrb[0].mxu0
        %v735 = vadd.f32 0.0, %v734
        %v736 = vpop.f32.mrb[0].mxu0
        %737 = vmatprep.mubr.f32.mxu0 0.0
        %738 = vmatmul.mubr.f32.gmra.mrb[0].mxu0 %v553
        %v739 = vpop.f32.mrb[0].mxu0
        %v740 = vadd.f32 0.0, %v739
        %v741 = vpop.f32.mrb[0].mxu0
        %742 = vmatprep.mubr.f32.mxu0 0.0
        %743 = vmatmul.mubr.f32.gmra.mrb[0].mxu0 %v554
        %v744 = vpop.f32.mrb[0].mxu0
        %v745 = vadd.f32 0.0, %v744
        %v746 = vpop.f32.mrb[0].mxu0
        %747 = vmatprep.mubr.f32.mxu0 0.0
        %748 = vmatmul.mubr.f32.gmra.mrb[0].mxu0 %v555
        %v749 = vpop.f32.mrb[0].mxu0
        %v750 = vadd.f32 0.0, %v749
        %v751 = vpop.f32.mrb[0].mxu0
        %752 = vmatprep.mubr.f32.mxu0 0.0
        %753 = vmatmul.mubr.f32.gmra.mrb[0].mxu0 %v556
        %v754 = vpop.f32.mrb[0].mxu0
        %v755 = vadd.f32 0.0, %v754
        %v756 = vpop.f32.mrb[0].mxu0
        %757 = vmatprep.mubr.f32.mxu0 0.0
        %758 = vmatmul.mubr.f32.gmra.mrb[0].mxu0 %v557
        %v759 = vpop.f32.mrb[0].mxu0
        %v760 = vadd.f32 0.0, %v759
        %v761 = vpop.f32.mrb[0].mxu0
        %762 = vmatprep.mubr.f32.mxu0 0.0
        %763 = vmatmul.mubr.f32.gmra.mrb[0].mxu0 %v558
        %v764 = vpop.f32.mrb[0].mxu0
        %v765 = vadd.f32 0.0, %v764
        %v766 = vpop.f32.mrb[0].mxu0
        %767 = vmatprep.mubr.f32.mxu0 0.0
        %768 = vmatmul.mubr.f32.gmra.mrb[0].mxu0 %v559
        %v769 = vpop.f32.mrb[0].mxu0
        %v770 = vadd.f32 0.0, %v769
        %v771 = vpop.f32.mrb[0].mxu0
        %772 = vmatprep.mubr.f32.mxu0 0.0
        %773 = vmatmul.mubr.f32.gmra.mrb[0].mxu0 %v560
        %v774 = vpop.f32.mrb[0].mxu0
        %v775 = vadd.f32 0.0, %v774
        %v776 = vpop.f32.mrb[0].mxu0
        %777 = vmatprep.mubr.f32.mxu0 0.0
        %778 = vmatmul.mubr.f32.gmra.mrb[0].mxu0 %v561
        %v779 = vpop.f32.mrb[0].mxu0
        %v780 = vadd.f32 0.0, %v779
        %v781 = vpop.f32.mrb[0].mxu0
        %782 = vmatprep.mubr.f32.mxu0 0.0
        %783 = vmatmul.mubr.f32.gmra.mrb[0].mxu0 %v562
        %v784 = vpop.f32.mrb[0].mxu0
        %v785 = vadd.f32 0.0, %v784
        %v786 = vpop.f32.mrb[0].mxu0
        %787 = vmatprep.mubr.f32.mxu0 0.0
        %788 = vmatmul.mubr.f32.gmra.mrb[0].mxu0 %v563
        %v789 = vpop.f32.mrb[0].mxu0
        %v790 = vadd.f32 0.0, %v789
        %v791 = vpop.f32.mrb[0].mxu0
        %792 = vmatprep.mubr.f32.mxu0 0.0
        %793 = vmatmul.mubr.f32.gmra.mrb[0].mxu0 %v564
        %v794 = vpop.f32.mrb[0].mxu0
        %v795 = vadd.f32 0.0, %v794
        %v796 = vpop.f32.mrb[0].mxu0
        %797 = vmatprep.mubr.f32.mxu0 0.0
        %798 = vmatmul.mubr.f32.gmra.mrb[0].mxu0 %v565
        %v799 = vpop.f32.mrb[0].mxu0
        %v800 = vadd.f32 0.0, %v799
        %v801 = vpop.f32.mrb[0].mxu0
        %802 = vmatprep.mubr.f32.mxu0 0.0
        %803 = vmatmul.mubr.f32.gmra.mrb[0].mxu0 %v566
        %v804 = vpop.f32.mrb[0].mxu0
        %v805 = vadd.f32 0.0, %v804
        %v806 = vpop.f32.mrb[0].mxu0
        %807 = vmatprep.mubr.f32.mxu0 0.0
        %808 = vmatmul.mubr.f32.gmra.mrb[0].mxu0 %v567
        %v809 = vpop.f32.mrb[0].mxu0
        %v810 = vadd.f32 0.0, %v809
        %v811 = vpop.f32.mrb[0].mxu0
        %812 = vmatprep.mubr.f32.mxu0 0.0
        %813 = vmatmul.mubr.f32.gmra.mrb[0].mxu0 %v568
        %v814 = vpop.f32.mrb[0].mxu0
        %v815 = vadd.f32 0.0, %v814
        %v816 = vpop.f32.mrb[0].mxu0
        %817 = vmatprep.mubr.f32.mxu0 0.0
        %818 = vmatmul.mubr.f32.gmra.mrb[0].mxu0 %v569
        %v819 = vpop.f32.mrb[0].mxu0
        %v820 = vadd.f32 0.0, %v819
        %v821 = vpop.f32.mrb[0].mxu0
        %822 = vmatprep.mubr.f32.mxu0 0.0
        %823 = vmatmul.mubr.f32.gmra.mrb[0].mxu0 %v570
        %v824 = vpop.f32.mrb[0].mxu0
        %v825 = vadd.f32 0.0, %v824
        %v826 = vpop.f32.mrb[0].mxu0
        %827 = vmatprep.mubr.f32.mxu0 0.0
        %828 = vmatmul.mubr.f32.gmra.mrb[0].mxu0 %v571
        %v829 = vpop.f32.mrb[0].mxu0
        %v830 = vadd.f32 0.0, %v829
        %v831 = vpop.f32.mrb[0].mxu0
        %832 = vmatprep.mubr.f32.mxu0 0.0
        %833 = vmatmul.mubr.f32.gmra.mrb[0].mxu0 %v572
        %v834 = vpop.f32.mrb[0].mxu0
        %v835 = vadd.f32 0.0, %v834
        %v836 = vpop.f32.mrb[0].mxu0
        %837 = vmatprep.mubr.f32.mxu0 0.0
        %838 = vmatmul.mubr.f32.gmra.mrb[0].mxu0 %v573
        %v839 = vpop.f32.mrb[0].mxu0
        %v840 = vadd.f32 0.0, %v839
        %v841 = vpop.f32.mrb[0].mxu0
        %842 = vmatprep.mubr.f32.mxu0 0.0
        %843 = vmatmul.mubr.f32.gmra.mrb[0].mxu0 %v574
        %v844 = vpop.f32.mrb[0].mxu0
        %v845 = vadd.f32 0.0, %v844
        %v846 = vpop.f32.mrb[0].mxu0
        %847 = vdwg.mxu0
        %v848 = vadd.f32 %v575, %v690
        %v849 = vadd.f32 %v576, %v695
        %v850 = vadd.f32 %v577, %v700
        %v851 = vadd.f32 %v578, %v705
        %v852 = vadd.f32 %v579, %v710
        %v853 = vadd.f32 %v580, %v715
        %v854 = vadd.f32 %v581, %v720
        %v855 = vadd.f32 %v582, %v725
        %v856 = vadd.f32 %v583, %v730
        %v857 = vadd.f32 %v584, %v735
        %v858 = vadd.f32 %v585, %v740
        %v859 = vadd.f32 %v586, %v745
        %v860 = vadd.f32 %v587, %v750
        %v861 = vadd.f32 %v588, %v755
        %v862 = vadd.f32 %v589, %v760
        %v863 = vadd.f32 %v590, %v765
        %v864 = vadd.f32 %v591, %v770
        %v865 = vadd.f32 %v592, %v775
        %v866 = vadd.f32 %v593, %v780
        %v867 = vadd.f32 %v594, %v785
        %v868 = vadd.f32 %v595, %v790
        %v869 = vadd.f32 %v596, %v795
        %v870 = vadd.f32 %v597, %v800
        %v871 = vadd.f32 %v598, %v805
        %v872 = vadd.f32 %v599, %v810
        %v873 = vadd.f32 %v600, %v815
        %v874 = vadd.f32 %v601, %v820
        %v875 = vadd.f32 %v602, %v825
        %v876 = vadd.f32 %v603, %v830
        %v877 = vadd.f32 %v604, %v835
        %v878 = vadd.f32 %v605, %v840
        %v879 = vadd.f32 %v606, %v845
        %880 = vst [vmem:[#allocation3] sm:$0xff] %v848
        %881 = vst [vmem:[#allocation3 + $0x8] sm:$0xff] %v849
        %882 = vst [vmem:[#allocation3 + $0x10] sm:$0xff] %v850
        %883 = vst [vmem:[#allocation3 + $0x18] sm:$0xff] %v851
        %884 = vst [vmem:[#allocation3 + $0x20] sm:$0xff] %v852
        %885 = vst [vmem:[#allocation3 + $0x28] sm:$0xff] %v853
        %886 = vst [vmem:[#allocation3 + $0x30] sm:$0xff] %v854
        %887 = vst [vmem:[#allocation3 + $0x38] sm:$0xff] %v855
        %888 = vst [vmem:[#allocation3 + $0x40] sm:$0xff] %v856
        %889 = vst [vmem:[#allocation3 + $0x48] sm:$0xff] %v857
        %890 = vst [vmem:[#allocation3 + $0x50] sm:$0xff] %v858
        %891 = vst [vmem:[#allocation3 + $0x58] sm:$0xff] %v859
        %892 = vst [vmem:[#allocation3 + $0x60] sm:$0xff] %v860
        %893 = vst [vmem:[#allocation3 + $0x68] sm:$0xff] %v861
        %894 = vst [vmem:[#allocation3 + $0x70] sm:$0xff] %v862
        %895 = vst [vmem:[#allocation3 + $0x78] sm:$0xff] %v863
        %896 = vst [vmem:[#allocation3 + $0x80] sm:$0xff] %v864
        %897 = vst [vmem:[#allocation3 + $0x88] sm:$0xff] %v865
        %898 = vst [vmem:[#allocation3 + $0x90] sm:$0xff] %v866
        %899 = vst [vmem:[#allocation3 + $0x98] sm:$0xff] %v867
        %900 = vst [vmem:[#allocation3 + $0xa0] sm:$0xff] %v868
        %901 = vst [vmem:[#allocation3 + $0xa8] sm:$0xff] %v869
        %902 = vst [vmem:[#allocation3 + $0xb0] sm:$0xff] %v870
        %903 = vst [vmem:[#allocation3 + $0xb8] sm:$0xff] %v871
        %904 = vst [vmem:[#allocation3 + $0xc0] sm:$0xff] %v872
        %905 = vst [vmem:[#allocation3 + $0xc8] sm:$0xff] %v873
        %906 = vst [vmem:[#allocation3 + $0xd0] sm:$0xff] %v874
        %907 = vst [vmem:[#allocation3 + $0xd8] sm:$0xff] %v875
        %908 = vst [vmem:[#allocation3 + $0xe0] sm:$0xff] %v876
        %909 = vst [vmem:[#allocation3 + $0xe8] sm:$0xff] %v877
        %910 = vst [vmem:[#allocation3 + $0xf0] sm:$0xff] %v878
        %911 = vst [vmem:[#allocation3 + $0xf8] sm:$0xff] %v879
        %v912 = vld [vmem:[%s427] sm:$0xff]
        %v913 = vld [vmem:[%s427 + $0x8] sm:$0xff]
        %v914 = vld [vmem:[%s427 + $0x10] sm:$0xff]
        %v915 = vld [vmem:[%s427 + $0x18] sm:$0xff]
        %v916 = vld [vmem:[%s427 + $0x20] sm:$0xff]
        %v917 = vld [vmem:[%s427 + $0x28] sm:$0xff]
        %v918 = vld [vmem:[%s427 + $0x30] sm:$0xff]
        %v919 = vld [vmem:[%s427 + $0x38] sm:$0xff]
        %v920 = vld [vmem:[%s427 + $0x40] sm:$0xff]
        %v921 = vld [vmem:[%s427 + $0x48] sm:$0xff]
        %v922 = vld [vmem:[%s427 + $0x50] sm:$0xff]
        %v923 = vld [vmem:[%s427 + $0x58] sm:$0xff]
        %v924 = vld [vmem:[%s427 + $0x60] sm:$0xff]
        %v925 = vld [vmem:[%s427 + $0x68] sm:$0xff]
        %v926 = vld [vmem:[%s427 + $0x70] sm:$0xff]
        %v927 = vld [vmem:[%s427 + $0x78] sm:$0xff]
        %v928 = vld [vmem:[%s427 + $0x80] sm:$0xff]
        %v929 = vld [vmem:[%s427 + $0x88] sm:$0xff]
        %v930 = vld [vmem:[%s427 + $0x90] sm:$0xff]
        %v931 = vld [vmem:[%s427 + $0x98] sm:$0xff]
        %v932 = vld [vmem:[%s427 + $0xa0] sm:$0xff]
        %v933 = vld [vmem:[%s427 + $0xa8] sm:$0xff]
        %v934 = vld [vmem:[%s427 + $0xb0] sm:$0xff]
        %v935 = vld [vmem:[%s427 + $0xb8] sm:$0xff]
        %v936 = vld [vmem:[%s427 + $0xc0] sm:$0xff]
        %v937 = vld [vmem:[%s427 + $0xc8] sm:$0xff]
        %v938 = vld [vmem:[%s427 + $0xd0] sm:$0xff]
        %v939 = vld [vmem:[%s427 + $0xd8] sm:$0xff]
        %v940 = vld [vmem:[%s427 + $0xe0] sm:$0xff]
        %v941 = vld [vmem:[%s427 + $0xe8] sm:$0xff]
        %v942 = vld [vmem:[%s427 + $0xf0] sm:$0xff]
        %v943 = vld [vmem:[%s427 + $0xf8] sm:$0xff]
        %v944 = vld [vmem:[#allocation3] sm:$0xff]
        %v945 = vld [vmem:[#allocation3 + $0x8] sm:$0xff]
        %v946 = vld [vmem:[#allocation3 + $0x10] sm:$0xff]
        %v947 = vld [vmem:[#allocation3 + $0x18] sm:$0xff]
        %v948 = vld [vmem:[#allocation3 + $0x20] sm:$0xff]
        %v949 = vld [vmem:[#allocation3 + $0x28] sm:$0xff]
        %v950 = vld [vmem:[#allocation3 + $0x30] sm:$0xff]
        %v951 = vld [vmem:[#allocation3 + $0x38] sm:$0xff]
        %v952 = vld [vmem:[#allocation3 + $0x40] sm:$0xff]
        %v953 = vld [vmem:[#allocation3 + $0x48] sm:$0xff]
        %v954 = vld [vmem:[#allocation3 + $0x50] sm:$0xff]
        %v955 = vld [vmem:[#allocation3 + $0x58] sm:$0xff]
        %v956 = vld [vmem:[#allocation3 + $0x60] sm:$0xff]
        %v957 = vld [vmem:[#allocation3 + $0x68] sm:$0xff]
        %v958 = vld [vmem:[#allocation3 + $0x70] sm:$0xff]
        %v959 = vld [vmem:[#allocation3 + $0x78] sm:$0xff]
        %v960 = vld [vmem:[#allocation3 + $0x80] sm:$0xff]
        %v961 = vld [vmem:[#allocation3 + $0x88] sm:$0xff]
        %v962 = vld [vmem:[#allocation3 + $0x90] sm:$0xff]
        %v963 = vld [vmem:[#allocation3 + $0x98] sm:$0xff]
        %v964 = vld [vmem:[#allocation3 + $0xa0] sm:$0xff]
        %v965 = vld [vmem:[#allocation3 + $0xa8] sm:$0xff]
        %v966 = vld [vmem:[#allocation3 + $0xb0] sm:$0xff]
        %v967 = vld [vmem:[#allocation3 + $0xb8] sm:$0xff]
        %v968 = vld [vmem:[#allocation3 + $0xc0] sm:$0xff]
        %v969 = vld [vmem:[#allocation3 + $0xc8] sm:$0xff]
        %v970 = vld [vmem:[#allocation3 + $0xd0] sm:$0xff]
        %v971 = vld [vmem:[#allocation3 + $0xd8] sm:$0xff]
        %v972 = vld [vmem:[#allocation3 + $0xe0] sm:$0xff]
        %v973 = vld [vmem:[#allocation3 + $0xe8] sm:$0xff]
        %v974 = vld [vmem:[#allocation3 + $0xf0] sm:$0xff]
        %v975 = vld [vmem:[#allocation3 + $0xf8] sm:$0xff]
        %s976 = scalar_lea.vmem %s2, 128
        %v977 = vld [vmem:[%s976] sm:$0xff]
        %v978 = vld [vmem:[%s976 + $0x8] sm:$0xff]
        %v979 = vld [vmem:[%s976 + $0x10] sm:$0xff]
        %v980 = vld [vmem:[%s976 + $0x18] sm:$0xff]
        %v981 = vld [vmem:[%s976 + $0x20] sm:$0xff]
        %v982 = vld [vmem:[%s976 + $0x28] sm:$0xff]
        %v983 = vld [vmem:[%s976 + $0x30] sm:$0xff]
        %v984 = vld [vmem:[%s976 + $0x38] sm:$0xff]
        %v985 = vld [vmem:[%s976 + $0x40] sm:$0xff]
        %v986 = vld [vmem:[%s976 + $0x48] sm:$0xff]
        %v987 = vld [vmem:[%s976 + $0x50] sm:$0xff]
        %v988 = vld [vmem:[%s976 + $0x58] sm:$0xff]
        %v989 = vld [vmem:[%s976 + $0x60] sm:$0xff]
        %v990 = vld [vmem:[%s976 + $0x68] sm:$0xff]
        %v991 = vld [vmem:[%s976 + $0x70] sm:$0xff]
        %v992 = vld [vmem:[%s976 + $0x78] sm:$0xff]
        %993 = vmatprep.subr.mxu0 0.0
        %994 = vmatpush1.msra.mxu0 %v977
        %995 = vmatprep.subr.mxu0 0.0
        %996 = vmatpush1.msra.mxu0 %v978
        %997 = vmatprep.subr.mxu0 0.0
        %998 = vmatpush1.msra.mxu0 %v979
        %999 = vmatprep.subr.mxu0 0.0
        %1000 = vmatpush1.msra.mxu0 %v980
        %1001 = vmatprep.subr.mxu0 0.0
        %1002 = vmatpush1.msra.mxu0 %v981
        %1003 = vmatprep.subr.mxu0 0.0
        %1004 = vmatpush1.msra.mxu0 %v982
        %1005 = vmatprep.subr.mxu0 0.0
        %1006 = vmatpush1.msra.mxu0 %v983
        %1007 = vmatprep.subr.mxu0 0.0
        %1008 = vmatpush1.msra.mxu0 %v984
        %1009 = vmatprep.subr.mxu0 0.0
        %1010 = vmatpush1.msra.mxu0 %v985
        %1011 = vmatprep.subr.mxu0 0.0
        %1012 = vmatpush1.msra.mxu0 %v986
        %1013 = vmatprep.subr.mxu0 0.0
        %1014 = vmatpush1.msra.mxu0 %v987
        %1015 = vmatprep.subr.mxu0 0.0
        %1016 = vmatpush1.msra.mxu0 %v988
        %1017 = vmatprep.subr.mxu0 0.0
        %1018 = vmatpush1.msra.mxu0 %v989
        %1019 = vmatprep.subr.mxu0 0.0
        %1020 = vmatpush1.msra.mxu0 %v990
        %1021 = vmatprep.subr.mxu0 0.0
        %1022 = vmatpush1.msra.mxu0 %v991
        %1023 = vmatprep.subr.mxu0 0.0
        %1024 = vmatpush1.msra.mxu0 %v992
        %1025 = vmatprep.subr.mxu0 0.0
        %1026 = vmatpush1.msra.mxu0 0.0
        %1027 = vmatprep.subr.mxu0 0.0
        %1028 = vmatpush1.msra.mxu0 0.0
        %1029 = vmatprep.subr.mxu0 0.0
        %1030 = vmatpush1.msra.mxu0 0.0
        %1031 = vmatprep.subr.mxu0 0.0
        %1032 = vmatpush1.msra.mxu0 0.0
        %1033 = vmatprep.subr.mxu0 0.0
        %1034 = vmatpush1.msra.mxu0 0.0
        %1035 = vmatprep.subr.mxu0 0.0
        %1036 = vmatpush1.msra.mxu0 0.0
        %1037 = vmatprep.subr.mxu0 0.0
        %1038 = vmatpush1.msra.mxu0 0.0
        %1039 = vmatprep.subr.mxu0 0.0
        %1040 = vmatpush1.msra.mxu0 0.0
        %1041 = vmatprep.subr.mxu0 0.0
        %1042 = vmatpush1.msra.mxu0 0.0
        %1043 = vmatprep.subr.mxu0 0.0
        %1044 = vmatpush1.msra.mxu0 0.0
        %1045 = vmatprep.subr.mxu0 0.0
        %1046 = vmatpush1.msra.mxu0 0.0
        %1047 = vmatprep.subr.mxu0 0.0
        %1048 = vmatpush1.msra.mxu0 0.0
        %1049 = vmatprep.subr.mxu0 0.0
        %1050 = vmatpush1.msra.mxu0 0.0
        %1051 = vmatprep.subr.mxu0 0.0
        %1052 = vmatpush1.msra.mxu0 0.0
        %1053 = vmatprep.subr.mxu0 0.0
        %1054 = vmatpush1.msra.mxu0 0.0
        %1055 = vmatprep.subr.mxu0 0.0
        %1056 = vmatpush1.msra.mxu0 0.0
        %1057 = vmatprep.mubr.f32.mxu0 0.0
        %1058 = vmatmul.mubr.f32.gmra.mrb[0].mxu0 %v912
        %v1059 = vpop.f32.mrb[0].mxu0
        %v1060 = vadd.f32 0.0, %v1059
        %v1061 = vpop.f32.mrb[0].mxu0
        %1062 = vmatprep.mubr.f32.mxu0 0.0
        %1063 = vmatmul.mubr.f32.gmra.mrb[0].mxu0 %v913
        %v1064 = vpop.f32.mrb[0].mxu0
        %v1065 = vadd.f32 0.0, %v1064
        %v1066 = vpop.f32.mrb[0].mxu0
        %1067 = vmatprep.mubr.f32.mxu0 0.0
        %1068 = vmatmul.mubr.f32.gmra.mrb[0].mxu0 %v914
        %v1069 = vpop.f32.mrb[0].mxu0
        %v1070 = vadd.f32 0.0, %v1069
        %v1071 = vpop.f32.mrb[0].mxu0
        %1072 = vmatprep.mubr.f32.mxu0 0.0
        %1073 = vmatmul.mubr.f32.gmra.mrb[0].mxu0 %v915
        %v1074 = vpop.f32.mrb[0].mxu0
        %v1075 = vadd.f32 0.0, %v1074
        %v1076 = vpop.f32.mrb[0].mxu0
        %1077 = vmatprep.mubr.f32.mxu0 0.0
        %1078 = vmatmul.mubr.f32.gmra.mrb[0].mxu0 %v916
        %v1079 = vpop.f32.mrb[0].mxu0
        %v1080 = vadd.f32 0.0, %v1079
        %v1081 = vpop.f32.mrb[0].mxu0
        %1082 = vmatprep.mubr.f32.mxu0 0.0
        %1083 = vmatmul.mubr.f32.gmra.mrb[0].mxu0 %v917
        %v1084 = vpop.f32.mrb[0].mxu0
        %v1085 = vadd.f32 0.0, %v1084
        %v1086 = vpop.f32.mrb[0].mxu0
        %1087 = vmatprep.mubr.f32.mxu0 0.0
        %1088 = vmatmul.mubr.f32.gmra.mrb[0].mxu0 %v918
        %v1089 = vpop.f32.mrb[0].mxu0
        %v1090 = vadd.f32 0.0, %v1089
        %v1091 = vpop.f32.mrb[0].mxu0
        %1092 = vmatprep.mubr.f32.mxu0 0.0
        %1093 = vmatmul.mubr.f32.gmra.mrb[0].mxu0 %v919
        %v1094 = vpop.f32.mrb[0].mxu0
        %v1095 = vadd.f32 0.0, %v1094
        %v1096 = vpop.f32.mrb[0].mxu0
        %1097 = vmatprep.mubr.f32.mxu0 0.0
        %1098 = vmatmul.mubr.f32.gmra.mrb[0].mxu0 %v920
        %v1099 = vpop.f32.mrb[0].mxu0
        %v1100 = vadd.f32 0.0, %v1099
        %v1101 = vpop.f32.mrb[0].mxu0
        %1102 = vmatprep.mubr.f32.mxu0 0.0
        %1103 = vmatmul.mubr.f32.gmra.mrb[0].mxu0 %v921
        %v1104 = vpop.f32.mrb[0].mxu0
        %v1105 = vadd.f32 0.0, %v1104
        %v1106 = vpop.f32.mrb[0].mxu0
        %1107 = vmatprep.mubr.f32.mxu0 0.0
        %1108 = vmatmul.mubr.f32.gmra.mrb[0].mxu0 %v922
        %v1109 = vpop.f32.mrb[0].mxu0
        %v1110 = vadd.f32 0.0, %v1109
        %v1111 = vpop.f32.mrb[0].mxu0
        %1112 = vmatprep.mubr.f32.mxu0 0.0
        %1113 = vmatmul.mubr.f32.gmra.mrb[0].mxu0 %v923
        %v1114 = vpop.f32.mrb[0].mxu0
        %v1115 = vadd.f32 0.0, %v1114
        %v1116 = vpop.f32.mrb[0].mxu0
        %1117 = vmatprep.mubr.f32.mxu0 0.0
        %1118 = vmatmul.mubr.f32.gmra.mrb[0].mxu0 %v924
        %v1119 = vpop.f32.mrb[0].mxu0
        %v1120 = vadd.f32 0.0, %v1119
        %v1121 = vpop.f32.mrb[0].mxu0
        %1122 = vmatprep.mubr.f32.mxu0 0.0
        %1123 = vmatmul.mubr.f32.gmra.mrb[0].mxu0 %v925
        %v1124 = vpop.f32.mrb[0].mxu0
        %v1125 = vadd.f32 0.0, %v1124
        %v1126 = vpop.f32.mrb[0].mxu0
        %1127 = vmatprep.mubr.f32.mxu0 0.0
        %1128 = vmatmul.mubr.f32.gmra.mrb[0].mxu0 %v926
        %v1129 = vpop.f32.mrb[0].mxu0
        %v1130 = vadd.f32 0.0, %v1129
        %v1131 = vpop.f32.mrb[0].mxu0
        %1132 = vmatprep.mubr.f32.mxu0 0.0
        %1133 = vmatmul.mubr.f32.gmra.mrb[0].mxu0 %v927
        %v1134 = vpop.f32.mrb[0].mxu0
        %v1135 = vadd.f32 0.0, %v1134
        %v1136 = vpop.f32.mrb[0].mxu0
        %1137 = vmatprep.mubr.f32.mxu0 0.0
        %1138 = vmatmul.mubr.f32.gmra.mrb[0].mxu0 %v928
        %v1139 = vpop.f32.mrb[0].mxu0
        %v1140 = vadd.f32 0.0, %v1139
        %v1141 = vpop.f32.mrb[0].mxu0
        %1142 = vmatprep.mubr.f32.mxu0 0.0
        %1143 = vmatmul.mubr.f32.gmra.mrb[0].mxu0 %v929
        %v1144 = vpop.f32.mrb[0].mxu0
        %v1145 = vadd.f32 0.0, %v1144
        %v1146 = vpop.f32.mrb[0].mxu0
        %1147 = vmatprep.mubr.f32.mxu0 0.0
        %1148 = vmatmul.mubr.f32.gmra.mrb[0].mxu0 %v930
        %v1149 = vpop.f32.mrb[0].mxu0
        %v1150 = vadd.f32 0.0, %v1149
        %v1151 = vpop.f32.mrb[0].mxu0
        %1152 = vmatprep.mubr.f32.mxu0 0.0
        %1153 = vmatmul.mubr.f32.gmra.mrb[0].mxu0 %v931
        %v1154 = vpop.f32.mrb[0].mxu0
        %v1155 = vadd.f32 0.0, %v1154
        %v1156 = vpop.f32.mrb[0].mxu0
        %1157 = vmatprep.mubr.f32.mxu0 0.0
        %1158 = vmatmul.mubr.f32.gmra.mrb[0].mxu0 %v932
        %v1159 = vpop.f32.mrb[0].mxu0
        %v1160 = vadd.f32 0.0, %v1159
        %v1161 = vpop.f32.mrb[0].mxu0
        %1162 = vmatprep.mubr.f32.mxu0 0.0
        %1163 = vmatmul.mubr.f32.gmra.mrb[0].mxu0 %v933
        %v1164 = vpop.f32.mrb[0].mxu0
        %v1165 = vadd.f32 0.0, %v1164
        %v1166 = vpop.f32.mrb[0].mxu0
        %1167 = vmatprep.mubr.f32.mxu0 0.0
        %1168 = vmatmul.mubr.f32.gmra.mrb[0].mxu0 %v934
        %v1169 = vpop.f32.mrb[0].mxu0
        %v1170 = vadd.f32 0.0, %v1169
        %v1171 = vpop.f32.mrb[0].mxu0
        %1172 = vmatprep.mubr.f32.mxu0 0.0
        %1173 = vmatmul.mubr.f32.gmra.mrb[0].mxu0 %v935
        %v1174 = vpop.f32.mrb[0].mxu0
        %v1175 = vadd.f32 0.0, %v1174
        %v1176 = vpop.f32.mrb[0].mxu0
        %1177 = vmatprep.mubr.f32.mxu0 0.0
        %1178 = vmatmul.mubr.f32.gmra.mrb[0].mxu0 %v936
        %v1179 = vpop.f32.mrb[0].mxu0
        %v1180 = vadd.f32 0.0, %v1179
        %v1181 = vpop.f32.mrb[0].mxu0
        %1182 = vmatprep.mubr.f32.mxu0 0.0
        %1183 = vmatmul.mubr.f32.gmra.mrb[0].mxu0 %v937
        %v1184 = vpop.f32.mrb[0].mxu0
        %v1185 = vadd.f32 0.0, %v1184
        %v1186 = vpop.f32.mrb[0].mxu0
        %1187 = vmatprep.mubr.f32.mxu0 0.0
        %1188 = vmatmul.mubr.f32.gmra.mrb[0].mxu0 %v938
        %v1189 = vpop.f32.mrb[0].mxu0
        %v1190 = vadd.f32 0.0, %v1189
        %v1191 = vpop.f32.mrb[0].mxu0
        %1192 = vmatprep.mubr.f32.mxu0 0.0
        %1193 = vmatmul.mubr.f32.gmra.mrb[0].mxu0 %v939
        %v1194 = vpop.f32.mrb[0].mxu0
        %v1195 = vadd.f32 0.0, %v1194
        %v1196 = vpop.f32.mrb[0].mxu0
        %1197 = vmatprep.mubr.f32.mxu0 0.0
        %1198 = vmatmul.mubr.f32.gmra.mrb[0].mxu0 %v940
        %v1199 = vpop.f32.mrb[0].mxu0
        %v1200 = vadd.f32 0.0, %v1199
        %v1201 = vpop.f32.mrb[0].mxu0
        %1202 = vmatprep.mubr.f32.mxu0 0.0
        %1203 = vmatmul.mubr.f32.gmra.mrb[0].mxu0 %v941
        %v1204 = vpop.f32.mrb[0].mxu0
        %v1205 = vadd.f32 0.0, %v1204
        %v1206 = vpop.f32.mrb[0].mxu0
        %1207 = vmatprep.mubr.f32.mxu0 0.0
        %1208 = vmatmul.mubr.f32.gmra.mrb[0].mxu0 %v942
        %v1209 = vpop.f32.mrb[0].mxu0
        %v1210 = vadd.f32 0.0, %v1209
        %v1211 = vpop.f32.mrb[0].mxu0
        %1212 = vmatprep.mubr.f32.mxu0 0.0
        %1213 = vmatmul.mubr.f32.gmra.mrb[0].mxu0 %v943
        %v1214 = vpop.f32.mrb[0].mxu0
        %v1215 = vadd.f32 0.0, %v1214
        %v1216 = vpop.f32.mrb[0].mxu0
        %1217 = vdwg.mxu0
        %v1218 = vadd.f32 %v944, %v1060
        %v1219 = vadd.f32 %v945, %v1065
        %v1220 = vadd.f32 %v946, %v1070
        %v1221 = vadd.f32 %v947, %v1075
        %v1222 = vadd.f32 %v948, %v1080
        %v1223 = vadd.f32 %v949, %v1085
        %v1224 = vadd.f32 %v950, %v1090
        %v1225 = vadd.f32 %v951, %v1095
        %v1226 = vadd.f32 %v952, %v1100
        %v1227 = vadd.f32 %v953, %v1105
        %v1228 = vadd.f32 %v954, %v1110
        %v1229 = vadd.f32 %v955, %v1115
        %v1230 = vadd.f32 %v956, %v1120
        %v1231 = vadd.f32 %v957, %v1125
        %v1232 = vadd.f32 %v958, %v1130
        %v1233 = vadd.f32 %v959, %v1135
        %v1234 = vadd.f32 %v960, %v1140
        %v1235 = vadd.f32 %v961, %v1145
        %v1236 = vadd.f32 %v962, %v1150
        %v1237 = vadd.f32 %v963, %v1155
        %v1238 = vadd.f32 %v964, %v1160
        %v1239 = vadd.f32 %v965, %v1165
        %v1240 = vadd.f32 %v966, %v1170
        %v1241 = vadd.f32 %v967, %v1175
        %v1242 = vadd.f32 %v968, %v1180
        %v1243 = vadd.f32 %v969, %v1185
        %v1244 = vadd.f32 %v970, %v1190
        %v1245 = vadd.f32 %v971, %v1195
        %v1246 = vadd.f32 %v972, %v1200
        %v1247 = vadd.f32 %v973, %v1205
        %v1248 = vadd.f32 %v974, %v1210
        %v1249 = vadd.f32 %v975, %v1215
        %1250 = vst [vmem:[#allocation3] sm:$0xff] %v1218
        %1251 = vst [vmem:[#allocation3 + $0x8] sm:$0xff] %v1219
        %1252 = vst [vmem:[#allocation3 + $0x10] sm:$0xff] %v1220
        %1253 = vst [vmem:[#allocation3 + $0x18] sm:$0xff] %v1221
        %1254 = vst [vmem:[#allocation3 + $0x20] sm:$0xff] %v1222
        %1255 = vst [vmem:[#allocation3 + $0x28] sm:$0xff] %v1223
        %1256 = vst [vmem:[#allocation3 + $0x30] sm:$0xff] %v1224
        %1257 = vst [vmem:[#allocation3 + $0x38] sm:$0xff] %v1225
        %1258 = vst [vmem:[#allocation3 + $0x40] sm:$0xff] %v1226
        %1259 = vst [vmem:[#allocation3 + $0x48] sm:$0xff] %v1227
        %1260 = vst [vmem:[#allocation3 + $0x50] sm:$0xff] %v1228
        %1261 = vst [vmem:[#allocation3 + $0x58] sm:$0xff] %v1229
        %1262 = vst [vmem:[#allocation3 + $0x60] sm:$0xff] %v1230
        %1263 = vst [vmem:[#allocation3 + $0x68] sm:$0xff] %v1231
        %1264 = vst [vmem:[#allocation3 + $0x70] sm:$0xff] %v1232
        %1265 = vst [vmem:[#allocation3 + $0x78] sm:$0xff] %v1233
        %1266 = vst [vmem:[#allocation3 + $0x80] sm:$0xff] %v1234
        %1267 = vst [vmem:[#allocation3 + $0x88] sm:$0xff] %v1235
        %1268 = vst [vmem:[#allocation3 + $0x90] sm:$0xff] %v1236
        %1269 = vst [vmem:[#allocation3 + $0x98] sm:$0xff] %v1237
        %1270 = vst [vmem:[#allocation3 + $0xa0] sm:$0xff] %v1238
        %1271 = vst [vmem:[#allocation3 + $0xa8] sm:$0xff] %v1239
        %1272 = vst [vmem:[#allocation3 + $0xb0] sm:$0xff] %v1240
        %1273 = vst [vmem:[#allocation3 + $0xb8] sm:$0xff] %v1241
        %1274 = vst [vmem:[#allocation3 + $0xc0] sm:$0xff] %v1242
        %1275 = vst [vmem:[#allocation3 + $0xc8] sm:$0xff] %v1243
        %1276 = vst [vmem:[#allocation3 + $0xd0] sm:$0xff] %v1244
        %1277 = vst [vmem:[#allocation3 + $0xd8] sm:$0xff] %v1245
        %1278 = vst [vmem:[#allocation3 + $0xe0] sm:$0xff] %v1246
        %1279 = vst [vmem:[#allocation3 + $0xe8] sm:$0xff] %v1247
        %1280 = vst [vmem:[#allocation3 + $0xf0] sm:$0xff] %v1248
        %1281 = vst [vmem:[#allocation3 + $0xf8] sm:$0xff] %v1249
        %v1282 = vld [vmem:[%s501] sm:$0xff]
        %v1283 = vld [vmem:[%s501 + $0x8] sm:$0xff]
        %v1284 = vld [vmem:[%s501 + $0x10] sm:$0xff]
        %v1285 = vld [vmem:[%s501 + $0x18] sm:$0xff]
        %v1286 = vld [vmem:[%s501 + $0x20] sm:$0xff]
        %v1287 = vld [vmem:[%s501 + $0x28] sm:$0xff]
        %v1288 = vld [vmem:[%s501 + $0x30] sm:$0xff]
        %v1289 = vld [vmem:[%s501 + $0x38] sm:$0xff]
        %v1290 = vld [vmem:[%s501 + $0x40] sm:$0xff]
        %v1291 = vld [vmem:[%s501 + $0x48] sm:$0xff]
        %v1292 = vld [vmem:[%s501 + $0x50] sm:$0xff]
        %v1293 = vld [vmem:[%s501 + $0x58] sm:$0xff]
        %v1294 = vld [vmem:[%s501 + $0x60] sm:$0xff]
        %v1295 = vld [vmem:[%s501 + $0x68] sm:$0xff]
        %v1296 = vld [vmem:[%s501 + $0x70] sm:$0xff]
        %v1297 = vld [vmem:[%s501 + $0x78] sm:$0xff]
        %v1298 = vld [vmem:[%s501 + $0x80] sm:$0xff]
        %v1299 = vld [vmem:[%s501 + $0x88] sm:$0xff]
        %v1300 = vld [vmem:[%s501 + $0x90] sm:$0xff]
        %v1301 = vld [vmem:[%s501 + $0x98] sm:$0xff]
        %v1302 = vld [vmem:[%s501 + $0xa0] sm:$0xff]
        %v1303 = vld [vmem:[%s501 + $0xa8] sm:$0xff]
        %v1304 = vld [vmem:[%s501 + $0xb0] sm:$0xff]
        %v1305 = vld [vmem:[%s501 + $0xb8] sm:$0xff]
        %v1306 = vld [vmem:[%s501 + $0xc0] sm:$0xff]
        %v1307 = vld [vmem:[%s501 + $0xc8] sm:$0xff]
        %v1308 = vld [vmem:[%s501 + $0xd0] sm:$0xff]
        %v1309 = vld [vmem:[%s501 + $0xd8] sm:$0xff]
        %v1310 = vld [vmem:[%s501 + $0xe0] sm:$0xff]
        %v1311 = vld [vmem:[%s501 + $0xe8] sm:$0xff]
        %v1312 = vld [vmem:[%s501 + $0xf0] sm:$0xff]
        %v1313 = vld [vmem:[%s501 + $0xf8] sm:$0xff]
        %v1314 = vld [vmem:[#allocation3] sm:$0xff]
        %v1315 = vld [vmem:[#allocation3 + $0x8] sm:$0xff]
        %v1316 = vld [vmem:[#allocation3 + $0x10] sm:$0xff]
        %v1317 = vld [vmem:[#allocation3 + $0x18] sm:$0xff]
        %v1318 = vld [vmem:[#allocation3 + $0x20] sm:$0xff]
        %v1319 = vld [vmem:[#allocation3 + $0x28] sm:$0xff]
        %v1320 = vld [vmem:[#allocation3 + $0x30] sm:$0xff]
        %v1321 = vld [vmem:[#allocation3 + $0x38] sm:$0xff]
        %v1322 = vld [vmem:[#allocation3 + $0x40] sm:$0xff]
        %v1323 = vld [vmem:[#allocation3 + $0x48] sm:$0xff]
        %v1324 = vld [vmem:[#allocation3 + $0x50] sm:$0xff]
        %v1325 = vld [vmem:[#allocation3 + $0x58] sm:$0xff]
        %v1326 = vld [vmem:[#allocation3 + $0x60] sm:$0xff]
        %v1327 = vld [vmem:[#allocation3 + $0x68] sm:$0xff]
        %v1328 = vld [vmem:[#allocation3 + $0x70] sm:$0xff]
        %v1329 = vld [vmem:[#allocation3 + $0x78] sm:$0xff]
        %v1330 = vld [vmem:[#allocation3 + $0x80] sm:$0xff]
        %v1331 = vld [vmem:[#allocation3 + $0x88] sm:$0xff]
        %v1332 = vld [vmem:[#allocation3 + $0x90] sm:$0xff]
        %v1333 = vld [vmem:[#allocation3 + $0x98] sm:$0xff]
        %v1334 = vld [vmem:[#allocation3 + $0xa0] sm:$0xff]
        %v1335 = vld [vmem:[#allocation3 + $0xa8] sm:$0xff]
        %v1336 = vld [vmem:[#allocation3 + $0xb0] sm:$0xff]
        %v1337 = vld [vmem:[#allocation3 + $0xb8] sm:$0xff]
        %v1338 = vld [vmem:[#allocation3 + $0xc0] sm:$0xff]
        %v1339 = vld [vmem:[#allocation3 + $0xc8] sm:$0xff]
        %v1340 = vld [vmem:[#allocation3 + $0xd0] sm:$0xff]
        %v1341 = vld [vmem:[#allocation3 + $0xd8] sm:$0xff]
        %v1342 = vld [vmem:[#allocation3 + $0xe0] sm:$0xff]
        %v1343 = vld [vmem:[#allocation3 + $0xe8] sm:$0xff]
        %v1344 = vld [vmem:[#allocation3 + $0xf0] sm:$0xff]
        %v1345 = vld [vmem:[#allocation3 + $0xf8] sm:$0xff]
        %s1346 = scalar_lea.vmem %s2, 256
        %v1347 = vld [vmem:[%s1346] sm:$0xff]
        %v1348 = vld [vmem:[%s1346 + $0x8] sm:$0xff]
        %v1349 = vld [vmem:[%s1346 + $0x10] sm:$0xff]
        %v1350 = vld [vmem:[%s1346 + $0x18] sm:$0xff]
        %v1351 = vld [vmem:[%s1346 + $0x20] sm:$0xff]
        %v1352 = vld [vmem:[%s1346 + $0x28] sm:$0xff]
        %v1353 = vld [vmem:[%s1346 + $0x30] sm:$0xff]
        %v1354 = vld [vmem:[%s1346 + $0x38] sm:$0xff]
        %v1355 = vld [vmem:[%s1346 + $0x40] sm:$0xff]
        %v1356 = vld [vmem:[%s1346 + $0x48] sm:$0xff]
        %v1357 = vld [vmem:[%s1346 + $0x50] sm:$0xff]
        %v1358 = vld [vmem:[%s1346 + $0x58] sm:$0xff]
        %v1359 = vld [vmem:[%s1346 + $0x60] sm:$0xff]
        %v1360 = vld [vmem:[%s1346 + $0x68] sm:$0xff]
        %v1361 = vld [vmem:[%s1346 + $0x70] sm:$0xff]
        %v1362 = vld [vmem:[%s1346 + $0x78] sm:$0xff]
        %1363 = vmatprep.subr.mxu0 0.0
        %1364 = vmatpush1.msra.mxu0 %v1347
        %1365 = vmatprep.subr.mxu0 0.0
        %1366 = vmatpush1.msra.mxu0 %v1348
        %1367 = vmatprep.subr.mxu0 0.0
        %1368 = vmatpush1.msra.mxu0 %v1349
        %1369 = vmatprep.subr.mxu0 0.0
        %1370 = vmatpush1.msra.mxu0 %v1350
        %1371 = vmatprep.subr.mxu0 0.0
        %1372 = vmatpush1.msra.mxu0 %v1351
        %1373 = vmatprep.subr.mxu0 0.0
        %1374 = vmatpush1.msra.mxu0 %v1352
        %1375 = vmatprep.subr.mxu0 0.0
        %1376 = vmatpush1.msra.mxu0 %v1353
        %1377 = vmatprep.subr.mxu0 0.0
        %1378 = vmatpush1.msra.mxu0 %v1354
        %1379 = vmatprep.subr.mxu0 0.0
        %1380 = vmatpush1.msra.mxu0 %v1355
        %1381 = vmatprep.subr.mxu0 0.0
        %1382 = vmatpush1.msra.mxu0 %v1356
        %1383 = vmatprep.subr.mxu0 0.0
        %1384 = vmatpush1.msra.mxu0 %v1357
        %1385 = vmatprep.subr.mxu0 0.0
        %1386 = vmatpush1.msra.mxu0 %v1358
        %1387 = vmatprep.subr.mxu0 0.0
        %1388 = vmatpush1.msra.mxu0 %v1359
        %1389 = vmatprep.subr.mxu0 0.0
        %1390 = vmatpush1.msra.mxu0 %v1360
        %1391 = vmatprep.subr.mxu0 0.0
        %1392 = vmatpush1.msra.mxu0 %v1361
        %1393 = vmatprep.subr.mxu0 0.0
        %1394 = vmatpush1.msra.mxu0 %v1362
        %1395 = vmatprep.subr.mxu0 0.0
        %1396 = vmatpush1.msra.mxu0 0.0
        %1397 = vmatprep.subr.mxu0 0.0
        %1398 = vmatpush1.msra.mxu0 0.0
        %1399 = vmatprep.subr.mxu0 0.0
        %1400 = vmatpush1.msra.mxu0 0.0
        %1401 = vmatprep.subr.mxu0 0.0
        %1402 = vmatpush1.msra.mxu0 0.0
        %1403 = vmatprep.subr.mxu0 0.0
        %1404 = vmatpush1.msra.mxu0 0.0
        %1405 = vmatprep.subr.mxu0 0.0
        %1406 = vmatpush1.msra.mxu0 0.0
        %1407 = vmatprep.subr.mxu0 0.0
        %1408 = vmatpush1.msra.mxu0 0.0
        %1409 = vmatprep.subr.mxu0 0.0
        %1410 = vmatpush1.msra.mxu0 0.0
        %1411 = vmatprep.subr.mxu0 0.0
        %1412 = vmatpush1.msra.mxu0 0.0
        %1413 = vmatprep.subr.mxu0 0.0
        %1414 = vmatpush1.msra.mxu0 0.0
        %1415 = vmatprep.subr.mxu0 0.0
        %1416 = vmatpush1.msra.mxu0 0.0
        %1417 = vmatprep.subr.mxu0 0.0
        %1418 = vmatpush1.msra.mxu0 0.0
        %1419 = vmatprep.subr.mxu0 0.0
        %1420 = vmatpush1.msra.mxu0 0.0
        %1421 = vmatprep.subr.mxu0 0.0
        %1422 = vmatpush1.msra.mxu0 0.0
        %1423 = vmatprep.subr.mxu0 0.0
        %1424 = vmatpush1.msra.mxu0 0.0
        %1425 = vmatprep.subr.mxu0 0.0
        %1426 = vmatpush1.msra.mxu0 0.0
        %1427 = vmatprep.mubr.f32.mxu0 0.0
        %1428 = vmatmul.mubr.f32.gmra.mrb[0].mxu0 %v1282
        %v1429 = vpop.f32.mrb[0].mxu0
        %v1430 = vadd.f32 0.0, %v1429
        %v1431 = vpop.f32.mrb[0].mxu0
        %1432 = vmatprep.mubr.f32.mxu0 0.0
        %1433 = vmatmul.mubr.f32.gmra.mrb[0].mxu0 %v1283
        %v1434 = vpop.f32.mrb[0].mxu0
        %v1435 = vadd.f32 0.0, %v1434
        %v1436 = vpop.f32.mrb[0].mxu0
        %1437 = vmatprep.mubr.f32.mxu0 0.0
        %1438 = vmatmul.mubr.f32.gmra.mrb[0].mxu0 %v1284
        %v1439 = vpop.f32.mrb[0].mxu0
        %v1440 = vadd.f32 0.0, %v1439
        %v1441 = vpop.f32.mrb[0].mxu0
        %1442 = vmatprep.mubr.f32.mxu0 0.0
        %1443 = vmatmul.mubr.f32.gmra.mrb[0].mxu0 %v1285
        %v1444 = vpop.f32.mrb[0].mxu0
        %v1445 = vadd.f32 0.0, %v1444
        %v1446 = vpop.f32.mrb[0].mxu0
        %1447 = vmatprep.mubr.f32.mxu0 0.0
        %1448 = vmatmul.mubr.f32.gmra.mrb[0].mxu0 %v1286
        %v1449 = vpop.f32.mrb[0].mxu0
        %v1450 = vadd.f32 0.0, %v1449
        %v1451 = vpop.f32.mrb[0].mxu0
        %1452 = vmatprep.mubr.f32.mxu0 0.0
        %1453 = vmatmul.mubr.f32.gmra.mrb[0].mxu0 %v1287
        %v1454 = vpop.f32.mrb[0].mxu0
        %v1455 = vadd.f32 0.0, %v1454
        %v1456 = vpop.f32.mrb[0].mxu0
        %1457 = vmatprep.mubr.f32.mxu0 0.0
        %1458 = vmatmul.mubr.f32.gmra.mrb[0].mxu0 %v1288
        %v1459 = vpop.f32.mrb[0].mxu0
        %v1460 = vadd.f32 0.0, %v1459
        %v1461 = vpop.f32.mrb[0].mxu0
        %1462 = vmatprep.mubr.f32.mxu0 0.0
        %1463 = vmatmul.mubr.f32.gmra.mrb[0].mxu0 %v1289
        %v1464 = vpop.f32.mrb[0].mxu0
        %v1465 = vadd.f32 0.0, %v1464
        %v1466 = vpop.f32.mrb[0].mxu0
        %1467 = vmatprep.mubr.f32.mxu0 0.0
        %1468 = vmatmul.mubr.f32.gmra.mrb[0].mxu0 %v1290
        %v1469 = vpop.f32.mrb[0].mxu0
        %v1470 = vadd.f32 0.0, %v1469
        %v1471 = vpop.f32.mrb[0].mxu0
        %1472 = vmatprep.mubr.f32.mxu0 0.0
        %1473 = vmatmul.mubr.f32.gmra.mrb[0].mxu0 %v1291
        %v1474 = vpop.f32.mrb[0].mxu0
        %v1475 = vadd.f32 0.0, %v1474
        %v1476 = vpop.f32.mrb[0].mxu0
        %1477 = vmatprep.mubr.f32.mxu0 0.0
        %1478 = vmatmul.mubr.f32.gmra.mrb[0].mxu0 %v1292
        %v1479 = vpop.f32.mrb[0].mxu0
        %v1480 = vadd.f32 0.0, %v1479
        %v1481 = vpop.f32.mrb[0].mxu0
        %1482 = vmatprep.mubr.f32.mxu0 0.0
        %1483 = vmatmul.mubr.f32.gmra.mrb[0].mxu0 %v1293
        %v1484 = vpop.f32.mrb[0].mxu0
        %v1485 = vadd.f32 0.0, %v1484
        %v1486 = vpop.f32.mrb[0].mxu0
        %1487 = vmatprep.mubr.f32.mxu0 0.0
        %1488 = vmatmul.mubr.f32.gmra.mrb[0].mxu0 %v1294
        %v1489 = vpop.f32.mrb[0].mxu0
        %v1490 = vadd.f32 0.0, %v1489
        %v1491 = vpop.f32.mrb[0].mxu0
        %1492 = vmatprep.mubr.f32.mxu0 0.0
        %1493 = vmatmul.mubr.f32.gmra.mrb[0].mxu0 %v1295
        %v1494 = vpop.f32.mrb[0].mxu0
        %v1495 = vadd.f32 0.0, %v1494
        %v1496 = vpop.f32.mrb[0].mxu0
        %1497 = vmatprep.mubr.f32.mxu0 0.0
        %1498 = vmatmul.mubr.f32.gmra.mrb[0].mxu0 %v1296
        %v1499 = vpop.f32.mrb[0].mxu0
        %v1500 = vadd.f32 0.0, %v1499
        %v1501 = vpop.f32.mrb[0].mxu0
        %1502 = vmatprep.mubr.f32.mxu0 0.0
        %1503 = vmatmul.mubr.f32.gmra.mrb[0].mxu0 %v1297
        %v1504 = vpop.f32.mrb[0].mxu0
        %v1505 = vadd.f32 0.0, %v1504
        %v1506 = vpop.f32.mrb[0].mxu0
        %1507 = vmatprep.mubr.f32.mxu0 0.0
        %1508 = vmatmul.mubr.f32.gmra.mrb[0].mxu0 %v1298
        %v1509 = vpop.f32.mrb[0].mxu0
        %v1510 = vadd.f32 0.0, %v1509
        %v1511 = vpop.f32.mrb[0].mxu0
        %1512 = vmatprep.mubr.f32.mxu0 0.0
        %1513 = vmatmul.mubr.f32.gmra.mrb[0].mxu0 %v1299
        %v1514 = vpop.f32.mrb[0].mxu0
        %v1515 = vadd.f32 0.0, %v1514
        %v1516 = vpop.f32.mrb[0].mxu0
        %1517 = vmatprep.mubr.f32.mxu0 0.0
        %1518 = vmatmul.mubr.f32.gmra.mrb[0].mxu0 %v1300
        %v1519 = vpop.f32.mrb[0].mxu0
        %v1520 = vadd.f32 0.0, %v1519
        %v1521 = vpop.f32.mrb[0].mxu0
        %1522 = vmatprep.mubr.f32.mxu0 0.0
        %1523 = vmatmul.mubr.f32.gmra.mrb[0].mxu0 %v1301
        %v1524 = vpop.f32.mrb[0].mxu0
        %v1525 = vadd.f32 0.0, %v1524
        %v1526 = vpop.f32.mrb[0].mxu0
        %1527 = vmatprep.mubr.f32.mxu0 0.0
        %1528 = vmatmul.mubr.f32.gmra.mrb[0].mxu0 %v1302
        %v1529 = vpop.f32.mrb[0].mxu0
        %v1530 = vadd.f32 0.0, %v1529
        %v1531 = vpop.f32.mrb[0].mxu0
        %1532 = vmatprep.mubr.f32.mxu0 0.0
        %1533 = vmatmul.mubr.f32.gmra.mrb[0].mxu0 %v1303
        %v1534 = vpop.f32.mrb[0].mxu0
        %v1535 = vadd.f32 0.0, %v1534
        %v1536 = vpop.f32.mrb[0].mxu0
        %1537 = vmatprep.mubr.f32.mxu0 0.0
        %1538 = vmatmul.mubr.f32.gmra.mrb[0].mxu0 %v1304
        %v1539 = vpop.f32.mrb[0].mxu0
        %v1540 = vadd.f32 0.0, %v1539
        %v1541 = vpop.f32.mrb[0].mxu0
        %1542 = vmatprep.mubr.f32.mxu0 0.0
        %1543 = vmatmul.mubr.f32.gmra.mrb[0].mxu0 %v1305
        %v1544 = vpop.f32.mrb[0].mxu0
        %v1545 = vadd.f32 0.0, %v1544
        %v1546 = vpop.f32.mrb[0].mxu0
        %1547 = vmatprep.mubr.f32.mxu0 0.0
        %1548 = vmatmul.mubr.f32.gmra.mrb[0].mxu0 %v1306
        %v1549 = vpop.f32.mrb[0].mxu0
        %v1550 = vadd.f32 0.0, %v1549
        %v1551 = vpop.f32.mrb[0].mxu0
        %1552 = vmatprep.mubr.f32.mxu0 0.0
        %1553 = vmatmul.mubr.f32.gmra.mrb[0].mxu0 %v1307
        %v1554 = vpop.f32.mrb[0].mxu0
        %v1555 = vadd.f32 0.0, %v1554
        %v1556 = vpop.f32.mrb[0].mxu0
        %1557 = vmatprep.mubr.f32.mxu0 0.0
        %1558 = vmatmul.mubr.f32.gmra.mrb[0].mxu0 %v1308
        %v1559 = vpop.f32.mrb[0].mxu0
        %v1560 = vadd.f32 0.0, %v1559
        %v1561 = vpop.f32.mrb[0].mxu0
        %1562 = vmatprep.mubr.f32.mxu0 0.0
        %1563 = vmatmul.mubr.f32.gmra.mrb[0].mxu0 %v1309
        %v1564 = vpop.f32.mrb[0].mxu0
        %v1565 = vadd.f32 0.0, %v1564
        %v1566 = vpop.f32.mrb[0].mxu0
        %1567 = vmatprep.mubr.f32.mxu0 0.0
        %1568 = vmatmul.mubr.f32.gmra.mrb[0].mxu0 %v1310
        %v1569 = vpop.f32.mrb[0].mxu0
        %v1570 = vadd.f32 0.0, %v1569
        %v1571 = vpop.f32.mrb[0].mxu0
        %1572 = vmatprep.mubr.f32.mxu0 0.0
        %1573 = vmatmul.mubr.f32.gmra.mrb[0].mxu0 %v1311
        %v1574 = vpop.f32.mrb[0].mxu0
        %v1575 = vadd.f32 0.0, %v1574
        %v1576 = vpop.f32.mrb[0].mxu0
        %1577 = vmatprep.mubr.f32.mxu0 0.0
        %1578 = vmatmul.mubr.f32.gmra.mrb[0].mxu0 %v1312
        %v1579 = vpop.f32.mrb[0].mxu0
        %v1580 = vadd.f32 0.0, %v1579
        %v1581 = vpop.f32.mrb[0].mxu0
        %1582 = vmatprep.mubr.f32.mxu0 0.0
        %1583 = vmatmul.mubr.f32.gmra.mrb[0].mxu0 %v1313
        %v1584 = vpop.f32.mrb[0].mxu0
        %v1585 = vadd.f32 0.0, %v1584
        %v1586 = vpop.f32.mrb[0].mxu0
        %1587 = vdwg.mxu0
        %v1588 = vadd.f32 %v1314, %v1430
        %v1589 = vadd.f32 %v1315, %v1435
        %v1590 = vadd.f32 %v1316, %v1440
        %v1591 = vadd.f32 %v1317, %v1445
        %v1592 = vadd.f32 %v1318, %v1450
        %v1593 = vadd.f32 %v1319, %v1455
        %v1594 = vadd.f32 %v1320, %v1460
        %v1595 = vadd.f32 %v1321, %v1465
        %v1596 = vadd.f32 %v1322, %v1470
        %v1597 = vadd.f32 %v1323, %v1475
        %v1598 = vadd.f32 %v1324, %v1480
        %v1599 = vadd.f32 %v1325, %v1485
        %v1600 = vadd.f32 %v1326, %v1490
        %v1601 = vadd.f32 %v1327, %v1495
        %v1602 = vadd.f32 %v1328, %v1500
        %v1603 = vadd.f32 %v1329, %v1505
        %v1604 = vadd.f32 %v1330, %v1510
        %v1605 = vadd.f32 %v1331, %v1515
        %v1606 = vadd.f32 %v1332, %v1520
        %v1607 = vadd.f32 %v1333, %v1525
        %v1608 = vadd.f32 %v1334, %v1530
        %v1609 = vadd.f32 %v1335, %v1535
        %v1610 = vadd.f32 %v1336, %v1540
        %v1611 = vadd.f32 %v1337, %v1545
        %v1612 = vadd.f32 %v1338, %v1550
        %v1613 = vadd.f32 %v1339, %v1555
        %v1614 = vadd.f32 %v1340, %v1560
        %v1615 = vadd.f32 %v1341, %v1565
        %v1616 = vadd.f32 %v1342, %v1570
        %v1617 = vadd.f32 %v1343, %v1575
        %v1618 = vadd.f32 %v1344, %v1580
        %v1619 = vadd.f32 %v1345, %v1585
        %1620 = vst [vmem:[#allocation3] sm:$0xff] %v1588
        %1621 = vst [vmem:[#allocation3 + $0x8] sm:$0xff] %v1589
        %1622 = vst [vmem:[#allocation3 + $0x10] sm:$0xff] %v1590
        %1623 = vst [vmem:[#allocation3 + $0x18] sm:$0xff] %v1591
        %1624 = vst [vmem:[#allocation3 + $0x20] sm:$0xff] %v1592
        %1625 = vst [vmem:[#allocation3 + $0x28] sm:$0xff] %v1593
        %1626 = vst [vmem:[#allocation3 + $0x30] sm:$0xff] %v1594
        %1627 = vst [vmem:[#allocation3 + $0x38] sm:$0xff] %v1595
        %1628 = vst [vmem:[#allocation3 + $0x40] sm:$0xff] %v1596
        %1629 = vst [vmem:[#allocation3 + $0x48] sm:$0xff] %v1597
        %1630 = vst [vmem:[#allocation3 + $0x50] sm:$0xff] %v1598
        %1631 = vst [vmem:[#allocation3 + $0x58] sm:$0xff] %v1599
        %1632 = vst [vmem:[#allocation3 + $0x60] sm:$0xff] %v1600
        %1633 = vst [vmem:[#allocation3 + $0x68] sm:$0xff] %v1601
        %1634 = vst [vmem:[#allocation3 + $0x70] sm:$0xff] %v1602
        %1635 = vst [vmem:[#allocation3 + $0x78] sm:$0xff] %v1603
        %1636 = vst [vmem:[#allocation3 + $0x80] sm:$0xff] %v1604
        %1637 = vst [vmem:[#allocation3 + $0x88] sm:$0xff] %v1605
        %1638 = vst [vmem:[#allocation3 + $0x90] sm:$0xff] %v1606
        %1639 = vst [vmem:[#allocation3 + $0x98] sm:$0xff] %v1607
        %1640 = vst [vmem:[#allocation3 + $0xa0] sm:$0xff] %v1608
        %1641 = vst [vmem:[#allocation3 + $0xa8] sm:$0xff] %v1609
        %1642 = vst [vmem:[#allocation3 + $0xb0] sm:$0xff] %v1610
        %1643 = vst [vmem:[#allocation3 + $0xb8] sm:$0xff] %v1611
        %1644 = vst [vmem:[#allocation3 + $0xc0] sm:$0xff] %v1612
        %1645 = vst [vmem:[#allocation3 + $0xc8] sm:$0xff] %v1613
        %1646 = vst [vmem:[#allocation3 + $0xd0] sm:$0xff] %v1614
        %1647 = vst [vmem:[#allocation3 + $0xd8] sm:$0xff] %v1615
        %1648 = vst [vmem:[#allocation3 + $0xe0] sm:$0xff] %v1616
        %1649 = vst [vmem:[#allocation3 + $0xe8] sm:$0xff] %v1617
        %1650 = vst [vmem:[#allocation3 + $0xf0] sm:$0xff] %v1618
        %1651 = vst [vmem:[#allocation3 + $0xf8] sm:$0xff] %v1619
        %s1652 = scalar_lea.vmem [#allocation2], 16
        %v1653 = vld [vmem:[%s1652] sm:$0xff]
        %v1654 = vld [vmem:[%s1652 + $0x8] sm:$0xff]
        %v1655 = vld [vmem:[%s1652 + $0x10] sm:$0xff]
        %v1656 = vld [vmem:[%s1652 + $0x18] sm:$0xff]
        %v1657 = vld [vmem:[%s1652 + $0x20] sm:$0xff]
        %v1658 = vld [vmem:[%s1652 + $0x28] sm:$0xff]
        %v1659 = vld [vmem:[%s1652 + $0x30] sm:$0xff]
        %v1660 = vld [vmem:[%s1652 + $0x38] sm:$0xff]
        %v1661 = vld [vmem:[%s1652 + $0x40] sm:$0xff]
        %v1662 = vld [vmem:[%s1652 + $0x48] sm:$0xff]
        %v1663 = vld [vmem:[%s1652 + $0x50] sm:$0xff]
        %v1664 = vld [vmem:[%s1652 + $0x58] sm:$0xff]
        %v1665 = vld [vmem:[%s1652 + $0x60] sm:$0xff]
        %v1666 = vld [vmem:[%s1652 + $0x68] sm:$0xff]
        %v1667 = vld [vmem:[%s1652 + $0x70] sm:$0xff]
        %v1668 = vld [vmem:[%s1652 + $0x78] sm:$0xff]
        %v1669 = vld [vmem:[%s1652 + $0x80] sm:$0xff]
        %v1670 = vld [vmem:[%s1652 + $0x88] sm:$0xff]
        %v1671 = vld [vmem:[%s1652 + $0x90] sm:$0xff]
        %v1672 = vld [vmem:[%s1652 + $0x98] sm:$0xff]
        %v1673 = vld [vmem:[%s1652 + $0xa0] sm:$0xff]
        %v1674 = vld [vmem:[%s1652 + $0xa8] sm:$0xff]
        %v1675 = vld [vmem:[%s1652 + $0xb0] sm:$0xff]
        %v1676 = vld [vmem:[%s1652 + $0xb8] sm:$0xff]
        %v1677 = vld [vmem:[%s1652 + $0xc0] sm:$0xff]
        %v1678 = vld [vmem:[%s1652 + $0xc8] sm:$0xff]
        %v1679 = vld [vmem:[%s1652 + $0xd0] sm:$0xff]
        %v1680 = vld [vmem:[%s1652 + $0xd8] sm:$0xff]
        %v1681 = vld [vmem:[%s1652 + $0xe0] sm:$0xff]
        %v1682 = vld [vmem:[%s1652 + $0xe8] sm:$0xff]
        %v1683 = vld [vmem:[%s1652 + $0xf0] sm:$0xff]
        %v1684 = vld [vmem:[%s1652 + $0xf8] sm:$0xff]
        %v1685 = vld [vmem:[#allocation3] sm:$0xff]
        %v1686 = vld [vmem:[#allocation3 + $0x8] sm:$0xff]
        %v1687 = vld [vmem:[#allocation3 + $0x10] sm:$0xff]
        %v1688 = vld [vmem:[#allocation3 + $0x18] sm:$0xff]
        %v1689 = vld [vmem:[#allocation3 + $0x20] sm:$0xff]
        %v1690 = vld [vmem:[#allocation3 + $0x28] sm:$0xff]
        %v1691 = vld [vmem:[#allocation3 + $0x30] sm:$0xff]
        %v1692 = vld [vmem:[#allocation3 + $0x38] sm:$0xff]
        %v1693 = vld [vmem:[#allocation3 + $0x40] sm:$0xff]
        %v1694 = vld [vmem:[#allocation3 + $0x48] sm:$0xff]
        %v1695 = vld [vmem:[#allocation3 + $0x50] sm:$0xff]
        %v1696 = vld [vmem:[#allocation3 + $0x58] sm:$0xff]
        %v1697 = vld [vmem:[#allocation3 + $0x60] sm:$0xff]
        %v1698 = vld [vmem:[#allocation3 + $0x68] sm:$0xff]
        %v1699 = vld [vmem:[#allocation3 + $0x70] sm:$0xff]
        %v1700 = vld [vmem:[#allocation3 + $0x78] sm:$0xff]
        %v1701 = vld [vmem:[#allocation3 + $0x80] sm:$0xff]
        %v1702 = vld [vmem:[#allocation3 + $0x88] sm:$0xff]
        %v1703 = vld [vmem:[#allocation3 + $0x90] sm:$0xff]
        %v1704 = vld [vmem:[#allocation3 + $0x98] sm:$0xff]
        %v1705 = vld [vmem:[#allocation3 + $0xa0] sm:$0xff]
        %v1706 = vld [vmem:[#allocation3 + $0xa8] sm:$0xff]
        %v1707 = vld [vmem:[#allocation3 + $0xb0] sm:$0xff]
        %v1708 = vld [vmem:[#allocation3 + $0xb8] sm:$0xff]
        %v1709 = vld [vmem:[#allocation3 + $0xc0] sm:$0xff]
        %v1710 = vld [vmem:[#allocation3 + $0xc8] sm:$0xff]
        %v1711 = vld [vmem:[#allocation3 + $0xd0] sm:$0xff]
        %v1712 = vld [vmem:[#allocation3 + $0xd8] sm:$0xff]
        %v1713 = vld [vmem:[#allocation3 + $0xe0] sm:$0xff]
        %v1714 = vld [vmem:[#allocation3 + $0xe8] sm:$0xff]
        %v1715 = vld [vmem:[#allocation3 + $0xf0] sm:$0xff]
        %v1716 = vld [vmem:[#allocation3 + $0xf8] sm:$0xff]
        %s1717 = scalar_lea.vmem %s2, 384
        %v1718 = vld [vmem:[%s1717] sm:$0xff]
        %v1719 = vld [vmem:[%s1717 + $0x8] sm:$0xff]
        %v1720 = vld [vmem:[%s1717 + $0x10] sm:$0xff]
        %v1721 = vld [vmem:[%s1717 + $0x18] sm:$0xff]
        %v1722 = vld [vmem:[%s1717 + $0x20] sm:$0xff]
        %v1723 = vld [vmem:[%s1717 + $0x28] sm:$0xff]
        %v1724 = vld [vmem:[%s1717 + $0x30] sm:$0xff]
        %v1725 = vld [vmem:[%s1717 + $0x38] sm:$0xff]
        %v1726 = vld [vmem:[%s1717 + $0x40] sm:$0xff]
        %v1727 = vld [vmem:[%s1717 + $0x48] sm:$0xff]
        %v1728 = vld [vmem:[%s1717 + $0x50] sm:$0xff]
        %v1729 = vld [vmem:[%s1717 + $0x58] sm:$0xff]
        %v1730 = vld [vmem:[%s1717 + $0x60] sm:$0xff]
        %v1731 = vld [vmem:[%s1717 + $0x68] sm:$0xff]
        %v1732 = vld [vmem:[%s1717 + $0x70] sm:$0xff]
        %v1733 = vld [vmem:[%s1717 + $0x78] sm:$0xff]
        %1734 = vmatprep.subr.mxu0 0.0
        %1735 = vmatpush1.msra.mxu0 %v1718
        %1736 = vmatprep.subr.mxu0 0.0
        %1737 = vmatpush1.msra.mxu0 %v1719
        %1738 = vmatprep.subr.mxu0 0.0
        %1739 = vmatpush1.msra.mxu0 %v1720
        %1740 = vmatprep.subr.mxu0 0.0
        %1741 = vmatpush1.msra.mxu0 %v1721
        %1742 = vmatprep.subr.mxu0 0.0
        %1743 = vmatpush1.msra.mxu0 %v1722
        %1744 = vmatprep.subr.mxu0 0.0
        %1745 = vmatpush1.msra.mxu0 %v1723
        %1746 = vmatprep.subr.mxu0 0.0
        %1747 = vmatpush1.msra.mxu0 %v1724
        %1748 = vmatprep.subr.mxu0 0.0
        %1749 = vmatpush1.msra.mxu0 %v1725
        %1750 = vmatprep.subr.mxu0 0.0
        %1751 = vmatpush1.msra.mxu0 %v1726
        %1752 = vmatprep.subr.mxu0 0.0
        %1753 = vmatpush1.msra.mxu0 %v1727
        %1754 = vmatprep.subr.mxu0 0.0
        %1755 = vmatpush1.msra.mxu0 %v1728
        %1756 = vmatprep.subr.mxu0 0.0
        %1757 = vmatpush1.msra.mxu0 %v1729
        %1758 = vmatprep.subr.mxu0 0.0
        %1759 = vmatpush1.msra.mxu0 %v1730
        %1760 = vmatprep.subr.mxu0 0.0
        %1761 = vmatpush1.msra.mxu0 %v1731
        %1762 = vmatprep.subr.mxu0 0.0
        %1763 = vmatpush1.msra.mxu0 %v1732
        %1764 = vmatprep.subr.mxu0 0.0
        %1765 = vmatpush1.msra.mxu0 %v1733
        %1766 = vmatprep.subr.mxu0 0.0
        %1767 = vmatpush1.msra.mxu0 0.0
        %1768 = vmatprep.subr.mxu0 0.0
        %1769 = vmatpush1.msra.mxu0 0.0
        %1770 = vmatprep.subr.mxu0 0.0
        %1771 = vmatpush1.msra.mxu0 0.0
        %1772 = vmatprep.subr.mxu0 0.0
        %1773 = vmatpush1.msra.mxu0 0.0
        %1774 = vmatprep.subr.mxu0 0.0
        %1775 = vmatpush1.msra.mxu0 0.0
        %1776 = vmatprep.subr.mxu0 0.0
        %1777 = vmatpush1.msra.mxu0 0.0
        %1778 = vmatprep.subr.mxu0 0.0
        %1779 = vmatpush1.msra.mxu0 0.0
        %1780 = vmatprep.subr.mxu0 0.0
        %1781 = vmatpush1.msra.mxu0 0.0
        %1782 = vmatprep.subr.mxu0 0.0
        %1783 = vmatpush1.msra.mxu0 0.0
        %1784 = vmatprep.subr.mxu0 0.0
        %1785 = vmatpush1.msra.mxu0 0.0
        %1786 = vmatprep.subr.mxu0 0.0
        %1787 = vmatpush1.msra.mxu0 0.0
        %1788 = vmatprep.subr.mxu0 0.0
        %1789 = vmatpush1.msra.mxu0 0.0
        %1790 = vmatprep.subr.mxu0 0.0
        %1791 = vmatpush1.msra.mxu0 0.0
        %1792 = vmatprep.subr.mxu0 0.0
        %1793 = vmatpush1.msra.mxu0 0.0
        %1794 = vmatprep.subr.mxu0 0.0
        %1795 = vmatpush1.msra.mxu0 0.0
        %1796 = vmatprep.subr.mxu0 0.0
        %1797 = vmatpush1.msra.mxu0 0.0
        %1798 = vmatprep.mubr.f32.mxu0 0.0
        %1799 = vmatmul.mubr.f32.gmra.mrb[0].mxu0 %v1653
        %v1800 = vpop.f32.mrb[0].mxu0
        %v1801 = vadd.f32 0.0, %v1800
        %v1802 = vpop.f32.mrb[0].mxu0
        %1803 = vmatprep.mubr.f32.mxu0 0.0
        %1804 = vmatmul.mubr.f32.gmra.mrb[0].mxu0 %v1654
        %v1805 = vpop.f32.mrb[0].mxu0
        %v1806 = vadd.f32 0.0, %v1805
        %v1807 = vpop.f32.mrb[0].mxu0
        %1808 = vmatprep.mubr.f32.mxu0 0.0
        %1809 = vmatmul.mubr.f32.gmra.mrb[0].mxu0 %v1655
        %v1810 = vpop.f32.mrb[0].mxu0
        %v1811 = vadd.f32 0.0, %v1810
        %v1812 = vpop.f32.mrb[0].mxu0
        %1813 = vmatprep.mubr.f32.mxu0 0.0
        %1814 = vmatmul.mubr.f32.gmra.mrb[0].mxu0 %v1656
        %v1815 = vpop.f32.mrb[0].mxu0
        %v1816 = vadd.f32 0.0, %v1815
        %v1817 = vpop.f32.mrb[0].mxu0
        %1818 = vmatprep.mubr.f32.mxu0 0.0
        %1819 = vmatmul.mubr.f32.gmra.mrb[0].mxu0 %v1657
        %v1820 = vpop.f32.mrb[0].mxu0
        %v1821 = vadd.f32 0.0, %v1820
        %v1822 = vpop.f32.mrb[0].mxu0
        %1823 = vmatprep.mubr.f32.mxu0 0.0
        %1824 = vmatmul.mubr.f32.gmra.mrb[0].mxu0 %v1658
        %v1825 = vpop.f32.mrb[0].mxu0
        %v1826 = vadd.f32 0.0, %v1825
        %v1827 = vpop.f32.mrb[0].mxu0
        %1828 = vmatprep.mubr.f32.mxu0 0.0
        %1829 = vmatmul.mubr.f32.gmra.mrb[0].mxu0 %v1659
        %v1830 = vpop.f32.mrb[0].mxu0
        %v1831 = vadd.f32 0.0, %v1830
        %v1832 = vpop.f32.mrb[0].mxu0
        %1833 = vmatprep.mubr.f32.mxu0 0.0
        %1834 = vmatmul.mubr.f32.gmra.mrb[0].mxu0 %v1660
        %v1835 = vpop.f32.mrb[0].mxu0
        %v1836 = vadd.f32 0.0, %v1835
        %v1837 = vpop.f32.mrb[0].mxu0
        %1838 = vmatprep.mubr.f32.mxu0 0.0
        %1839 = vmatmul.mubr.f32.gmra.mrb[0].mxu0 %v1661
        %v1840 = vpop.f32.mrb[0].mxu0
        %v1841 = vadd.f32 0.0, %v1840
        %v1842 = vpop.f32.mrb[0].mxu0
        %1843 = vmatprep.mubr.f32.mxu0 0.0
        %1844 = vmatmul.mubr.f32.gmra.mrb[0].mxu0 %v1662
        %v1845 = vpop.f32.mrb[0].mxu0
        %v1846 = vadd.f32 0.0, %v1845
        %v1847 = vpop.f32.mrb[0].mxu0
        %1848 = vmatprep.mubr.f32.mxu0 0.0
        %1849 = vmatmul.mubr.f32.gmra.mrb[0].mxu0 %v1663
        %v1850 = vpop.f32.mrb[0].mxu0
        %v1851 = vadd.f32 0.0, %v1850
        %v1852 = vpop.f32.mrb[0].mxu0
        %1853 = vmatprep.mubr.f32.mxu0 0.0
        %1854 = vmatmul.mubr.f32.gmra.mrb[0].mxu0 %v1664
        %v1855 = vpop.f32.mrb[0].mxu0
        %v1856 = vadd.f32 0.0, %v1855
        %v1857 = vpop.f32.mrb[0].mxu0
        %1858 = vmatprep.mubr.f32.mxu0 0.0
        %1859 = vmatmul.mubr.f32.gmra.mrb[0].mxu0 %v1665
        %v1860 = vpop.f32.mrb[0].mxu0
        %v1861 = vadd.f32 0.0, %v1860
        %v1862 = vpop.f32.mrb[0].mxu0
        %1863 = vmatprep.mubr.f32.mxu0 0.0
        %1864 = vmatmul.mubr.f32.gmra.mrb[0].mxu0 %v1666
        %v1865 = vpop.f32.mrb[0].mxu0
        %v1866 = vadd.f32 0.0, %v1865
        %v1867 = vpop.f32.mrb[0].mxu0
        %1868 = vmatprep.mubr.f32.mxu0 0.0
        %1869 = vmatmul.mubr.f32.gmra.mrb[0].mxu0 %v1667
        %v1870 = vpop.f32.mrb[0].mxu0
        %v1871 = vadd.f32 0.0, %v1870
        %v1872 = vpop.f32.mrb[0].mxu0
        %1873 = vmatprep.mubr.f32.mxu0 0.0
        %1874 = vmatmul.mubr.f32.gmra.mrb[0].mxu0 %v1668
        %v1875 = vpop.f32.mrb[0].mxu0
        %v1876 = vadd.f32 0.0, %v1875
        %v1877 = vpop.f32.mrb[0].mxu0
        %1878 = vmatprep.mubr.f32.mxu0 0.0
        %1879 = vmatmul.mubr.f32.gmra.mrb[0].mxu0 %v1669
        %v1880 = vpop.f32.mrb[0].mxu0
        %v1881 = vadd.f32 0.0, %v1880
        %v1882 = vpop.f32.mrb[0].mxu0
        %1883 = vmatprep.mubr.f32.mxu0 0.0
        %1884 = vmatmul.mubr.f32.gmra.mrb[0].mxu0 %v1670
        %v1885 = vpop.f32.mrb[0].mxu0
        %v1886 = vadd.f32 0.0, %v1885
        %v1887 = vpop.f32.mrb[0].mxu0
        %1888 = vmatprep.mubr.f32.mxu0 0.0
        %1889 = vmatmul.mubr.f32.gmra.mrb[0].mxu0 %v1671
        %v1890 = vpop.f32.mrb[0].mxu0
        %v1891 = vadd.f32 0.0, %v1890
        %v1892 = vpop.f32.mrb[0].mxu0
        %1893 = vmatprep.mubr.f32.mxu0 0.0
        %1894 = vmatmul.mubr.f32.gmra.mrb[0].mxu0 %v1672
        %v1895 = vpop.f32.mrb[0].mxu0
        %v1896 = vadd.f32 0.0, %v1895
        %v1897 = vpop.f32.mrb[0].mxu0
        %1898 = vmatprep.mubr.f32.mxu0 0.0
        %1899 = vmatmul.mubr.f32.gmra.mrb[0].mxu0 %v1673
        %v1900 = vpop.f32.mrb[0].mxu0
        %v1901 = vadd.f32 0.0, %v1900
        %v1902 = vpop.f32.mrb[0].mxu0
        %1903 = vmatprep.mubr.f32.mxu0 0.0
        %1904 = vmatmul.mubr.f32.gmra.mrb[0].mxu0 %v1674
        %v1905 = vpop.f32.mrb[0].mxu0
        %v1906 = vadd.f32 0.0, %v1905
        %v1907 = vpop.f32.mrb[0].mxu0
        %1908 = vmatprep.mubr.f32.mxu0 0.0
        %1909 = vmatmul.mubr.f32.gmra.mrb[0].mxu0 %v1675
        %v1910 = vpop.f32.mrb[0].mxu0
        %v1911 = vadd.f32 0.0, %v1910
        %v1912 = vpop.f32.mrb[0].mxu0
        %1913 = vmatprep.mubr.f32.mxu0 0.0
        %1914 = vmatmul.mubr.f32.gmra.mrb[0].mxu0 %v1676
        %v1915 = vpop.f32.mrb[0].mxu0
        %v1916 = vadd.f32 0.0, %v1915
        %v1917 = vpop.f32.mrb[0].mxu0
        %1918 = vmatprep.mubr.f32.mxu0 0.0
        %1919 = vmatmul.mubr.f32.gmra.mrb[0].mxu0 %v1677
        %v1920 = vpop.f32.mrb[0].mxu0
        %v1921 = vadd.f32 0.0, %v1920
        %v1922 = vpop.f32.mrb[0].mxu0
        %1923 = vmatprep.mubr.f32.mxu0 0.0
        %1924 = vmatmul.mubr.f32.gmra.mrb[0].mxu0 %v1678
        %v1925 = vpop.f32.mrb[0].mxu0
        %v1926 = vadd.f32 0.0, %v1925
        %v1927 = vpop.f32.mrb[0].mxu0
        %1928 = vmatprep.mubr.f32.mxu0 0.0
        %1929 = vmatmul.mubr.f32.gmra.mrb[0].mxu0 %v1679
        %v1930 = vpop.f32.mrb[0].mxu0
        %v1931 = vadd.f32 0.0, %v1930
        %v1932 = vpop.f32.mrb[0].mxu0
        %1933 = vmatprep.mubr.f32.mxu0 0.0
        %1934 = vmatmul.mubr.f32.gmra.mrb[0].mxu0 %v1680
        %v1935 = vpop.f32.mrb[0].mxu0
        %v1936 = vadd.f32 0.0, %v1935
        %v1937 = vpop.f32.mrb[0].mxu0
        %1938 = vmatprep.mubr.f32.mxu0 0.0
        %1939 = vmatmul.mubr.f32.gmra.mrb[0].mxu0 %v1681
        %v1940 = vpop.f32.mrb[0].mxu0
        %v1941 = vadd.f32 0.0, %v1940
        %v1942 = vpop.f32.mrb[0].mxu0
        %1943 = vmatprep.mubr.f32.mxu0 0.0
        %1944 = vmatmul.mubr.f32.gmra.mrb[0].mxu0 %v1682
        %v1945 = vpop.f32.mrb[0].mxu0
        %v1946 = vadd.f32 0.0, %v1945
        %v1947 = vpop.f32.mrb[0].mxu0
        %1948 = vmatprep.mubr.f32.mxu0 0.0
        %1949 = vmatmul.mubr.f32.gmra.mrb[0].mxu0 %v1683
        %v1950 = vpop.f32.mrb[0].mxu0
        %v1951 = vadd.f32 0.0, %v1950
        %v1952 = vpop.f32.mrb[0].mxu0
        %1953 = vmatprep.mubr.f32.mxu0 0.0
        %1954 = vmatmul.mubr.f32.gmra.mrb[0].mxu0 %v1684
        %v1955 = vpop.f32.mrb[0].mxu0
        %v1956 = vadd.f32 0.0, %v1955
        %v1957 = vpop.f32.mrb[0].mxu0
        %1958 = vdwg.mxu0
        %v1959 = vadd.f32 %v1685, %v1801
        %v1960 = vadd.f32 %v1686, %v1806
        %v1961 = vadd.f32 %v1687, %v1811
        %v1962 = vadd.f32 %v1688, %v1816
        %v1963 = vadd.f32 %v1689, %v1821
        %v1964 = vadd.f32 %v1690, %v1826
        %v1965 = vadd.f32 %v1691, %v1831
        %v1966 = vadd.f32 %v1692, %v1836
        %v1967 = vadd.f32 %v1693, %v1841
        %v1968 = vadd.f32 %v1694, %v1846
        %v1969 = vadd.f32 %v1695, %v1851
        %v1970 = vadd.f32 %v1696, %v1856
        %v1971 = vadd.f32 %v1697, %v1861
        %v1972 = vadd.f32 %v1698, %v1866
        %v1973 = vadd.f32 %v1699, %v1871
        %v1974 = vadd.f32 %v1700, %v1876
        %v1975 = vadd.f32 %v1701, %v1881
        %v1976 = vadd.f32 %v1702, %v1886
        %v1977 = vadd.f32 %v1703, %v1891
        %v1978 = vadd.f32 %v1704, %v1896
        %v1979 = vadd.f32 %v1705, %v1901
        %v1980 = vadd.f32 %v1706, %v1906
        %v1981 = vadd.f32 %v1707, %v1911
        %v1982 = vadd.f32 %v1708, %v1916
        %v1983 = vadd.f32 %v1709, %v1921
        %v1984 = vadd.f32 %v1710, %v1926
        %v1985 = vadd.f32 %v1711, %v1931
        %v1986 = vadd.f32 %v1712, %v1936
        %v1987 = vadd.f32 %v1713, %v1941
        %v1988 = vadd.f32 %v1714, %v1946
        %v1989 = vadd.f32 %v1715, %v1951
        %v1990 = vadd.f32 %v1716, %v1956
        %1991 = vst [vmem:[#allocation3] sm:$0xff] %v1959
        %1992 = vst [vmem:[#allocation3 + $0x8] sm:$0xff] %v1960
        %1993 = vst [vmem:[#allocation3 + $0x10] sm:$0xff] %v1961
        %1994 = vst [vmem:[#allocation3 + $0x18] sm:$0xff] %v1962
        %1995 = vst [vmem:[#allocation3 + $0x20] sm:$0xff] %v1963
        %1996 = vst [vmem:[#allocation3 + $0x28] sm:$0xff] %v1964
        %1997 = vst [vmem:[#allocation3 + $0x30] sm:$0xff] %v1965
        %1998 = vst [vmem:[#allocation3 + $0x38] sm:$0xff] %v1966
        %1999 = vst [vmem:[#allocation3 + $0x40] sm:$0xff] %v1967
        %2000 = vst [vmem:[#allocation3 + $0x48] sm:$0xff] %v1968
        %2001 = vst [vmem:[#allocation3 + $0x50] sm:$0xff] %v1969
        %2002 = vst [vmem:[#allocation3 + $0x58] sm:$0xff] %v1970
        %2003 = vst [vmem:[#allocation3 + $0x60] sm:$0xff] %v1971
        %2004 = vst [vmem:[#allocation3 + $0x68] sm:$0xff] %v1972
        %2005 = vst [vmem:[#allocation3 + $0x70] sm:$0xff] %v1973
        %2006 = vst [vmem:[#allocation3 + $0x78] sm:$0xff] %v1974
        %2007 = vst [vmem:[#allocation3 + $0x80] sm:$0xff] %v1975
        %2008 = vst [vmem:[#allocation3 + $0x88] sm:$0xff] %v1976
        %2009 = vst [vmem:[#allocation3 + $0x90] sm:$0xff] %v1977
        %2010 = vst [vmem:[#allocation3 + $0x98] sm:$0xff] %v1978
        %2011 = vst [vmem:[#allocation3 + $0xa0] sm:$0xff] %v1979
        %2012 = vst [vmem:[#allocation3 + $0xa8] sm:$0xff] %v1980
        %2013 = vst [vmem:[#allocation3 + $0xb0] sm:$0xff] %v1981
        %2014 = vst [vmem:[#allocation3 + $0xb8] sm:$0xff] %v1982
        %2015 = vst [vmem:[#allocation3 + $0xc0] sm:$0xff] %v1983
        %2016 = vst [vmem:[#allocation3 + $0xc8] sm:$0xff] %v1984
        %2017 = vst [vmem:[#allocation3 + $0xd0] sm:$0xff] %v1985
        %2018 = vst [vmem:[#allocation3 + $0xd8] sm:$0xff] %v1986
        %2019 = vst [vmem:[#allocation3 + $0xe0] sm:$0xff] %v1987
        %2020 = vst [vmem:[#allocation3 + $0xe8] sm:$0xff] %v1988
        %2021 = vst [vmem:[#allocation3 + $0xf0] sm:$0xff] %v1989
        %2022 = vst [vmem:[#allocation3 + $0xf8] sm:$0xff] %v1990
        %s2023 = scalar_lea.vmem [#allocation2], 304
        %v2024 = vld [vmem:[%s2023] sm:$0xff]
        %v2025 = vld [vmem:[%s2023 + $0x8] sm:$0xff]
        %v2026 = vld [vmem:[%s2023 + $0x10] sm:$0xff]
        %v2027 = vld [vmem:[%s2023 + $0x18] sm:$0xff]
        %v2028 = vld [vmem:[%s2023 + $0x20] sm:$0xff]
        %v2029 = vld [vmem:[%s2023 + $0x28] sm:$0xff]
        %v2030 = vld [vmem:[%s2023 + $0x30] sm:$0xff]
        %v2031 = vld [vmem:[%s2023 + $0x38] sm:$0xff]
        %v2032 = vld [vmem:[%s2023 + $0x40] sm:$0xff]
        %v2033 = vld [vmem:[%s2023 + $0x48] sm:$0xff]
        %v2034 = vld [vmem:[%s2023 + $0x50] sm:$0xff]
        %v2035 = vld [vmem:[%s2023 + $0x58] sm:$0xff]
        %v2036 = vld [vmem:[%s2023 + $0x60] sm:$0xff]
        %v2037 = vld [vmem:[%s2023 + $0x68] sm:$0xff]
        %v2038 = vld [vmem:[%s2023 + $0x70] sm:$0xff]
        %v2039 = vld [vmem:[%s2023 + $0x78] sm:$0xff]
        %v2040 = vld [vmem:[%s2023 + $0x80] sm:$0xff]
        %v2041 = vld [vmem:[%s2023 + $0x88] sm:$0xff]
        %v2042 = vld [vmem:[%s2023 + $0x90] sm:$0xff]
        %v2043 = vld [vmem:[%s2023 + $0x98] sm:$0xff]
        %v2044 = vld [vmem:[%s2023 + $0xa0] sm:$0xff]
        %v2045 = vld [vmem:[%s2023 + $0xa8] sm:$0xff]
        %v2046 = vld [vmem:[%s2023 + $0xb0] sm:$0xff]
        %v2047 = vld [vmem:[%s2023 + $0xb8] sm:$0xff]
        %v2048 = vld [vmem:[%s2023 + $0xc0] sm:$0xff]
        %v2049 = vld [vmem:[%s2023 + $0xc8] sm:$0xff]
        %v2050 = vld [vmem:[%s2023 + $0xd0] sm:$0xff]
        %v2051 = vld [vmem:[%s2023 + $0xd8] sm:$0xff]
        %v2052 = vld [vmem:[%s2023 + $0xe0] sm:$0xff]
        %v2053 = vld [vmem:[%s2023 + $0xe8] sm:$0xff]
        %v2054 = vld [vmem:[%s2023 + $0xf0] sm:$0xff]
        %v2055 = vld [vmem:[%s2023 + $0xf8] sm:$0xff]
        %v2056 = vld [vmem:[#allocation3] sm:$0xff]
        %v2057 = vld [vmem:[#allocation3 + $0x8] sm:$0xff]
        %v2058 = vld [vmem:[#allocation3 + $0x10] sm:$0xff]
        %v2059 = vld [vmem:[#allocation3 + $0x18] sm:$0xff]
        %v2060 = vld [vmem:[#allocation3 + $0x20] sm:$0xff]
        %v2061 = vld [vmem:[#allocation3 + $0x28] sm:$0xff]
        %v2062 = vld [vmem:[#allocation3 + $0x30] sm:$0xff]
        %v2063 = vld [vmem:[#allocation3 + $0x38] sm:$0xff]
        %v2064 = vld [vmem:[#allocation3 + $0x40] sm:$0xff]
        %v2065 = vld [vmem:[#allocation3 + $0x48] sm:$0xff]
        %v2066 = vld [vmem:[#allocation3 + $0x50] sm:$0xff]
        %v2067 = vld [vmem:[#allocation3 + $0x58] sm:$0xff]
        %v2068 = vld [vmem:[#allocation3 + $0x60] sm:$0xff]
        %v2069 = vld [vmem:[#allocation3 + $0x68] sm:$0xff]
        %v2070 = vld [vmem:[#allocation3 + $0x70] sm:$0xff]
        %v2071 = vld [vmem:[#allocation3 + $0x78] sm:$0xff]
        %v2072 = vld [vmem:[#allocation3 + $0x80] sm:$0xff]
        %v2073 = vld [vmem:[#allocation3 + $0x88] sm:$0xff]
        %v2074 = vld [vmem:[#allocation3 + $0x90] sm:$0xff]
        %v2075 = vld [vmem:[#allocation3 + $0x98] sm:$0xff]
        %v2076 = vld [vmem:[#allocation3 + $0xa0] sm:$0xff]
        %v2077 = vld [vmem:[#allocation3 + $0xa8] sm:$0xff]
        %v2078 = vld [vmem:[#allocation3 + $0xb0] sm:$0xff]
        %v2079 = vld [vmem:[#allocation3 + $0xb8] sm:$0xff]
        %v2080 = vld [vmem:[#allocation3 + $0xc0] sm:$0xff]
        %v2081 = vld [vmem:[#allocation3 + $0xc8] sm:$0xff]
        %v2082 = vld [vmem:[#allocation3 + $0xd0] sm:$0xff]
        %v2083 = vld [vmem:[#allocation3 + $0xd8] sm:$0xff]
        %v2084 = vld [vmem:[#allocation3 + $0xe0] sm:$0xff]
        %v2085 = vld [vmem:[#allocation3 + $0xe8] sm:$0xff]
        %v2086 = vld [vmem:[#allocation3 + $0xf0] sm:$0xff]
        %v2087 = vld [vmem:[#allocation3 + $0xf8] sm:$0xff]
        %s2088 = scalar_lea.vmem %s2, 512
        %v2089 = vld [vmem:[%s2088] sm:$0xff]
        %v2090 = vld [vmem:[%s2088 + $0x8] sm:$0xff]
        %v2091 = vld [vmem:[%s2088 + $0x10] sm:$0xff]
        %v2092 = vld [vmem:[%s2088 + $0x18] sm:$0xff]
        %v2093 = vld [vmem:[%s2088 + $0x20] sm:$0xff]
        %v2094 = vld [vmem:[%s2088 + $0x28] sm:$0xff]
        %v2095 = vld [vmem:[%s2088 + $0x30] sm:$0xff]
        %v2096 = vld [vmem:[%s2088 + $0x38] sm:$0xff]
        %v2097 = vld [vmem:[%s2088 + $0x40] sm:$0xff]
        %v2098 = vld [vmem:[%s2088 + $0x48] sm:$0xff]
        %v2099 = vld [vmem:[%s2088 + $0x50] sm:$0xff]
        %v2100 = vld [vmem:[%s2088 + $0x58] sm:$0xff]
        %v2101 = vld [vmem:[%s2088 + $0x60] sm:$0xff]
        %v2102 = vld [vmem:[%s2088 + $0x68] sm:$0xff]
        %v2103 = vld [vmem:[%s2088 + $0x70] sm:$0xff]
        %v2104 = vld [vmem:[%s2088 + $0x78] sm:$0xff]
        %2105 = vmatprep.subr.mxu0 0.0
        %2106 = vmatpush1.msra.mxu0 %v2089
        %2107 = vmatprep.subr.mxu0 0.0
        %2108 = vmatpush1.msra.mxu0 %v2090
        %2109 = vmatprep.subr.mxu0 0.0
        %2110 = vmatpush1.msra.mxu0 %v2091
        %2111 = vmatprep.subr.mxu0 0.0
        %2112 = vmatpush1.msra.mxu0 %v2092
        %2113 = vmatprep.subr.mxu0 0.0
        %2114 = vmatpush1.msra.mxu0 %v2093
        %2115 = vmatprep.subr.mxu0 0.0
        %2116 = vmatpush1.msra.mxu0 %v2094
        %2117 = vmatprep.subr.mxu0 0.0
        %2118 = vmatpush1.msra.mxu0 %v2095
        %2119 = vmatprep.subr.mxu0 0.0
        %2120 = vmatpush1.msra.mxu0 %v2096
        %2121 = vmatprep.subr.mxu0 0.0
        %2122 = vmatpush1.msra.mxu0 %v2097
        %2123 = vmatprep.subr.mxu0 0.0
        %2124 = vmatpush1.msra.mxu0 %v2098
        %2125 = vmatprep.subr.mxu0 0.0
        %2126 = vmatpush1.msra.mxu0 %v2099
        %2127 = vmatprep.subr.mxu0 0.0
        %2128 = vmatpush1.msra.mxu0 %v2100
        %2129 = vmatprep.subr.mxu0 0.0
        %2130 = vmatpush1.msra.mxu0 %v2101
        %2131 = vmatprep.subr.mxu0 0.0
        %2132 = vmatpush1.msra.mxu0 %v2102
        %2133 = vmatprep.subr.mxu0 0.0
        %2134 = vmatpush1.msra.mxu0 %v2103
        %2135 = vmatprep.subr.mxu0 0.0
        %2136 = vmatpush1.msra.mxu0 %v2104
        %2137 = vmatprep.subr.mxu0 0.0
        %2138 = vmatpush1.msra.mxu0 0.0
        %2139 = vmatprep.subr.mxu0 0.0
        %2140 = vmatpush1.msra.mxu0 0.0
        %2141 = vmatprep.subr.mxu0 0.0
        %2142 = vmatpush1.msra.mxu0 0.0
        %2143 = vmatprep.subr.mxu0 0.0
        %2144 = vmatpush1.msra.mxu0 0.0
        %2145 = vmatprep.subr.mxu0 0.0
        %2146 = vmatpush1.msra.mxu0 0.0
        %2147 = vmatprep.subr.mxu0 0.0
        %2148 = vmatpush1.msra.mxu0 0.0
        %2149 = vmatprep.subr.mxu0 0.0
        %2150 = vmatpush1.msra.mxu0 0.0
        %2151 = vmatprep.subr.mxu0 0.0
        %2152 = vmatpush1.msra.mxu0 0.0
        %2153 = vmatprep.subr.mxu0 0.0
        %2154 = vmatpush1.msra.mxu0 0.0
        %2155 = vmatprep.subr.mxu0 0.0
        %2156 = vmatpush1.msra.mxu0 0.0
        %2157 = vmatprep.subr.mxu0 0.0
        %2158 = vmatpush1.msra.mxu0 0.0
        %2159 = vmatprep.subr.mxu0 0.0
        %2160 = vmatpush1.msra.mxu0 0.0
        %2161 = vmatprep.subr.mxu0 0.0
        %2162 = vmatpush1.msra.mxu0 0.0
        %2163 = vmatprep.subr.mxu0 0.0
        %2164 = vmatpush1.msra.mxu0 0.0
        %2165 = vmatprep.subr.mxu0 0.0
        %2166 = vmatpush1.msra.mxu0 0.0
        %2167 = vmatprep.subr.mxu0 0.0
        %2168 = vmatpush1.msra.mxu0 0.0
        %2169 = vmatprep.mubr.f32.mxu0 0.0
        %2170 = vmatmul.mubr.f32.gmra.mrb[0].mxu0 %v2024
        %v2171 = vpop.f32.mrb[0].mxu0
        %v2172 = vadd.f32 0.0, %v2171
        %v2173 = vpop.f32.mrb[0].mxu0
        %2174 = vmatprep.mubr.f32.mxu0 0.0
        %2175 = vmatmul.mubr.f32.gmra.mrb[0].mxu0 %v2025
        %v2176 = vpop.f32.mrb[0].mxu0
        %v2177 = vadd.f32 0.0, %v2176
        %v2178 = vpop.f32.mrb[0].mxu0
        %2179 = vmatprep.mubr.f32.mxu0 0.0
        %2180 = vmatmul.mubr.f32.gmra.mrb[0].mxu0 %v2026
        %v2181 = vpop.f32.mrb[0].mxu0
        %v2182 = vadd.f32 0.0, %v2181
        %v2183 = vpop.f32.mrb[0].mxu0
        %2184 = vmatprep.mubr.f32.mxu0 0.0
        %2185 = vmatmul.mubr.f32.gmra.mrb[0].mxu0 %v2027
        %v2186 = vpop.f32.mrb[0].mxu0
        %v2187 = vadd.f32 0.0, %v2186
        %v2188 = vpop.f32.mrb[0].mxu0
        %2189 = vmatprep.mubr.f32.mxu0 0.0
        %2190 = vmatmul.mubr.f32.gmra.mrb[0].mxu0 %v2028
        %v2191 = vpop.f32.mrb[0].mxu0
        %v2192 = vadd.f32 0.0, %v2191
        %v2193 = vpop.f32.mrb[0].mxu0
        %2194 = vmatprep.mubr.f32.mxu0 0.0
        %2195 = vmatmul.mubr.f32.gmra.mrb[0].mxu0 %v2029
        %v2196 = vpop.f32.mrb[0].mxu0
        %v2197 = vadd.f32 0.0, %v2196
        %v2198 = vpop.f32.mrb[0].mxu0
        %2199 = vmatprep.mubr.f32.mxu0 0.0
        %2200 = vmatmul.mubr.f32.gmra.mrb[0].mxu0 %v2030
        %v2201 = vpop.f32.mrb[0].mxu0
        %v2202 = vadd.f32 0.0, %v2201
        %v2203 = vpop.f32.mrb[0].mxu0
        %2204 = vmatprep.mubr.f32.mxu0 0.0
        %2205 = vmatmul.mubr.f32.gmra.mrb[0].mxu0 %v2031
        %v2206 = vpop.f32.mrb[0].mxu0
        %v2207 = vadd.f32 0.0, %v2206
        %v2208 = vpop.f32.mrb[0].mxu0
        %2209 = vmatprep.mubr.f32.mxu0 0.0
        %2210 = vmatmul.mubr.f32.gmra.mrb[0].mxu0 %v2032
        %v2211 = vpop.f32.mrb[0].mxu0
        %v2212 = vadd.f32 0.0, %v2211
        %v2213 = vpop.f32.mrb[0].mxu0
        %2214 = vmatprep.mubr.f32.mxu0 0.0
        %2215 = vmatmul.mubr.f32.gmra.mrb[0].mxu0 %v2033
        %v2216 = vpop.f32.mrb[0].mxu0
        %v2217 = vadd.f32 0.0, %v2216
        %v2218 = vpop.f32.mrb[0].mxu0
        %2219 = vmatprep.mubr.f32.mxu0 0.0
        %2220 = vmatmul.mubr.f32.gmra.mrb[0].mxu0 %v2034
        %v2221 = vpop.f32.mrb[0].mxu0
        %v2222 = vadd.f32 0.0, %v2221
        %v2223 = vpop.f32.mrb[0].mxu0
        %2224 = vmatprep.mubr.f32.mxu0 0.0
        %2225 = vmatmul.mubr.f32.gmra.mrb[0].mxu0 %v2035
        %v2226 = vpop.f32.mrb[0].mxu0
        %v2227 = vadd.f32 0.0, %v2226
        %v2228 = vpop.f32.mrb[0].mxu0
        %2229 = vmatprep.mubr.f32.mxu0 0.0
        %2230 = vmatmul.mubr.f32.gmra.mrb[0].mxu0 %v2036
        %v2231 = vpop.f32.mrb[0].mxu0
        %v2232 = vadd.f32 0.0, %v2231
        %v2233 = vpop.f32.mrb[0].mxu0
        %2234 = vmatprep.mubr.f32.mxu0 0.0
        %2235 = vmatmul.mubr.f32.gmra.mrb[0].mxu0 %v2037
        %v2236 = vpop.f32.mrb[0].mxu0
        %v2237 = vadd.f32 0.0, %v2236
        %v2238 = vpop.f32.mrb[0].mxu0
        %2239 = vmatprep.mubr.f32.mxu0 0.0
        %2240 = vmatmul.mubr.f32.gmra.mrb[0].mxu0 %v2038
        %v2241 = vpop.f32.mrb[0].mxu0
        %v2242 = vadd.f32 0.0, %v2241
        %v2243 = vpop.f32.mrb[0].mxu0
        %2244 = vmatprep.mubr.f32.mxu0 0.0
        %2245 = vmatmul.mubr.f32.gmra.mrb[0].mxu0 %v2039
        %v2246 = vpop.f32.mrb[0].mxu0
        %v2247 = vadd.f32 0.0, %v2246
        %v2248 = vpop.f32.mrb[0].mxu0
        %2249 = vmatprep.mubr.f32.mxu0 0.0
        %2250 = vmatmul.mubr.f32.gmra.mrb[0].mxu0 %v2040
        %v2251 = vpop.f32.mrb[0].mxu0
        %v2252 = vadd.f32 0.0, %v2251
        %v2253 = vpop.f32.mrb[0].mxu0
        %2254 = vmatprep.mubr.f32.mxu0 0.0
        %2255 = vmatmul.mubr.f32.gmra.mrb[0].mxu0 %v2041
        %v2256 = vpop.f32.mrb[0].mxu0
        %v2257 = vadd.f32 0.0, %v2256
        %v2258 = vpop.f32.mrb[0].mxu0
        %2259 = vmatprep.mubr.f32.mxu0 0.0
        %2260 = vmatmul.mubr.f32.gmra.mrb[0].mxu0 %v2042
        %v2261 = vpop.f32.mrb[0].mxu0
        %v2262 = vadd.f32 0.0, %v2261
        %v2263 = vpop.f32.mrb[0].mxu0
        %2264 = vmatprep.mubr.f32.mxu0 0.0
        %2265 = vmatmul.mubr.f32.gmra.mrb[0].mxu0 %v2043
        %v2266 = vpop.f32.mrb[0].mxu0
        %v2267 = vadd.f32 0.0, %v2266
        %v2268 = vpop.f32.mrb[0].mxu0
        %2269 = vmatprep.mubr.f32.mxu0 0.0
        %2270 = vmatmul.mubr.f32.gmra.mrb[0].mxu0 %v2044
        %v2271 = vpop.f32.mrb[0].mxu0
        %v2272 = vadd.f32 0.0, %v2271
        %v2273 = vpop.f32.mrb[0].mxu0
        %2274 = vmatprep.mubr.f32.mxu0 0.0
        %2275 = vmatmul.mubr.f32.gmra.mrb[0].mxu0 %v2045
        %v2276 = vpop.f32.mrb[0].mxu0
        %v2277 = vadd.f32 0.0, %v2276
        %v2278 = vpop.f32.mrb[0].mxu0
        %2279 = vmatprep.mubr.f32.mxu0 0.0
        %2280 = vmatmul.mubr.f32.gmra.mrb[0].mxu0 %v2046
        %v2281 = vpop.f32.mrb[0].mxu0
        %v2282 = vadd.f32 0.0, %v2281
        %v2283 = vpop.f32.mrb[0].mxu0
        %2284 = vmatprep.mubr.f32.mxu0 0.0
        %2285 = vmatmul.mubr.f32.gmra.mrb[0].mxu0 %v2047
        %v2286 = vpop.f32.mrb[0].mxu0
        %v2287 = vadd.f32 0.0, %v2286
        %v2288 = vpop.f32.mrb[0].mxu0
        %2289 = vmatprep.mubr.f32.mxu0 0.0
        %2290 = vmatmul.mubr.f32.gmra.mrb[0].mxu0 %v2048
        %v2291 = vpop.f32.mrb[0].mxu0
        %v2292 = vadd.f32 0.0, %v2291
        %v2293 = vpop.f32.mrb[0].mxu0
        %2294 = vmatprep.mubr.f32.mxu0 0.0
        %2295 = vmatmul.mubr.f32.gmra.mrb[0].mxu0 %v2049
        %v2296 = vpop.f32.mrb[0].mxu0
        %v2297 = vadd.f32 0.0, %v2296
        %v2298 = vpop.f32.mrb[0].mxu0
        %2299 = vmatprep.mubr.f32.mxu0 0.0
        %2300 = vmatmul.mubr.f32.gmra.mrb[0].mxu0 %v2050
        %v2301 = vpop.f32.mrb[0].mxu0
        %v2302 = vadd.f32 0.0, %v2301
        %v2303 = vpop.f32.mrb[0].mxu0
        %2304 = vmatprep.mubr.f32.mxu0 0.0
        %2305 = vmatmul.mubr.f32.gmra.mrb[0].mxu0 %v2051
        %v2306 = vpop.f32.mrb[0].mxu0
        %v2307 = vadd.f32 0.0, %v2306
        %v2308 = vpop.f32.mrb[0].mxu0
        %2309 = vmatprep.mubr.f32.mxu0 0.0
        %2310 = vmatmul.mubr.f32.gmra.mrb[0].mxu0 %v2052
        %v2311 = vpop.f32.mrb[0].mxu0
        %v2312 = vadd.f32 0.0, %v2311
        %v2313 = vpop.f32.mrb[0].mxu0
        %2314 = vmatprep.mubr.f32.mxu0 0.0
        %2315 = vmatmul.mubr.f32.gmra.mrb[0].mxu0 %v2053
        %v2316 = vpop.f32.mrb[0].mxu0
        %v2317 = vadd.f32 0.0, %v2316
        %v2318 = vpop.f32.mrb[0].mxu0
        %2319 = vmatprep.mubr.f32.mxu0 0.0
        %2320 = vmatmul.mubr.f32.gmra.mrb[0].mxu0 %v2054
        %v2321 = vpop.f32.mrb[0].mxu0
        %v2322 = vadd.f32 0.0, %v2321
        %v2323 = vpop.f32.mrb[0].mxu0
        %2324 = vmatprep.mubr.f32.mxu0 0.0
        %2325 = vmatmul.mubr.f32.gmra.mrb[0].mxu0 %v2055
        %v2326 = vpop.f32.mrb[0].mxu0
        %v2327 = vadd.f32 0.0, %v2326
        %v2328 = vpop.f32.mrb[0].mxu0
        %2329 = vdwg.mxu0
        %v2330 = vadd.f32 %v2056, %v2172
        %v2331 = vadd.f32 %v2057, %v2177
        %v2332 = vadd.f32 %v2058, %v2182
        %v2333 = vadd.f32 %v2059, %v2187
        %v2334 = vadd.f32 %v2060, %v2192
        %v2335 = vadd.f32 %v2061, %v2197
        %v2336 = vadd.f32 %v2062, %v2202
        %v2337 = vadd.f32 %v2063, %v2207
        %v2338 = vadd.f32 %v2064, %v2212
        %v2339 = vadd.f32 %v2065, %v2217
        %v2340 = vadd.f32 %v2066, %v2222
        %v2341 = vadd.f32 %v2067, %v2227
        %v2342 = vadd.f32 %v2068, %v2232
        %v2343 = vadd.f32 %v2069, %v2237
        %v2344 = vadd.f32 %v2070, %v2242
        %v2345 = vadd.f32 %v2071, %v2247
        %v2346 = vadd.f32 %v2072, %v2252
        %v2347 = vadd.f32 %v2073, %v2257
        %v2348 = vadd.f32 %v2074, %v2262
        %v2349 = vadd.f32 %v2075, %v2267
        %v2350 = vadd.f32 %v2076, %v2272
        %v2351 = vadd.f32 %v2077, %v2277
        %v2352 = vadd.f32 %v2078, %v2282
        %v2353 = vadd.f32 %v2079, %v2287
        %v2354 = vadd.f32 %v2080, %v2292
        %v2355 = vadd.f32 %v2081, %v2297
        %v2356 = vadd.f32 %v2082, %v2302
        %v2357 = vadd.f32 %v2083, %v2307
        %v2358 = vadd.f32 %v2084, %v2312
        %v2359 = vadd.f32 %v2085, %v2317
        %v2360 = vadd.f32 %v2086, %v2322
        %v2361 = vadd.f32 %v2087, %v2327
        %2362 = vst [vmem:[#allocation3] sm:$0xff] %v2330
        %2363 = vst [vmem:[#allocation3 + $0x8] sm:$0xff] %v2331
        %2364 = vst [vmem:[#allocation3 + $0x10] sm:$0xff] %v2332
        %2365 = vst [vmem:[#allocation3 + $0x18] sm:$0xff] %v2333
        %2366 = vst [vmem:[#allocation3 + $0x20] sm:$0xff] %v2334
        %2367 = vst [vmem:[#allocation3 + $0x28] sm:$0xff] %v2335
        %2368 = vst [vmem:[#allocation3 + $0x30] sm:$0xff] %v2336
        %2369 = vst [vmem:[#allocation3 + $0x38] sm:$0xff] %v2337
        %2370 = vst [vmem:[#allocation3 + $0x40] sm:$0xff] %v2338
        %2371 = vst [vmem:[#allocation3 + $0x48] sm:$0xff] %v2339
        %2372 = vst [vmem:[#allocation3 + $0x50] sm:$0xff] %v2340
        %2373 = vst [vmem:[#allocation3 + $0x58] sm:$0xff] %v2341
        %2374 = vst [vmem:[#allocation3 + $0x60] sm:$0xff] %v2342
        %2375 = vst [vmem:[#allocation3 + $0x68] sm:$0xff] %v2343
        %2376 = vst [vmem:[#allocation3 + $0x70] sm:$0xff] %v2344
        %2377 = vst [vmem:[#allocation3 + $0x78] sm:$0xff] %v2345
        %2378 = vst [vmem:[#allocation3 + $0x80] sm:$0xff] %v2346
        %2379 = vst [vmem:[#allocation3 + $0x88] sm:$0xff] %v2347
        %2380 = vst [vmem:[#allocation3 + $0x90] sm:$0xff] %v2348
        %2381 = vst [vmem:[#allocation3 + $0x98] sm:$0xff] %v2349
        %2382 = vst [vmem:[#allocation3 + $0xa0] sm:$0xff] %v2350
        %2383 = vst [vmem:[#allocation3 + $0xa8] sm:$0xff] %v2351
        %2384 = vst [vmem:[#allocation3 + $0xb0] sm:$0xff] %v2352
        %2385 = vst [vmem:[#allocation3 + $0xb8] sm:$0xff] %v2353
        %2386 = vst [vmem:[#allocation3 + $0xc0] sm:$0xff] %v2354
        %2387 = vst [vmem:[#allocation3 + $0xc8] sm:$0xff] %v2355
        %2388 = vst [vmem:[#allocation3 + $0xd0] sm:$0xff] %v2356
        %2389 = vst [vmem:[#allocation3 + $0xd8] sm:$0xff] %v2357
        %2390 = vst [vmem:[#allocation3 + $0xe0] sm:$0xff] %v2358
        %2391 = vst [vmem:[#allocation3 + $0xe8] sm:$0xff] %v2359
        %2392 = vst [vmem:[#allocation3 + $0xf0] sm:$0xff] %v2360
        %2393 = vst [vmem:[#allocation3 + $0xf8] sm:$0xff] %v2361
        %s2394 = scalar_lea.vmem [#allocation2], 592
        %v2395 = vld [vmem:[%s2394] sm:$0xff]
        %v2396 = vld [vmem:[%s2394 + $0x8] sm:$0xff]
        %v2397 = vld [vmem:[%s2394 + $0x10] sm:$0xff]
        %v2398 = vld [vmem:[%s2394 + $0x18] sm:$0xff]
        %v2399 = vld [vmem:[%s2394 + $0x20] sm:$0xff]
        %v2400 = vld [vmem:[%s2394 + $0x28] sm:$0xff]
        %v2401 = vld [vmem:[%s2394 + $0x30] sm:$0xff]
        %v2402 = vld [vmem:[%s2394 + $0x38] sm:$0xff]
        %v2403 = vld [vmem:[%s2394 + $0x40] sm:$0xff]
        %v2404 = vld [vmem:[%s2394 + $0x48] sm:$0xff]
        %v2405 = vld [vmem:[%s2394 + $0x50] sm:$0xff]
        %v2406 = vld [vmem:[%s2394 + $0x58] sm:$0xff]
        %v2407 = vld [vmem:[%s2394 + $0x60] sm:$0xff]
        %v2408 = vld [vmem:[%s2394 + $0x68] sm:$0xff]
        %v2409 = vld [vmem:[%s2394 + $0x70] sm:$0xff]
        %v2410 = vld [vmem:[%s2394 + $0x78] sm:$0xff]
        %v2411 = vld [vmem:[%s2394 + $0x80] sm:$0xff]
        %v2412 = vld [vmem:[%s2394 + $0x88] sm:$0xff]
        %v2413 = vld [vmem:[%s2394 + $0x90] sm:$0xff]
        %v2414 = vld [vmem:[%s2394 + $0x98] sm:$0xff]
        %v2415 = vld [vmem:[%s2394 + $0xa0] sm:$0xff]
        %v2416 = vld [vmem:[%s2394 + $0xa8] sm:$0xff]
        %v2417 = vld [vmem:[%s2394 + $0xb0] sm:$0xff]
        %v2418 = vld [vmem:[%s2394 + $0xb8] sm:$0xff]
        %v2419 = vld [vmem:[%s2394 + $0xc0] sm:$0xff]
        %v2420 = vld [vmem:[%s2394 + $0xc8] sm:$0xff]
        %v2421 = vld [vmem:[%s2394 + $0xd0] sm:$0xff]
        %v2422 = vld [vmem:[%s2394 + $0xd8] sm:$0xff]
        %v2423 = vld [vmem:[%s2394 + $0xe0] sm:$0xff]
        %v2424 = vld [vmem:[%s2394 + $0xe8] sm:$0xff]
        %v2425 = vld [vmem:[%s2394 + $0xf0] sm:$0xff]
        %v2426 = vld [vmem:[%s2394 + $0xf8] sm:$0xff]
        %v2427 = vld [vmem:[#allocation3] sm:$0xff]
        %v2428 = vld [vmem:[#allocation3 + $0x8] sm:$0xff]
        %v2429 = vld [vmem:[#allocation3 + $0x10] sm:$0xff]
        %v2430 = vld [vmem:[#allocation3 + $0x18] sm:$0xff]
        %v2431 = vld [vmem:[#allocation3 + $0x20] sm:$0xff]
        %v2432 = vld [vmem:[#allocation3 + $0x28] sm:$0xff]
        %v2433 = vld [vmem:[#allocation3 + $0x30] sm:$0xff]
        %v2434 = vld [vmem:[#allocation3 + $0x38] sm:$0xff]
        %v2435 = vld [vmem:[#allocation3 + $0x40] sm:$0xff]
        %v2436 = vld [vmem:[#allocation3 + $0x48] sm:$0xff]
        %v2437 = vld [vmem:[#allocation3 + $0x50] sm:$0xff]
        %v2438 = vld [vmem:[#allocation3 + $0x58] sm:$0xff]
        %v2439 = vld [vmem:[#allocation3 + $0x60] sm:$0xff]
        %v2440 = vld [vmem:[#allocation3 + $0x68] sm:$0xff]
        %v2441 = vld [vmem:[#allocation3 + $0x70] sm:$0xff]
        %v2442 = vld [vmem:[#allocation3 + $0x78] sm:$0xff]
        %v2443 = vld [vmem:[#allocation3 + $0x80] sm:$0xff]
        %v2444 = vld [vmem:[#allocation3 + $0x88] sm:$0xff]
        %v2445 = vld [vmem:[#allocation3 + $0x90] sm:$0xff]
        %v2446 = vld [vmem:[#allocation3 + $0x98] sm:$0xff]
        %v2447 = vld [vmem:[#allocation3 + $0xa0] sm:$0xff]
        %v2448 = vld [vmem:[#allocation3 + $0xa8] sm:$0xff]
        %v2449 = vld [vmem:[#allocation3 + $0xb0] sm:$0xff]
        %v2450 = vld [vmem:[#allocation3 + $0xb8] sm:$0xff]
        %v2451 = vld [vmem:[#allocation3 + $0xc0] sm:$0xff]
        %v2452 = vld [vmem:[#allocation3 + $0xc8] sm:$0xff]
        %v2453 = vld [vmem:[#allocation3 + $0xd0] sm:$0xff]
        %v2454 = vld [vmem:[#allocation3 + $0xd8] sm:$0xff]
        %v2455 = vld [vmem:[#allocation3 + $0xe0] sm:$0xff]
        %v2456 = vld [vmem:[#allocation3 + $0xe8] sm:$0xff]
        %v2457 = vld [vmem:[#allocation3 + $0xf0] sm:$0xff]
        %v2458 = vld [vmem:[#allocation3 + $0xf8] sm:$0xff]
        %s2459 = scalar_lea.vmem %s2, 640
        %v2460 = vld [vmem:[%s2459] sm:$0xff]
        %v2461 = vld [vmem:[%s2459 + $0x8] sm:$0xff]
        %v2462 = vld [vmem:[%s2459 + $0x10] sm:$0xff]
        %v2463 = vld [vmem:[%s2459 + $0x18] sm:$0xff]
        %v2464 = vld [vmem:[%s2459 + $0x20] sm:$0xff]
        %v2465 = vld [vmem:[%s2459 + $0x28] sm:$0xff]
        %v2466 = vld [vmem:[%s2459 + $0x30] sm:$0xff]
        %v2467 = vld [vmem:[%s2459 + $0x38] sm:$0xff]
        %v2468 = vld [vmem:[%s2459 + $0x40] sm:$0xff]
        %v2469 = vld [vmem:[%s2459 + $0x48] sm:$0xff]
        %v2470 = vld [vmem:[%s2459 + $0x50] sm:$0xff]
        %v2471 = vld [vmem:[%s2459 + $0x58] sm:$0xff]
        %v2472 = vld [vmem:[%s2459 + $0x60] sm:$0xff]
        %v2473 = vld [vmem:[%s2459 + $0x68] sm:$0xff]
        %v2474 = vld [vmem:[%s2459 + $0x70] sm:$0xff]
        %v2475 = vld [vmem:[%s2459 + $0x78] sm:$0xff]
        %2476 = vmatprep.subr.mxu0 0.0
        %2477 = vmatpush1.msra.mxu0 %v2460
        %2478 = vmatprep.subr.mxu0 0.0
        %2479 = vmatpush1.msra.mxu0 %v2461
        %2480 = vmatprep.subr.mxu0 0.0
        %2481 = vmatpush1.msra.mxu0 %v2462
        %2482 = vmatprep.subr.mxu0 0.0
        %2483 = vmatpush1.msra.mxu0 %v2463
        %2484 = vmatprep.subr.mxu0 0.0
        %2485 = vmatpush1.msra.mxu0 %v2464
        %2486 = vmatprep.subr.mxu0 0.0
        %2487 = vmatpush1.msra.mxu0 %v2465
        %2488 = vmatprep.subr.mxu0 0.0
        %2489 = vmatpush1.msra.mxu0 %v2466
        %2490 = vmatprep.subr.mxu0 0.0
        %2491 = vmatpush1.msra.mxu0 %v2467
        %2492 = vmatprep.subr.mxu0 0.0
        %2493 = vmatpush1.msra.mxu0 %v2468
        %2494 = vmatprep.subr.mxu0 0.0
        %2495 = vmatpush1.msra.mxu0 %v2469
        %2496 = vmatprep.subr.mxu0 0.0
        %2497 = vmatpush1.msra.mxu0 %v2470
        %2498 = vmatprep.subr.mxu0 0.0
        %2499 = vmatpush1.msra.mxu0 %v2471
        %2500 = vmatprep.subr.mxu0 0.0
        %2501 = vmatpush1.msra.mxu0 %v2472
        %2502 = vmatprep.subr.mxu0 0.0
        %2503 = vmatpush1.msra.mxu0 %v2473
        %2504 = vmatprep.subr.mxu0 0.0
        %2505 = vmatpush1.msra.mxu0 %v2474
        %2506 = vmatprep.subr.mxu0 0.0
        %2507 = vmatpush1.msra.mxu0 %v2475
        %2508 = vmatprep.subr.mxu0 0.0
        %2509 = vmatpush1.msra.mxu0 0.0
        %2510 = vmatprep.subr.mxu0 0.0
        %2511 = vmatpush1.msra.mxu0 0.0
        %2512 = vmatprep.subr.mxu0 0.0
        %2513 = vmatpush1.msra.mxu0 0.0
        %2514 = vmatprep.subr.mxu0 0.0
        %2515 = vmatpush1.msra.mxu0 0.0
        %2516 = vmatprep.subr.mxu0 0.0
        %2517 = vmatpush1.msra.mxu0 0.0
        %2518 = vmatprep.subr.mxu0 0.0
        %2519 = vmatpush1.msra.mxu0 0.0
        %2520 = vmatprep.subr.mxu0 0.0
        %2521 = vmatpush1.msra.mxu0 0.0
        %2522 = vmatprep.subr.mxu0 0.0
        %2523 = vmatpush1.msra.mxu0 0.0
        %2524 = vmatprep.subr.mxu0 0.0
        %2525 = vmatpush1.msra.mxu0 0.0
        %2526 = vmatprep.subr.mxu0 0.0
        %2527 = vmatpush1.msra.mxu0 0.0
        %2528 = vmatprep.subr.mxu0 0.0
        %2529 = vmatpush1.msra.mxu0 0.0
        %2530 = vmatprep.subr.mxu0 0.0
        %2531 = vmatpush1.msra.mxu0 0.0
        %2532 = vmatprep.subr.mxu0 0.0
        %2533 = vmatpush1.msra.mxu0 0.0
        %2534 = vmatprep.subr.mxu0 0.0
        %2535 = vmatpush1.msra.mxu0 0.0
        %2536 = vmatprep.subr.mxu0 0.0
        %2537 = vmatpush1.msra.mxu0 0.0
        %2538 = vmatprep.subr.mxu0 0.0
        %2539 = vmatpush1.msra.mxu0 0.0
        %2540 = vmatprep.mubr.f32.mxu0 0.0
        %2541 = vmatmul.mubr.f32.gmra.mrb[0].mxu0 %v2395
        %v2542 = vpop.f32.mrb[0].mxu0
        %v2543 = vadd.f32 0.0, %v2542
        %v2544 = vpop.f32.mrb[0].mxu0
        %2545 = vmatprep.mubr.f32.mxu0 0.0
        %2546 = vmatmul.mubr.f32.gmra.mrb[0].mxu0 %v2396
        %v2547 = vpop.f32.mrb[0].mxu0
        %v2548 = vadd.f32 0.0, %v2547
        %v2549 = vpop.f32.mrb[0].mxu0
        %2550 = vmatprep.mubr.f32.mxu0 0.0
        %2551 = vmatmul.mubr.f32.gmra.mrb[0].mxu0 %v2397
        %v2552 = vpop.f32.mrb[0].mxu0
        %v2553 = vadd.f32 0.0, %v2552
        %v2554 = vpop.f32.mrb[0].mxu0
        %2555 = vmatprep.mubr.f32.mxu0 0.0
        %2556 = vmatmul.mubr.f32.gmra.mrb[0].mxu0 %v2398
        %v2557 = vpop.f32.mrb[0].mxu0
        %v2558 = vadd.f32 0.0, %v2557
        %v2559 = vpop.f32.mrb[0].mxu0
        %2560 = vmatprep.mubr.f32.mxu0 0.0
        %2561 = vmatmul.mubr.f32.gmra.mrb[0].mxu0 %v2399
        %v2562 = vpop.f32.mrb[0].mxu0
        %v2563 = vadd.f32 0.0, %v2562
        %v2564 = vpop.f32.mrb[0].mxu0
        %2565 = vmatprep.mubr.f32.mxu0 0.0
        %2566 = vmatmul.mubr.f32.gmra.mrb[0].mxu0 %v2400
        %v2567 = vpop.f32.mrb[0].mxu0
        %v2568 = vadd.f32 0.0, %v2567
        %v2569 = vpop.f32.mrb[0].mxu0
        %2570 = vmatprep.mubr.f32.mxu0 0.0
        %2571 = vmatmul.mubr.f32.gmra.mrb[0].mxu0 %v2401
        %v2572 = vpop.f32.mrb[0].mxu0
        %v2573 = vadd.f32 0.0, %v2572
        %v2574 = vpop.f32.mrb[0].mxu0
        %2575 = vmatprep.mubr.f32.mxu0 0.0
        %2576 = vmatmul.mubr.f32.gmra.mrb[0].mxu0 %v2402
        %v2577 = vpop.f32.mrb[0].mxu0
        %v2578 = vadd.f32 0.0, %v2577
        %v2579 = vpop.f32.mrb[0].mxu0
        %2580 = vmatprep.mubr.f32.mxu0 0.0
        %2581 = vmatmul.mubr.f32.gmra.mrb[0].mxu0 %v2403
        %v2582 = vpop.f32.mrb[0].mxu0
        %v2583 = vadd.f32 0.0, %v2582
        %v2584 = vpop.f32.mrb[0].mxu0
        %2585 = vmatprep.mubr.f32.mxu0 0.0
        %2586 = vmatmul.mubr.f32.gmra.mrb[0].mxu0 %v2404
        %v2587 = vpop.f32.mrb[0].mxu0
        %v2588 = vadd.f32 0.0, %v2587
        %v2589 = vpop.f32.mrb[0].mxu0
        %2590 = vmatprep.mubr.f32.mxu0 0.0
        %2591 = vmatmul.mubr.f32.gmra.mrb[0].mxu0 %v2405
        %v2592 = vpop.f32.mrb[0].mxu0
        %v2593 = vadd.f32 0.0, %v2592
        %v2594 = vpop.f32.mrb[0].mxu0
        %2595 = vmatprep.mubr.f32.mxu0 0.0
        %2596 = vmatmul.mubr.f32.gmra.mrb[0].mxu0 %v2406
        %v2597 = vpop.f32.mrb[0].mxu0
        %v2598 = vadd.f32 0.0, %v2597
        %v2599 = vpop.f32.mrb[0].mxu0
        %2600 = vmatprep.mubr.f32.mxu0 0.0
        %2601 = vmatmul.mubr.f32.gmra.mrb[0].mxu0 %v2407
        %v2602 = vpop.f32.mrb[0].mxu0
        %v2603 = vadd.f32 0.0, %v2602
        %v2604 = vpop.f32.mrb[0].mxu0
        %2605 = vmatprep.mubr.f32.mxu0 0.0
        %2606 = vmatmul.mubr.f32.gmra.mrb[0].mxu0 %v2408
        %v2607 = vpop.f32.mrb[0].mxu0
        %v2608 = vadd.f32 0.0, %v2607
        %v2609 = vpop.f32.mrb[0].mxu0
        %2610 = vmatprep.mubr.f32.mxu0 0.0
        %2611 = vmatmul.mubr.f32.gmra.mrb[0].mxu0 %v2409
        %v2612 = vpop.f32.mrb[0].mxu0
        %v2613 = vadd.f32 0.0, %v2612
        %v2614 = vpop.f32.mrb[0].mxu0
        %2615 = vmatprep.mubr.f32.mxu0 0.0
        %2616 = vmatmul.mubr.f32.gmra.mrb[0].mxu0 %v2410
        %v2617 = vpop.f32.mrb[0].mxu0
        %v2618 = vadd.f32 0.0, %v2617
        %v2619 = vpop.f32.mrb[0].mxu0
        %2620 = vmatprep.mubr.f32.mxu0 0.0
        %2621 = vmatmul.mubr.f32.gmra.mrb[0].mxu0 %v2411
        %v2622 = vpop.f32.mrb[0].mxu0
        %v2623 = vadd.f32 0.0, %v2622
        %v2624 = vpop.f32.mrb[0].mxu0
        %2625 = vmatprep.mubr.f32.mxu0 0.0
        %2626 = vmatmul.mubr.f32.gmra.mrb[0].mxu0 %v2412
        %v2627 = vpop.f32.mrb[0].mxu0
        %v2628 = vadd.f32 0.0, %v2627
        %v2629 = vpop.f32.mrb[0].mxu0
        %2630 = vmatprep.mubr.f32.mxu0 0.0
        %2631 = vmatmul.mubr.f32.gmra.mrb[0].mxu0 %v2413
        %v2632 = vpop.f32.mrb[0].mxu0
        %v2633 = vadd.f32 0.0, %v2632
        %v2634 = vpop.f32.mrb[0].mxu0
        %2635 = vmatprep.mubr.f32.mxu0 0.0
        %2636 = vmatmul.mubr.f32.gmra.mrb[0].mxu0 %v2414
        %v2637 = vpop.f32.mrb[0].mxu0
        %v2638 = vadd.f32 0.0, %v2637
        %v2639 = vpop.f32.mrb[0].mxu0
        %2640 = vmatprep.mubr.f32.mxu0 0.0
        %2641 = vmatmul.mubr.f32.gmra.mrb[0].mxu0 %v2415
        %v2642 = vpop.f32.mrb[0].mxu0
        %v2643 = vadd.f32 0.0, %v2642
        %v2644 = vpop.f32.mrb[0].mxu0
        %2645 = vmatprep.mubr.f32.mxu0 0.0
        %2646 = vmatmul.mubr.f32.gmra.mrb[0].mxu0 %v2416
        %v2647 = vpop.f32.mrb[0].mxu0
        %v2648 = vadd.f32 0.0, %v2647
        %v2649 = vpop.f32.mrb[0].mxu0
        %2650 = vmatprep.mubr.f32.mxu0 0.0
        %2651 = vmatmul.mubr.f32.gmra.mrb[0].mxu0 %v2417
        %v2652 = vpop.f32.mrb[0].mxu0
        %v2653 = vadd.f32 0.0, %v2652
        %v2654 = vpop.f32.mrb[0].mxu0
        %2655 = vmatprep.mubr.f32.mxu0 0.0
        %2656 = vmatmul.mubr.f32.gmra.mrb[0].mxu0 %v2418
        %v2657 = vpop.f32.mrb[0].mxu0
        %v2658 = vadd.f32 0.0, %v2657
        %v2659 = vpop.f32.mrb[0].mxu0
        %2660 = vmatprep.mubr.f32.mxu0 0.0
        %2661 = vmatmul.mubr.f32.gmra.mrb[0].mxu0 %v2419
        %v2662 = vpop.f32.mrb[0].mxu0
        %v2663 = vadd.f32 0.0, %v2662
        %v2664 = vpop.f32.mrb[0].mxu0
        %2665 = vmatprep.mubr.f32.mxu0 0.0
        %2666 = vmatmul.mubr.f32.gmra.mrb[0].mxu0 %v2420
        %v2667 = vpop.f32.mrb[0].mxu0
        %v2668 = vadd.f32 0.0, %v2667
        %v2669 = vpop.f32.mrb[0].mxu0
        %2670 = vmatprep.mubr.f32.mxu0 0.0
        %2671 = vmatmul.mubr.f32.gmra.mrb[0].mxu0 %v2421
        %v2672 = vpop.f32.mrb[0].mxu0
        %v2673 = vadd.f32 0.0, %v2672
        %v2674 = vpop.f32.mrb[0].mxu0
        %2675 = vmatprep.mubr.f32.mxu0 0.0
        %2676 = vmatmul.mubr.f32.gmra.mrb[0].mxu0 %v2422
        %v2677 = vpop.f32.mrb[0].mxu0
        %v2678 = vadd.f32 0.0, %v2677
        %v2679 = vpop.f32.mrb[0].mxu0
        %2680 = vmatprep.mubr.f32.mxu0 0.0
        %2681 = vmatmul.mubr.f32.gmra.mrb[0].mxu0 %v2423
        %v2682 = vpop.f32.mrb[0].mxu0
        %v2683 = vadd.f32 0.0, %v2682
        %v2684 = vpop.f32.mrb[0].mxu0
        %2685 = vmatprep.mubr.f32.mxu0 0.0
        %2686 = vmatmul.mubr.f32.gmra.mrb[0].mxu0 %v2424
        %v2687 = vpop.f32.mrb[0].mxu0
        %v2688 = vadd.f32 0.0, %v2687
        %v2689 = vpop.f32.mrb[0].mxu0
        %2690 = vmatprep.mubr.f32.mxu0 0.0
        %2691 = vmatmul.mubr.f32.gmra.mrb[0].mxu0 %v2425
        %v2692 = vpop.f32.mrb[0].mxu0
        %v2693 = vadd.f32 0.0, %v2692
        %v2694 = vpop.f32.mrb[0].mxu0
        %2695 = vmatprep.mubr.f32.mxu0 0.0
        %2696 = vmatmul.mubr.f32.gmra.mrb[0].mxu0 %v2426
        %v2697 = vpop.f32.mrb[0].mxu0
        %v2698 = vadd.f32 0.0, %v2697
        %v2699 = vpop.f32.mrb[0].mxu0
        %2700 = vdwg.mxu0
        %v2701 = vadd.f32 %v2427, %v2543
        %v2702 = vadd.f32 %v2428, %v2548
        %v2703 = vadd.f32 %v2429, %v2553
        %v2704 = vadd.f32 %v2430, %v2558
        %v2705 = vadd.f32 %v2431, %v2563
        %v2706 = vadd.f32 %v2432, %v2568
        %v2707 = vadd.f32 %v2433, %v2573
        %v2708 = vadd.f32 %v2434, %v2578
        %v2709 = vadd.f32 %v2435, %v2583
        %v2710 = vadd.f32 %v2436, %v2588
        %v2711 = vadd.f32 %v2437, %v2593
        %v2712 = vadd.f32 %v2438, %v2598
        %v2713 = vadd.f32 %v2439, %v2603
        %v2714 = vadd.f32 %v2440, %v2608
        %v2715 = vadd.f32 %v2441, %v2613
        %v2716 = vadd.f32 %v2442, %v2618
        %v2717 = vadd.f32 %v2443, %v2623
        %v2718 = vadd.f32 %v2444, %v2628
        %v2719 = vadd.f32 %v2445, %v2633
        %v2720 = vadd.f32 %v2446, %v2638
        %v2721 = vadd.f32 %v2447, %v2643
        %v2722 = vadd.f32 %v2448, %v2648
        %v2723 = vadd.f32 %v2449, %v2653
        %v2724 = vadd.f32 %v2450, %v2658
        %v2725 = vadd.f32 %v2451, %v2663
        %v2726 = vadd.f32 %v2452, %v2668
        %v2727 = vadd.f32 %v2453, %v2673
        %v2728 = vadd.f32 %v2454, %v2678
        %v2729 = vadd.f32 %v2455, %v2683
        %v2730 = vadd.f32 %v2456, %v2688
        %v2731 = vadd.f32 %v2457, %v2693
        %v2732 = vadd.f32 %v2458, %v2698
        %2733 = vst [vmem:[#allocation3] sm:$0xff] %v2701
        %2734 = vst [vmem:[#allocation3 + $0x8] sm:$0xff] %v2702
        %2735 = vst [vmem:[#allocation3 + $0x10] sm:$0xff] %v2703
        %2736 = vst [vmem:[#allocation3 + $0x18] sm:$0xff] %v2704
        %2737 = vst [vmem:[#allocation3 + $0x20] sm:$0xff] %v2705
        %2738 = vst [vmem:[#allocation3 + $0x28] sm:$0xff] %v2706
        %2739 = vst [vmem:[#allocation3 + $0x30] sm:$0xff] %v2707
        %2740 = vst [vmem:[#allocation3 + $0x38] sm:$0xff] %v2708
        %2741 = vst [vmem:[#allocation3 + $0x40] sm:$0xff] %v2709
        %2742 = vst [vmem:[#allocation3 + $0x48] sm:$0xff] %v2710
        %2743 = vst [vmem:[#allocation3 + $0x50] sm:$0xff] %v2711
        %2744 = vst [vmem:[#allocation3 + $0x58] sm:$0xff] %v2712
        %2745 = vst [vmem:[#allocation3 + $0x60] sm:$0xff] %v2713
        %2746 = vst [vmem:[#allocation3 + $0x68] sm:$0xff] %v2714
        %2747 = vst [vmem:[#allocation3 + $0x70] sm:$0xff] %v2715
        %2748 = vst [vmem:[#allocation3 + $0x78] sm:$0xff] %v2716
        %2749 = vst [vmem:[#allocation3 + $0x80] sm:$0xff] %v2717
        %2750 = vst [vmem:[#allocation3 + $0x88] sm:$0xff] %v2718
        %2751 = vst [vmem:[#allocation3 + $0x90] sm:$0xff] %v2719
        %2752 = vst [vmem:[#allocation3 + $0x98] sm:$0xff] %v2720
        %2753 = vst [vmem:[#allocation3 + $0xa0] sm:$0xff] %v2721
        %2754 = vst [vmem:[#allocation3 + $0xa8] sm:$0xff] %v2722
        %2755 = vst [vmem:[#allocation3 + $0xb0] sm:$0xff] %v2723
        %2756 = vst [vmem:[#allocation3 + $0xb8] sm:$0xff] %v2724
        %2757 = vst [vmem:[#allocation3 + $0xc0] sm:$0xff] %v2725
        %2758 = vst [vmem:[#allocation3 + $0xc8] sm:$0xff] %v2726
        %2759 = vst [vmem:[#allocation3 + $0xd0] sm:$0xff] %v2727
        %2760 = vst [vmem:[#allocation3 + $0xd8] sm:$0xff] %v2728
        %2761 = vst [vmem:[#allocation3 + $0xe0] sm:$0xff] %v2729
        %2762 = vst [vmem:[#allocation3 + $0xe8] sm:$0xff] %v2730
        %2763 = vst [vmem:[#allocation3 + $0xf0] sm:$0xff] %v2731
        %2764 = vst [vmem:[#allocation3 + $0xf8] sm:$0xff] %v2732
        %s2765 = scalar_lea.vmem [#allocation2], 32
        %v2766 = vld [vmem:[%s2765] sm:$0xff]
        %v2767 = vld [vmem:[%s2765 + $0x8] sm:$0xff]
        %v2768 = vld [vmem:[%s2765 + $0x10] sm:$0xff]
        %v2769 = vld [vmem:[%s2765 + $0x18] sm:$0xff]
        %v2770 = vld [vmem:[%s2765 + $0x20] sm:$0xff]
        %v2771 = vld [vmem:[%s2765 + $0x28] sm:$0xff]
        %v2772 = vld [vmem:[%s2765 + $0x30] sm:$0xff]
        %v2773 = vld [vmem:[%s2765 + $0x38] sm:$0xff]
        %v2774 = vld [vmem:[%s2765 + $0x40] sm:$0xff]
        %v2775 = vld [vmem:[%s2765 + $0x48] sm:$0xff]
        %v2776 = vld [vmem:[%s2765 + $0x50] sm:$0xff]
        %v2777 = vld [vmem:[%s2765 + $0x58] sm:$0xff]
        %v2778 = vld [vmem:[%s2765 + $0x60] sm:$0xff]
        %v2779 = vld [vmem:[%s2765 + $0x68] sm:$0xff]
        %v2780 = vld [vmem:[%s2765 + $0x70] sm:$0xff]
        %v2781 = vld [vmem:[%s2765 + $0x78] sm:$0xff]
        %v2782 = vld [vmem:[%s2765 + $0x80] sm:$0xff]
        %v2783 = vld [vmem:[%s2765 + $0x88] sm:$0xff]
        %v2784 = vld [vmem:[%s2765 + $0x90] sm:$0xff]
        %v2785 = vld [vmem:[%s2765 + $0x98] sm:$0xff]
        %v2786 = vld [vmem:[%s2765 + $0xa0] sm:$0xff]
        %v2787 = vld [vmem:[%s2765 + $0xa8] sm:$0xff]
        %v2788 = vld [vmem:[%s2765 + $0xb0] sm:$0xff]
        %v2789 = vld [vmem:[%s2765 + $0xb8] sm:$0xff]
        %v2790 = vld [vmem:[%s2765 + $0xc0] sm:$0xff]
        %v2791 = vld [vmem:[%s2765 + $0xc8] sm:$0xff]
        %v2792 = vld [vmem:[%s2765 + $0xd0] sm:$0xff]
        %v2793 = vld [vmem:[%s2765 + $0xd8] sm:$0xff]
        %v2794 = vld [vmem:[%s2765 + $0xe0] sm:$0xff]
        %v2795 = vld [vmem:[%s2765 + $0xe8] sm:$0xff]
        %v2796 = vld [vmem:[%s2765 + $0xf0] sm:$0xff]
        %v2797 = vld [vmem:[%s2765 + $0xf8] sm:$0xff]
        %v2798 = vld [vmem:[#allocation3] sm:$0xff]
        %v2799 = vld [vmem:[#allocation3 + $0x8] sm:$0xff]
        %v2800 = vld [vmem:[#allocation3 + $0x10] sm:$0xff]
        %v2801 = vld [vmem:[#allocation3 + $0x18] sm:$0xff]
        %v2802 = vld [vmem:[#allocation3 + $0x20] sm:$0xff]
        %v2803 = vld [vmem:[#allocation3 + $0x28] sm:$0xff]
        %v2804 = vld [vmem:[#allocation3 + $0x30] sm:$0xff]
        %v2805 = vld [vmem:[#allocation3 + $0x38] sm:$0xff]
        %v2806 = vld [vmem:[#allocation3 + $0x40] sm:$0xff]
        %v2807 = vld [vmem:[#allocation3 + $0x48] sm:$0xff]
        %v2808 = vld [vmem:[#allocation3 + $0x50] sm:$0xff]
        %v2809 = vld [vmem:[#allocation3 + $0x58] sm:$0xff]
        %v2810 = vld [vmem:[#allocation3 + $0x60] sm:$0xff]
        %v2811 = vld [vmem:[#allocation3 + $0x68] sm:$0xff]
        %v2812 = vld [vmem:[#allocation3 + $0x70] sm:$0xff]
        %v2813 = vld [vmem:[#allocation3 + $0x78] sm:$0xff]
        %v2814 = vld [vmem:[#allocation3 + $0x80] sm:$0xff]
        %v2815 = vld [vmem:[#allocation3 + $0x88] sm:$0xff]
        %v2816 = vld [vmem:[#allocation3 + $0x90] sm:$0xff]
        %v2817 = vld [vmem:[#allocation3 + $0x98] sm:$0xff]
        %v2818 = vld [vmem:[#allocation3 + $0xa0] sm:$0xff]
        %v2819 = vld [vmem:[#allocation3 + $0xa8] sm:$0xff]
        %v2820 = vld [vmem:[#allocation3 + $0xb0] sm:$0xff]
        %v2821 = vld [vmem:[#allocation3 + $0xb8] sm:$0xff]
        %v2822 = vld [vmem:[#allocation3 + $0xc0] sm:$0xff]
        %v2823 = vld [vmem:[#allocation3 + $0xc8] sm:$0xff]
        %v2824 = vld [vmem:[#allocation3 + $0xd0] sm:$0xff]
        %v2825 = vld [vmem:[#allocation3 + $0xd8] sm:$0xff]
        %v2826 = vld [vmem:[#allocation3 + $0xe0] sm:$0xff]
        %v2827 = vld [vmem:[#allocation3 + $0xe8] sm:$0xff]
        %v2828 = vld [vmem:[#allocation3 + $0xf0] sm:$0xff]
        %v2829 = vld [vmem:[#allocation3 + $0xf8] sm:$0xff]
        %s2830 = scalar_lea.vmem %s2, 768
        %v2831 = vld [vmem:[%s2830] sm:$0xff]
        %v2832 = vld [vmem:[%s2830 + $0x8] sm:$0xff]
        %v2833 = vld [vmem:[%s2830 + $0x10] sm:$0xff]
        %v2834 = vld [vmem:[%s2830 + $0x18] sm:$0xff]
        %v2835 = vld [vmem:[%s2830 + $0x20] sm:$0xff]
        %v2836 = vld [vmem:[%s2830 + $0x28] sm:$0xff]
        %v2837 = vld [vmem:[%s2830 + $0x30] sm:$0xff]
        %v2838 = vld [vmem:[%s2830 + $0x38] sm:$0xff]
        %v2839 = vld [vmem:[%s2830 + $0x40] sm:$0xff]
        %v2840 = vld [vmem:[%s2830 + $0x48] sm:$0xff]
        %v2841 = vld [vmem:[%s2830 + $0x50] sm:$0xff]
        %v2842 = vld [vmem:[%s2830 + $0x58] sm:$0xff]
        %v2843 = vld [vmem:[%s2830 + $0x60] sm:$0xff]
        %v2844 = vld [vmem:[%s2830 + $0x68] sm:$0xff]
        %v2845 = vld [vmem:[%s2830 + $0x70] sm:$0xff]
        %v2846 = vld [vmem:[%s2830 + $0x78] sm:$0xff]
        %2847 = vmatprep.subr.mxu0 0.0
        %2848 = vmatpush1.msra.mxu0 %v2831
        %2849 = vmatprep.subr.mxu0 0.0
        %2850 = vmatpush1.msra.mxu0 %v2832
        %2851 = vmatprep.subr.mxu0 0.0
        %2852 = vmatpush1.msra.mxu0 %v2833
        %2853 = vmatprep.subr.mxu0 0.0
        %2854 = vmatpush1.msra.mxu0 %v2834
        %2855 = vmatprep.subr.mxu0 0.0
        %2856 = vmatpush1.msra.mxu0 %v2835
        %2857 = vmatprep.subr.mxu0 0.0
        %2858 = vmatpush1.msra.mxu0 %v2836
        %2859 = vmatprep.subr.mxu0 0.0
        %2860 = vmatpush1.msra.mxu0 %v2837
        %2861 = vmatprep.subr.mxu0 0.0
        %2862 = vmatpush1.msra.mxu0 %v2838
        %2863 = vmatprep.subr.mxu0 0.0
        %2864 = vmatpush1.msra.mxu0 %v2839
        %2865 = vmatprep.subr.mxu0 0.0
        %2866 = vmatpush1.msra.mxu0 %v2840
        %2867 = vmatprep.subr.mxu0 0.0
        %2868 = vmatpush1.msra.mxu0 %v2841
        %2869 = vmatprep.subr.mxu0 0.0
        %2870 = vmatpush1.msra.mxu0 %v2842
        %2871 = vmatprep.subr.mxu0 0.0
        %2872 = vmatpush1.msra.mxu0 %v2843
        %2873 = vmatprep.subr.mxu0 0.0
        %2874 = vmatpush1.msra.mxu0 %v2844
        %2875 = vmatprep.subr.mxu0 0.0
        %2876 = vmatpush1.msra.mxu0 %v2845
        %2877 = vmatprep.subr.mxu0 0.0
        %2878 = vmatpush1.msra.mxu0 %v2846
        %2879 = vmatprep.subr.mxu0 0.0
        %2880 = vmatpush1.msra.mxu0 0.0
        %2881 = vmatprep.subr.mxu0 0.0
        %2882 = vmatpush1.msra.mxu0 0.0
        %2883 = vmatprep.subr.mxu0 0.0
        %2884 = vmatpush1.msra.mxu0 0.0
        %2885 = vmatprep.subr.mxu0 0.0
        %2886 = vmatpush1.msra.mxu0 0.0
        %2887 = vmatprep.subr.mxu0 0.0
        %2888 = vmatpush1.msra.mxu0 0.0
        %2889 = vmatprep.subr.mxu0 0.0
        %2890 = vmatpush1.msra.mxu0 0.0
        %2891 = vmatprep.subr.mxu0 0.0
        %2892 = vmatpush1.msra.mxu0 0.0
        %2893 = vmatprep.subr.mxu0 0.0
        %2894 = vmatpush1.msra.mxu0 0.0
        %2895 = vmatprep.subr.mxu0 0.0
        %2896 = vmatpush1.msra.mxu0 0.0
        %2897 = vmatprep.subr.mxu0 0.0
        %2898 = vmatpush1.msra.mxu0 0.0
        %2899 = vmatprep.subr.mxu0 0.0
        %2900 = vmatpush1.msra.mxu0 0.0
        %2901 = vmatprep.subr.mxu0 0.0
        %2902 = vmatpush1.msra.mxu0 0.0
        %2903 = vmatprep.subr.mxu0 0.0
        %2904 = vmatpush1.msra.mxu0 0.0
        %2905 = vmatprep.subr.mxu0 0.0
        %2906 = vmatpush1.msra.mxu0 0.0
        %2907 = vmatprep.subr.mxu0 0.0
        %2908 = vmatpush1.msra.mxu0 0.0
        %2909 = vmatprep.subr.mxu0 0.0
        %2910 = vmatpush1.msra.mxu0 0.0
        %2911 = vmatprep.mubr.f32.mxu0 0.0
        %2912 = vmatmul.mubr.f32.gmra.mrb[0].mxu0 %v2766
        %v2913 = vpop.f32.mrb[0].mxu0
        %v2914 = vadd.f32 0.0, %v2913
        %v2915 = vpop.f32.mrb[0].mxu0
        %2916 = vmatprep.mubr.f32.mxu0 0.0
        %2917 = vmatmul.mubr.f32.gmra.mrb[0].mxu0 %v2767
        %v2918 = vpop.f32.mrb[0].mxu0
        %v2919 = vadd.f32 0.0, %v2918
        %v2920 = vpop.f32.mrb[0].mxu0
        %2921 = vmatprep.mubr.f32.mxu0 0.0
        %2922 = vmatmul.mubr.f32.gmra.mrb[0].mxu0 %v2768
        %v2923 = vpop.f32.mrb[0].mxu0
        %v2924 = vadd.f32 0.0, %v2923
        %v2925 = vpop.f32.mrb[0].mxu0
        %2926 = vmatprep.mubr.f32.mxu0 0.0
        %2927 = vmatmul.mubr.f32.gmra.mrb[0].mxu0 %v2769
        %v2928 = vpop.f32.mrb[0].mxu0
        %v2929 = vadd.f32 0.0, %v2928
        %v2930 = vpop.f32.mrb[0].mxu0
        %2931 = vmatprep.mubr.f32.mxu0 0.0
        %2932 = vmatmul.mubr.f32.gmra.mrb[0].mxu0 %v2770
        %v2933 = vpop.f32.mrb[0].mxu0
        %v2934 = vadd.f32 0.0, %v2933
        %v2935 = vpop.f32.mrb[0].mxu0
        %2936 = vmatprep.mubr.f32.mxu0 0.0
        %2937 = vmatmul.mubr.f32.gmra.mrb[0].mxu0 %v2771
        %v2938 = vpop.f32.mrb[0].mxu0
        %v2939 = vadd.f32 0.0, %v2938
        %v2940 = vpop.f32.mrb[0].mxu0
        %2941 = vmatprep.mubr.f32.mxu0 0.0
        %2942 = vmatmul.mubr.f32.gmra.mrb[0].mxu0 %v2772
        %v2943 = vpop.f32.mrb[0].mxu0
        %v2944 = vadd.f32 0.0, %v2943
        %v2945 = vpop.f32.mrb[0].mxu0
        %2946 = vmatprep.mubr.f32.mxu0 0.0
        %2947 = vmatmul.mubr.f32.gmra.mrb[0].mxu0 %v2773
        %v2948 = vpop.f32.mrb[0].mxu0
        %v2949 = vadd.f32 0.0, %v2948
        %v2950 = vpop.f32.mrb[0].mxu0
        %2951 = vmatprep.mubr.f32.mxu0 0.0
        %2952 = vmatmul.mubr.f32.gmra.mrb[0].mxu0 %v2774
        %v2953 = vpop.f32.mrb[0].mxu0
        %v2954 = vadd.f32 0.0, %v2953
        %v2955 = vpop.f32.mrb[0].mxu0
        %2956 = vmatprep.mubr.f32.mxu0 0.0
        %2957 = vmatmul.mubr.f32.gmra.mrb[0].mxu0 %v2775
        %v2958 = vpop.f32.mrb[0].mxu0
        %v2959 = vadd.f32 0.0, %v2958
        %v2960 = vpop.f32.mrb[0].mxu0
        %2961 = vmatprep.mubr.f32.mxu0 0.0
        %2962 = vmatmul.mubr.f32.gmra.mrb[0].mxu0 %v2776
        %v2963 = vpop.f32.mrb[0].mxu0
        %v2964 = vadd.f32 0.0, %v2963
        %v2965 = vpop.f32.mrb[0].mxu0
        %2966 = vmatprep.mubr.f32.mxu0 0.0
        %2967 = vmatmul.mubr.f32.gmra.mrb[0].mxu0 %v2777
        %v2968 = vpop.f32.mrb[0].mxu0
        %v2969 = vadd.f32 0.0, %v2968
        %v2970 = vpop.f32.mrb[0].mxu0
        %2971 = vmatprep.mubr.f32.mxu0 0.0
        %2972 = vmatmul.mubr.f32.gmra.mrb[0].mxu0 %v2778
        %v2973 = vpop.f32.mrb[0].mxu0
        %v2974 = vadd.f32 0.0, %v2973
        %v2975 = vpop.f32.mrb[0].mxu0
        %2976 = vmatprep.mubr.f32.mxu0 0.0
        %2977 = vmatmul.mubr.f32.gmra.mrb[0].mxu0 %v2779
        %v2978 = vpop.f32.mrb[0].mxu0
        %v2979 = vadd.f32 0.0, %v2978
        %v2980 = vpop.f32.mrb[0].mxu0
        %2981 = vmatprep.mubr.f32.mxu0 0.0
        %2982 = vmatmul.mubr.f32.gmra.mrb[0].mxu0 %v2780
        %v2983 = vpop.f32.mrb[0].mxu0
        %v2984 = vadd.f32 0.0, %v2983
        %v2985 = vpop.f32.mrb[0].mxu0
        %2986 = vmatprep.mubr.f32.mxu0 0.0
        %2987 = vmatmul.mubr.f32.gmra.mrb[0].mxu0 %v2781
        %v2988 = vpop.f32.mrb[0].mxu0
        %v2989 = vadd.f32 0.0, %v2988
        %v2990 = vpop.f32.mrb[0].mxu0
        %2991 = vmatprep.mubr.f32.mxu0 0.0
        %2992 = vmatmul.mubr.f32.gmra.mrb[0].mxu0 %v2782
        %v2993 = vpop.f32.mrb[0].mxu0
        %v2994 = vadd.f32 0.0, %v2993
        %v2995 = vpop.f32.mrb[0].mxu0
        %2996 = vmatprep.mubr.f32.mxu0 0.0
        %2997 = vmatmul.mubr.f32.gmra.mrb[0].mxu0 %v2783
        %v2998 = vpop.f32.mrb[0].mxu0
        %v2999 = vadd.f32 0.0, %v2998
        %v3000 = vpop.f32.mrb[0].mxu0
        %3001 = vmatprep.mubr.f32.mxu0 0.0
        %3002 = vmatmul.mubr.f32.gmra.mrb[0].mxu0 %v2784
        %v3003 = vpop.f32.mrb[0].mxu0
        %v3004 = vadd.f32 0.0, %v3003
        %v3005 = vpop.f32.mrb[0].mxu0
        %3006 = vmatprep.mubr.f32.mxu0 0.0
        %3007 = vmatmul.mubr.f32.gmra.mrb[0].mxu0 %v2785
        %v3008 = vpop.f32.mrb[0].mxu0
        %v3009 = vadd.f32 0.0, %v3008
        %v3010 = vpop.f32.mrb[0].mxu0
        %3011 = vmatprep.mubr.f32.mxu0 0.0
        %3012 = vmatmul.mubr.f32.gmra.mrb[0].mxu0 %v2786
        %v3013 = vpop.f32.mrb[0].mxu0
        %v3014 = vadd.f32 0.0, %v3013
        %v3015 = vpop.f32.mrb[0].mxu0
        %3016 = vmatprep.mubr.f32.mxu0 0.0
        %3017 = vmatmul.mubr.f32.gmra.mrb[0].mxu0 %v2787
        %v3018 = vpop.f32.mrb[0].mxu0
        %v3019 = vadd.f32 0.0, %v3018
        %v3020 = vpop.f32.mrb[0].mxu0
        %3021 = vmatprep.mubr.f32.mxu0 0.0
        %3022 = vmatmul.mubr.f32.gmra.mrb[0].mxu0 %v2788
        %v3023 = vpop.f32.mrb[0].mxu0
        %v3024 = vadd.f32 0.0, %v3023
        %v3025 = vpop.f32.mrb[0].mxu0
        %3026 = vmatprep.mubr.f32.mxu0 0.0
        %3027 = vmatmul.mubr.f32.gmra.mrb[0].mxu0 %v2789
        %v3028 = vpop.f32.mrb[0].mxu0
        %v3029 = vadd.f32 0.0, %v3028
        %v3030 = vpop.f32.mrb[0].mxu0
        %3031 = vmatprep.mubr.f32.mxu0 0.0
        %3032 = vmatmul.mubr.f32.gmra.mrb[0].mxu0 %v2790
        %v3033 = vpop.f32.mrb[0].mxu0
        %v3034 = vadd.f32 0.0, %v3033
        %v3035 = vpop.f32.mrb[0].mxu0
        %3036 = vmatprep.mubr.f32.mxu0 0.0
        %3037 = vmatmul.mubr.f32.gmra.mrb[0].mxu0 %v2791
        %v3038 = vpop.f32.mrb[0].mxu0
        %v3039 = vadd.f32 0.0, %v3038
        %v3040 = vpop.f32.mrb[0].mxu0
        %3041 = vmatprep.mubr.f32.mxu0 0.0
        %3042 = vmatmul.mubr.f32.gmra.mrb[0].mxu0 %v2792
        %v3043 = vpop.f32.mrb[0].mxu0
        %v3044 = vadd.f32 0.0, %v3043
        %v3045 = vpop.f32.mrb[0].mxu0
        %3046 = vmatprep.mubr.f32.mxu0 0.0
        %3047 = vmatmul.mubr.f32.gmra.mrb[0].mxu0 %v2793
        %v3048 = vpop.f32.mrb[0].mxu0
        %v3049 = vadd.f32 0.0, %v3048
        %v3050 = vpop.f32.mrb[0].mxu0
        %3051 = vmatprep.mubr.f32.mxu0 0.0
        %3052 = vmatmul.mubr.f32.gmra.mrb[0].mxu0 %v2794
        %v3053 = vpop.f32.mrb[0].mxu0
        %v3054 = vadd.f32 0.0, %v3053
        %v3055 = vpop.f32.mrb[0].mxu0
        %3056 = vmatprep.mubr.f32.mxu0 0.0
        %3057 = vmatmul.mubr.f32.gmra.mrb[0].mxu0 %v2795
        %v3058 = vpop.f32.mrb[0].mxu0
        %v3059 = vadd.f32 0.0, %v3058
        %v3060 = vpop.f32.mrb[0].mxu0
        %3061 = vmatprep.mubr.f32.mxu0 0.0
        %3062 = vmatmul.mubr.f32.gmra.mrb[0].mxu0 %v2796
        %v3063 = vpop.f32.mrb[0].mxu0
        %v3064 = vadd.f32 0.0, %v3063
        %v3065 = vpop.f32.mrb[0].mxu0
        %3066 = vmatprep.mubr.f32.mxu0 0.0
        %3067 = vmatmul.mubr.f32.gmra.mrb[0].mxu0 %v2797
        %v3068 = vpop.f32.mrb[0].mxu0
        %v3069 = vadd.f32 0.0, %v3068
        %v3070 = vpop.f32.mrb[0].mxu0
        %3071 = vdwg.mxu0
        %v3072 = vadd.f32 %v2798, %v2914
        %v3073 = vadd.f32 %v2799, %v2919
        %v3074 = vadd.f32 %v2800, %v2924
        %v3075 = vadd.f32 %v2801, %v2929
        %v3076 = vadd.f32 %v2802, %v2934
        %v3077 = vadd.f32 %v2803, %v2939
        %v3078 = vadd.f32 %v2804, %v2944
        %v3079 = vadd.f32 %v2805, %v2949
        %v3080 = vadd.f32 %v2806, %v2954
        %v3081 = vadd.f32 %v2807, %v2959
        %v3082 = vadd.f32 %v2808, %v2964
        %v3083 = vadd.f32 %v2809, %v2969
        %v3084 = vadd.f32 %v2810, %v2974
        %v3085 = vadd.f32 %v2811, %v2979
        %v3086 = vadd.f32 %v2812, %v2984
        %v3087 = vadd.f32 %v2813, %v2989
        %v3088 = vadd.f32 %v2814, %v2994
        %v3089 = vadd.f32 %v2815, %v2999
        %v3090 = vadd.f32 %v2816, %v3004
        %v3091 = vadd.f32 %v2817, %v3009
        %v3092 = vadd.f32 %v2818, %v3014
        %v3093 = vadd.f32 %v2819, %v3019
        %v3094 = vadd.f32 %v2820, %v3024
        %v3095 = vadd.f32 %v2821, %v3029
        %v3096 = vadd.f32 %v2822, %v3034
        %v3097 = vadd.f32 %v2823, %v3039
        %v3098 = vadd.f32 %v2824, %v3044
        %v3099 = vadd.f32 %v2825, %v3049
        %v3100 = vadd.f32 %v2826, %v3054
        %v3101 = vadd.f32 %v2827, %v3059
        %v3102 = vadd.f32 %v2828, %v3064
        %v3103 = vadd.f32 %v2829, %v3069
        %3104 = vst [vmem:[#allocation3] sm:$0xff] %v3072
        %3105 = vst [vmem:[#allocation3 + $0x8] sm:$0xff] %v3073
        %3106 = vst [vmem:[#allocation3 + $0x10] sm:$0xff] %v3074
        %3107 = vst [vmem:[#allocation3 + $0x18] sm:$0xff] %v3075
        %3108 = vst [vmem:[#allocation3 + $0x20] sm:$0xff] %v3076
        %3109 = vst [vmem:[#allocation3 + $0x28] sm:$0xff] %v3077
        %3110 = vst [vmem:[#allocation3 + $0x30] sm:$0xff] %v3078
        %3111 = vst [vmem:[#allocation3 + $0x38] sm:$0xff] %v3079
        %3112 = vst [vmem:[#allocation3 + $0x40] sm:$0xff] %v3080
        %3113 = vst [vmem:[#allocation3 + $0x48] sm:$0xff] %v3081
        %3114 = vst [vmem:[#allocation3 + $0x50] sm:$0xff] %v3082
        %3115 = vst [vmem:[#allocation3 + $0x58] sm:$0xff] %v3083
        %3116 = vst [vmem:[#allocation3 + $0x60] sm:$0xff] %v3084
        %3117 = vst [vmem:[#allocation3 + $0x68] sm:$0xff] %v3085
        %3118 = vst [vmem:[#allocation3 + $0x70] sm:$0xff] %v3086
        %3119 = vst [vmem:[#allocation3 + $0x78] sm:$0xff] %v3087
        %3120 = vst [vmem:[#allocation3 + $0x80] sm:$0xff] %v3088
        %3121 = vst [vmem:[#allocation3 + $0x88] sm:$0xff] %v3089
        %3122 = vst [vmem:[#allocation3 + $0x90] sm:$0xff] %v3090
        %3123 = vst [vmem:[#allocation3 + $0x98] sm:$0xff] %v3091
        %3124 = vst [vmem:[#allocation3 + $0xa0] sm:$0xff] %v3092
        %3125 = vst [vmem:[#allocation3 + $0xa8] sm:$0xff] %v3093
        %3126 = vst [vmem:[#allocation3 + $0xb0] sm:$0xff] %v3094
        %3127 = vst [vmem:[#allocation3 + $0xb8] sm:$0xff] %v3095
        %3128 = vst [vmem:[#allocation3 + $0xc0] sm:$0xff] %v3096
        %3129 = vst [vmem:[#allocation3 + $0xc8] sm:$0xff] %v3097
        %3130 = vst [vmem:[#allocation3 + $0xd0] sm:$0xff] %v3098
        %3131 = vst [vmem:[#allocation3 + $0xd8] sm:$0xff] %v3099
        %3132 = vst [vmem:[#allocation3 + $0xe0] sm:$0xff] %v3100
        %3133 = vst [vmem:[#allocation3 + $0xe8] sm:$0xff] %v3101
        %3134 = vst [vmem:[#allocation3 + $0xf0] sm:$0xff] %v3102
        %3135 = vst [vmem:[#allocation3 + $0xf8] sm:$0xff] %v3103
        %s3136 = scalar_lea.vmem [#allocation2], 320
        %v3137 = vld [vmem:[%s3136] sm:$0xff]
        %v3138 = vld [vmem:[%s3136 + $0x8] sm:$0xff]
        %v3139 = vld [vmem:[%s3136 + $0x10] sm:$0xff]
        %v3140 = vld [vmem:[%s3136 + $0x18] sm:$0xff]
        %v3141 = vld [vmem:[%s3136 + $0x20] sm:$0xff]
        %v3142 = vld [vmem:[%s3136 + $0x28] sm:$0xff]
        %v3143 = vld [vmem:[%s3136 + $0x30] sm:$0xff]
        %v3144 = vld [vmem:[%s3136 + $0x38] sm:$0xff]
        %v3145 = vld [vmem:[%s3136 + $0x40] sm:$0xff]
        %v3146 = vld [vmem:[%s3136 + $0x48] sm:$0xff]
        %v3147 = vld [vmem:[%s3136 + $0x50] sm:$0xff]
        %v3148 = vld [vmem:[%s3136 + $0x58] sm:$0xff]
        %v3149 = vld [vmem:[%s3136 + $0x60] sm:$0xff]
        %v3150 = vld [vmem:[%s3136 + $0x68] sm:$0xff]
        %v3151 = vld [vmem:[%s3136 + $0x70] sm:$0xff]
        %v3152 = vld [vmem:[%s3136 + $0x78] sm:$0xff]
        %v3153 = vld [vmem:[%s3136 + $0x80] sm:$0xff]
        %v3154 = vld [vmem:[%s3136 + $0x88] sm:$0xff]
        %v3155 = vld [vmem:[%s3136 + $0x90] sm:$0xff]
        %v3156 = vld [vmem:[%s3136 + $0x98] sm:$0xff]
        %v3157 = vld [vmem:[%s3136 + $0xa0] sm:$0xff]
        %v3158 = vld [vmem:[%s3136 + $0xa8] sm:$0xff]
        %v3159 = vld [vmem:[%s3136 + $0xb0] sm:$0xff]
        %v3160 = vld [vmem:[%s3136 + $0xb8] sm:$0xff]
        %v3161 = vld [vmem:[%s3136 + $0xc0] sm:$0xff]
        %v3162 = vld [vmem:[%s3136 + $0xc8] sm:$0xff]
        %v3163 = vld [vmem:[%s3136 + $0xd0] sm:$0xff]
        %v3164 = vld [vmem:[%s3136 + $0xd8] sm:$0xff]
        %v3165 = vld [vmem:[%s3136 + $0xe0] sm:$0xff]
        %v3166 = vld [vmem:[%s3136 + $0xe8] sm:$0xff]
        %v3167 = vld [vmem:[%s3136 + $0xf0] sm:$0xff]
        %v3168 = vld [vmem:[%s3136 + $0xf8] sm:$0xff]
        %v3169 = vld [vmem:[#allocation3] sm:$0xff]
        %v3170 = vld [vmem:[#allocation3 + $0x8] sm:$0xff]
        %v3171 = vld [vmem:[#allocation3 + $0x10] sm:$0xff]
        %v3172 = vld [vmem:[#allocation3 + $0x18] sm:$0xff]
        %v3173 = vld [vmem:[#allocation3 + $0x20] sm:$0xff]
        %v3174 = vld [vmem:[#allocation3 + $0x28] sm:$0xff]
        %v3175 = vld [vmem:[#allocation3 + $0x30] sm:$0xff]
        %v3176 = vld [vmem:[#allocation3 + $0x38] sm:$0xff]
        %v3177 = vld [vmem:[#allocation3 + $0x40] sm:$0xff]
        %v3178 = vld [vmem:[#allocation3 + $0x48] sm:$0xff]
        %v3179 = vld [vmem:[#allocation3 + $0x50] sm:$0xff]
        %v3180 = vld [vmem:[#allocation3 + $0x58] sm:$0xff]
        %v3181 = vld [vmem:[#allocation3 + $0x60] sm:$0xff]
        %v3182 = vld [vmem:[#allocation3 + $0x68] sm:$0xff]
        %v3183 = vld [vmem:[#allocation3 + $0x70] sm:$0xff]
        %v3184 = vld [vmem:[#allocation3 + $0x78] sm:$0xff]
        %v3185 = vld [vmem:[#allocation3 + $0x80] sm:$0xff]
        %v3186 = vld [vmem:[#allocation3 + $0x88] sm:$0xff]
        %v3187 = vld [vmem:[#allocation3 + $0x90] sm:$0xff]
        %v3188 = vld [vmem:[#allocation3 + $0x98] sm:$0xff]
        %v3189 = vld [vmem:[#allocation3 + $0xa0] sm:$0xff]
        %v3190 = vld [vmem:[#allocation3 + $0xa8] sm:$0xff]
        %v3191 = vld [vmem:[#allocation3 + $0xb0] sm:$0xff]
        %v3192 = vld [vmem:[#allocation3 + $0xb8] sm:$0xff]
        %v3193 = vld [vmem:[#allocation3 + $0xc0] sm:$0xff]
        %v3194 = vld [vmem:[#allocation3 + $0xc8] sm:$0xff]
        %v3195 = vld [vmem:[#allocation3 + $0xd0] sm:$0xff]
        %v3196 = vld [vmem:[#allocation3 + $0xd8] sm:$0xff]
        %v3197 = vld [vmem:[#allocation3 + $0xe0] sm:$0xff]
        %v3198 = vld [vmem:[#allocation3 + $0xe8] sm:$0xff]
        %v3199 = vld [vmem:[#allocation3 + $0xf0] sm:$0xff]
        %v3200 = vld [vmem:[#allocation3 + $0xf8] sm:$0xff]
        %s3201 = scalar_lea.vmem %s2, 896
        %v3202 = vld [vmem:[%s3201] sm:$0xff]
        %v3203 = vld [vmem:[%s3201 + $0x8] sm:$0xff]
        %v3204 = vld [vmem:[%s3201 + $0x10] sm:$0xff]
        %v3205 = vld [vmem:[%s3201 + $0x18] sm:$0xff]
        %v3206 = vld [vmem:[%s3201 + $0x20] sm:$0xff]
        %v3207 = vld [vmem:[%s3201 + $0x28] sm:$0xff]
        %v3208 = vld [vmem:[%s3201 + $0x30] sm:$0xff]
        %v3209 = vld [vmem:[%s3201 + $0x38] sm:$0xff]
        %v3210 = vld [vmem:[%s3201 + $0x40] sm:$0xff]
        %v3211 = vld [vmem:[%s3201 + $0x48] sm:$0xff]
        %v3212 = vld [vmem:[%s3201 + $0x50] sm:$0xff]
        %v3213 = vld [vmem:[%s3201 + $0x58] sm:$0xff]
        %v3214 = vld [vmem:[%s3201 + $0x60] sm:$0xff]
        %v3215 = vld [vmem:[%s3201 + $0x68] sm:$0xff]
        %v3216 = vld [vmem:[%s3201 + $0x70] sm:$0xff]
        %v3217 = vld [vmem:[%s3201 + $0x78] sm:$0xff]
        %3218 = vmatprep.subr.mxu0 0.0
        %3219 = vmatpush1.msra.mxu0 %v3202
        %3220 = vmatprep.subr.mxu0 0.0
        %3221 = vmatpush1.msra.mxu0 %v3203
        %3222 = vmatprep.subr.mxu0 0.0
        %3223 = vmatpush1.msra.mxu0 %v3204
        %3224 = vmatprep.subr.mxu0 0.0
        %3225 = vmatpush1.msra.mxu0 %v3205
        %3226 = vmatprep.subr.mxu0 0.0
        %3227 = vmatpush1.msra.mxu0 %v3206
        %3228 = vmatprep.subr.mxu0 0.0
        %3229 = vmatpush1.msra.mxu0 %v3207
        %3230 = vmatprep.subr.mxu0 0.0
        %3231 = vmatpush1.msra.mxu0 %v3208
        %3232 = vmatprep.subr.mxu0 0.0
        %3233 = vmatpush1.msra.mxu0 %v3209
        %3234 = vmatprep.subr.mxu0 0.0
        %3235 = vmatpush1.msra.mxu0 %v3210
        %3236 = vmatprep.subr.mxu0 0.0
        %3237 = vmatpush1.msra.mxu0 %v3211
        %3238 = vmatprep.subr.mxu0 0.0
        %3239 = vmatpush1.msra.mxu0 %v3212
        %3240 = vmatprep.subr.mxu0 0.0
        %3241 = vmatpush1.msra.mxu0 %v3213
        %3242 = vmatprep.subr.mxu0 0.0
        %3243 = vmatpush1.msra.mxu0 %v3214
        %3244 = vmatprep.subr.mxu0 0.0
        %3245 = vmatpush1.msra.mxu0 %v3215
        %3246 = vmatprep.subr.mxu0 0.0
        %3247 = vmatpush1.msra.mxu0 %v3216
        %3248 = vmatprep.subr.mxu0 0.0
        %3249 = vmatpush1.msra.mxu0 %v3217
        %3250 = vmatprep.subr.mxu0 0.0
        %3251 = vmatpush1.msra.mxu0 0.0
        %3252 = vmatprep.subr.mxu0 0.0
        %3253 = vmatpush1.msra.mxu0 0.0
        %3254 = vmatprep.subr.mxu0 0.0
        %3255 = vmatpush1.msra.mxu0 0.0
        %3256 = vmatprep.subr.mxu0 0.0
        %3257 = vmatpush1.msra.mxu0 0.0
        %3258 = vmatprep.subr.mxu0 0.0
        %3259 = vmatpush1.msra.mxu0 0.0
        %3260 = vmatprep.subr.mxu0 0.0
        %3261 = vmatpush1.msra.mxu0 0.0
        %3262 = vmatprep.subr.mxu0 0.0
        %3263 = vmatpush1.msra.mxu0 0.0
        %3264 = vmatprep.subr.mxu0 0.0
        %3265 = vmatpush1.msra.mxu0 0.0
        %3266 = vmatprep.subr.mxu0 0.0
        %3267 = vmatpush1.msra.mxu0 0.0
        %3268 = vmatprep.subr.mxu0 0.0
        %3269 = vmatpush1.msra.mxu0 0.0
        %3270 = vmatprep.subr.mxu0 0.0
        %3271 = vmatpush1.msra.mxu0 0.0
        %3272 = vmatprep.subr.mxu0 0.0
        %3273 = vmatpush1.msra.mxu0 0.0
        %3274 = vmatprep.subr.mxu0 0.0
        %3275 = vmatpush1.msra.mxu0 0.0
        %3276 = vmatprep.subr.mxu0 0.0
        %3277 = vmatpush1.msra.mxu0 0.0
        %3278 = vmatprep.subr.mxu0 0.0
        %3279 = vmatpush1.msra.mxu0 0.0
        %3280 = vmatprep.subr.mxu0 0.0
        %3281 = vmatpush1.msra.mxu0 0.0
        %3282 = vmatprep.mubr.f32.mxu0 0.0
        %3283 = vmatmul.mubr.f32.gmra.mrb[0].mxu0 %v3137
        %v3284 = vpop.f32.mrb[0].mxu0
        %v3285 = vadd.f32 0.0, %v3284
        %v3286 = vpop.f32.mrb[0].mxu0
        %3287 = vmatprep.mubr.f32.mxu0 0.0
        %3288 = vmatmul.mubr.f32.gmra.mrb[0].mxu0 %v3138
        %v3289 = vpop.f32.mrb[0].mxu0
        %v3290 = vadd.f32 0.0, %v3289
        %v3291 = vpop.f32.mrb[0].mxu0
        %3292 = vmatprep.mubr.f32.mxu0 0.0
        %3293 = vmatmul.mubr.f32.gmra.mrb[0].mxu0 %v3139
        %v3294 = vpop.f32.mrb[0].mxu0
        %v3295 = vadd.f32 0.0, %v3294
        %v3296 = vpop.f32.mrb[0].mxu0
        %3297 = vmatprep.mubr.f32.mxu0 0.0
        %3298 = vmatmul.mubr.f32.gmra.mrb[0].mxu0 %v3140
        %v3299 = vpop.f32.mrb[0].mxu0
        %v3300 = vadd.f32 0.0, %v3299
        %v3301 = vpop.f32.mrb[0].mxu0
        %3302 = vmatprep.mubr.f32.mxu0 0.0
        %3303 = vmatmul.mubr.f32.gmra.mrb[0].mxu0 %v3141
        %v3304 = vpop.f32.mrb[0].mxu0
        %v3305 = vadd.f32 0.0, %v3304
        %v3306 = vpop.f32.mrb[0].mxu0
        %3307 = vmatprep.mubr.f32.mxu0 0.0
        %3308 = vmatmul.mubr.f32.gmra.mrb[0].mxu0 %v3142
        %v3309 = vpop.f32.mrb[0].mxu0
        %v3310 = vadd.f32 0.0, %v3309
        %v3311 = vpop.f32.mrb[0].mxu0
        %3312 = vmatprep.mubr.f32.mxu0 0.0
        %3313 = vmatmul.mubr.f32.gmra.mrb[0].mxu0 %v3143
        %v3314 = vpop.f32.mrb[0].mxu0
        %v3315 = vadd.f32 0.0, %v3314
        %v3316 = vpop.f32.mrb[0].mxu0
        %3317 = vmatprep.mubr.f32.mxu0 0.0
        %3318 = vmatmul.mubr.f32.gmra.mrb[0].mxu0 %v3144
        %v3319 = vpop.f32.mrb[0].mxu0
        %v3320 = vadd.f32 0.0, %v3319
        %v3321 = vpop.f32.mrb[0].mxu0
        %3322 = vmatprep.mubr.f32.mxu0 0.0
        %3323 = vmatmul.mubr.f32.gmra.mrb[0].mxu0 %v3145
        %v3324 = vpop.f32.mrb[0].mxu0
        %v3325 = vadd.f32 0.0, %v3324
        %v3326 = vpop.f32.mrb[0].mxu0
        %3327 = vmatprep.mubr.f32.mxu0 0.0
        %3328 = vmatmul.mubr.f32.gmra.mrb[0].mxu0 %v3146
        %v3329 = vpop.f32.mrb[0].mxu0
        %v3330 = vadd.f32 0.0, %v3329
        %v3331 = vpop.f32.mrb[0].mxu0
        %3332 = vmatprep.mubr.f32.mxu0 0.0
        %3333 = vmatmul.mubr.f32.gmra.mrb[0].mxu0 %v3147
        %v3334 = vpop.f32.mrb[0].mxu0
        %v3335 = vadd.f32 0.0, %v3334
        %v3336 = vpop.f32.mrb[0].mxu0
        %3337 = vmatprep.mubr.f32.mxu0 0.0
        %3338 = vmatmul.mubr.f32.gmra.mrb[0].mxu0 %v3148
        %v3339 = vpop.f32.mrb[0].mxu0
        %v3340 = vadd.f32 0.0, %v3339
        %v3341 = vpop.f32.mrb[0].mxu0
        %3342 = vmatprep.mubr.f32.mxu0 0.0
        %3343 = vmatmul.mubr.f32.gmra.mrb[0].mxu0 %v3149
        %v3344 = vpop.f32.mrb[0].mxu0
        %v3345 = vadd.f32 0.0, %v3344
        %v3346 = vpop.f32.mrb[0].mxu0
        %3347 = vmatprep.mubr.f32.mxu0 0.0
        %3348 = vmatmul.mubr.f32.gmra.mrb[0].mxu0 %v3150
        %v3349 = vpop.f32.mrb[0].mxu0
        %v3350 = vadd.f32 0.0, %v3349
        %v3351 = vpop.f32.mrb[0].mxu0
        %3352 = vmatprep.mubr.f32.mxu0 0.0
        %3353 = vmatmul.mubr.f32.gmra.mrb[0].mxu0 %v3151
        %v3354 = vpop.f32.mrb[0].mxu0
        %v3355 = vadd.f32 0.0, %v3354
        %v3356 = vpop.f32.mrb[0].mxu0
        %3357 = vmatprep.mubr.f32.mxu0 0.0
        %3358 = vmatmul.mubr.f32.gmra.mrb[0].mxu0 %v3152
        %v3359 = vpop.f32.mrb[0].mxu0
        %v3360 = vadd.f32 0.0, %v3359
        %v3361 = vpop.f32.mrb[0].mxu0
        %3362 = vmatprep.mubr.f32.mxu0 0.0
        %3363 = vmatmul.mubr.f32.gmra.mrb[0].mxu0 %v3153
        %v3364 = vpop.f32.mrb[0].mxu0
        %v3365 = vadd.f32 0.0, %v3364
        %v3366 = vpop.f32.mrb[0].mxu0
        %3367 = vmatprep.mubr.f32.mxu0 0.0
        %3368 = vmatmul.mubr.f32.gmra.mrb[0].mxu0 %v3154
        %v3369 = vpop.f32.mrb[0].mxu0
        %v3370 = vadd.f32 0.0, %v3369
        %v3371 = vpop.f32.mrb[0].mxu0
        %3372 = vmatprep.mubr.f32.mxu0 0.0
        %3373 = vmatmul.mubr.f32.gmra.mrb[0].mxu0 %v3155
        %v3374 = vpop.f32.mrb[0].mxu0
        %v3375 = vadd.f32 0.0, %v3374
        %v3376 = vpop.f32.mrb[0].mxu0
        %3377 = vmatprep.mubr.f32.mxu0 0.0
        %3378 = vmatmul.mubr.f32.gmra.mrb[0].mxu0 %v3156
        %v3379 = vpop.f32.mrb[0].mxu0
        %v3380 = vadd.f32 0.0, %v3379
        %v3381 = vpop.f32.mrb[0].mxu0
        %3382 = vmatprep.mubr.f32.mxu0 0.0
        %3383 = vmatmul.mubr.f32.gmra.mrb[0].mxu0 %v3157
        %v3384 = vpop.f32.mrb[0].mxu0
        %v3385 = vadd.f32 0.0, %v3384
        %v3386 = vpop.f32.mrb[0].mxu0
        %3387 = vmatprep.mubr.f32.mxu0 0.0
        %3388 = vmatmul.mubr.f32.gmra.mrb[0].mxu0 %v3158
        %v3389 = vpop.f32.mrb[0].mxu0
        %v3390 = vadd.f32 0.0, %v3389
        %v3391 = vpop.f32.mrb[0].mxu0
        %3392 = vmatprep.mubr.f32.mxu0 0.0
        %3393 = vmatmul.mubr.f32.gmra.mrb[0].mxu0 %v3159
        %v3394 = vpop.f32.mrb[0].mxu0
        %v3395 = vadd.f32 0.0, %v3394
        %v3396 = vpop.f32.mrb[0].mxu0
        %3397 = vmatprep.mubr.f32.mxu0 0.0
        %3398 = vmatmul.mubr.f32.gmra.mrb[0].mxu0 %v3160
        %v3399 = vpop.f32.mrb[0].mxu0
        %v3400 = vadd.f32 0.0, %v3399
        %v3401 = vpop.f32.mrb[0].mxu0
        %3402 = vmatprep.mubr.f32.mxu0 0.0
        %3403 = vmatmul.mubr.f32.gmra.mrb[0].mxu0 %v3161
        %v3404 = vpop.f32.mrb[0].mxu0
        %v3405 = vadd.f32 0.0, %v3404
        %v3406 = vpop.f32.mrb[0].mxu0
        %3407 = vmatprep.mubr.f32.mxu0 0.0
        %3408 = vmatmul.mubr.f32.gmra.mrb[0].mxu0 %v3162
        %v3409 = vpop.f32.mrb[0].mxu0
        %v3410 = vadd.f32 0.0, %v3409
        %v3411 = vpop.f32.mrb[0].mxu0
        %3412 = vmatprep.mubr.f32.mxu0 0.0
        %3413 = vmatmul.mubr.f32.gmra.mrb[0].mxu0 %v3163
        %v3414 = vpop.f32.mrb[0].mxu0
        %v3415 = vadd.f32 0.0, %v3414
        %v3416 = vpop.f32.mrb[0].mxu0
        %3417 = vmatprep.mubr.f32.mxu0 0.0
        %3418 = vmatmul.mubr.f32.gmra.mrb[0].mxu0 %v3164
        %v3419 = vpop.f32.mrb[0].mxu0
        %v3420 = vadd.f32 0.0, %v3419
        %v3421 = vpop.f32.mrb[0].mxu0
        %3422 = vmatprep.mubr.f32.mxu0 0.0
        %3423 = vmatmul.mubr.f32.gmra.mrb[0].mxu0 %v3165
        %v3424 = vpop.f32.mrb[0].mxu0
        %v3425 = vadd.f32 0.0, %v3424
        %v3426 = vpop.f32.mrb[0].mxu0
        %3427 = vmatprep.mubr.f32.mxu0 0.0
        %3428 = vmatmul.mubr.f32.gmra.mrb[0].mxu0 %v3166
        %v3429 = vpop.f32.mrb[0].mxu0
        %v3430 = vadd.f32 0.0, %v3429
        %v3431 = vpop.f32.mrb[0].mxu0
        %3432 = vmatprep.mubr.f32.mxu0 0.0
        %3433 = vmatmul.mubr.f32.gmra.mrb[0].mxu0 %v3167
        %v3434 = vpop.f32.mrb[0].mxu0
        %v3435 = vadd.f32 0.0, %v3434
        %v3436 = vpop.f32.mrb[0].mxu0
        %3437 = vmatprep.mubr.f32.mxu0 0.0
        %3438 = vmatmul.mubr.f32.gmra.mrb[0].mxu0 %v3168
        %v3439 = vpop.f32.mrb[0].mxu0
        %v3440 = vadd.f32 0.0, %v3439
        %v3441 = vpop.f32.mrb[0].mxu0
        %3442 = vdwg.mxu0
        %v3443 = vadd.f32 %v3169, %v3285
        %v3444 = vadd.f32 %v3170, %v3290
        %v3445 = vadd.f32 %v3171, %v3295
        %v3446 = vadd.f32 %v3172, %v3300
        %v3447 = vadd.f32 %v3173, %v3305
        %v3448 = vadd.f32 %v3174, %v3310
        %v3449 = vadd.f32 %v3175, %v3315
        %v3450 = vadd.f32 %v3176, %v3320
        %v3451 = vadd.f32 %v3177, %v3325
        %v3452 = vadd.f32 %v3178, %v3330
        %v3453 = vadd.f32 %v3179, %v3335
        %v3454 = vadd.f32 %v3180, %v3340
        %v3455 = vadd.f32 %v3181, %v3345
        %v3456 = vadd.f32 %v3182, %v3350
        %v3457 = vadd.f32 %v3183, %v3355
        %v3458 = vadd.f32 %v3184, %v3360
        %v3459 = vadd.f32 %v3185, %v3365
        %v3460 = vadd.f32 %v3186, %v3370
        %v3461 = vadd.f32 %v3187, %v3375
        %v3462 = vadd.f32 %v3188, %v3380
        %v3463 = vadd.f32 %v3189, %v3385
        %v3464 = vadd.f32 %v3190, %v3390
        %v3465 = vadd.f32 %v3191, %v3395
        %v3466 = vadd.f32 %v3192, %v3400
        %v3467 = vadd.f32 %v3193, %v3405
        %v3468 = vadd.f32 %v3194, %v3410
        %v3469 = vadd.f32 %v3195, %v3415
        %v3470 = vadd.f32 %v3196, %v3420
        %v3471 = vadd.f32 %v3197, %v3425
        %v3472 = vadd.f32 %v3198, %v3430
        %v3473 = vadd.f32 %v3199, %v3435
        %v3474 = vadd.f32 %v3200, %v3440
        %3475 = vst [vmem:[#allocation3] sm:$0xff] %v3443
        %3476 = vst [vmem:[#allocation3 + $0x8] sm:$0xff] %v3444
        %3477 = vst [vmem:[#allocation3 + $0x10] sm:$0xff] %v3445
        %3478 = vst [vmem:[#allocation3 + $0x18] sm:$0xff] %v3446
        %3479 = vst [vmem:[#allocation3 + $0x20] sm:$0xff] %v3447
        %3480 = vst [vmem:[#allocation3 + $0x28] sm:$0xff] %v3448
        %3481 = vst [vmem:[#allocation3 + $0x30] sm:$0xff] %v3449
        %3482 = vst [vmem:[#allocation3 + $0x38] sm:$0xff] %v3450
        %3483 = vst [vmem:[#allocation3 + $0x40] sm:$0xff] %v3451
        %3484 = vst [vmem:[#allocation3 + $0x48] sm:$0xff] %v3452
        %3485 = vst [vmem:[#allocation3 + $0x50] sm:$0xff] %v3453
        %3486 = vst [vmem:[#allocation3 + $0x58] sm:$0xff] %v3454
        %3487 = vst [vmem:[#allocation3 + $0x60] sm:$0xff] %v3455
        %3488 = vst [vmem:[#allocation3 + $0x68] sm:$0xff] %v3456
        %3489 = vst [vmem:[#allocation3 + $0x70] sm:$0xff] %v3457
        %3490 = vst [vmem:[#allocation3 + $0x78] sm:$0xff] %v3458
        %3491 = vst [vmem:[#allocation3 + $0x80] sm:$0xff] %v3459
        %3492 = vst [vmem:[#allocation3 + $0x88] sm:$0xff] %v3460
        %3493 = vst [vmem:[#allocation3 + $0x90] sm:$0xff] %v3461
        %3494 = vst [vmem:[#allocation3 + $0x98] sm:$0xff] %v3462
        %3495 = vst [vmem:[#allocation3 + $0xa0] sm:$0xff] %v3463
        %3496 = vst [vmem:[#allocation3 + $0xa8] sm:$0xff] %v3464
        %3497 = vst [vmem:[#allocation3 + $0xb0] sm:$0xff] %v3465
        %3498 = vst [vmem:[#allocation3 + $0xb8] sm:$0xff] %v3466
        %3499 = vst [vmem:[#allocation3 + $0xc0] sm:$0xff] %v3467
        %3500 = vst [vmem:[#allocation3 + $0xc8] sm:$0xff] %v3468
        %3501 = vst [vmem:[#allocation3 + $0xd0] sm:$0xff] %v3469
        %3502 = vst [vmem:[#allocation3 + $0xd8] sm:$0xff] %v3470
        %3503 = vst [vmem:[#allocation3 + $0xe0] sm:$0xff] %v3471
        %3504 = vst [vmem:[#allocation3 + $0xe8] sm:$0xff] %v3472
        %3505 = vst [vmem:[#allocation3 + $0xf0] sm:$0xff] %v3473
        %3506 = vst [vmem:[#allocation3 + $0xf8] sm:$0xff] %v3474
        %s3507 = scalar_lea.vmem [#allocation2], 608
        %v3508 = vld [vmem:[%s3507] sm:$0xff]
        %v3509 = vld [vmem:[%s3507 + $0x8] sm:$0xff]
        %v3510 = vld [vmem:[%s3507 + $0x10] sm:$0xff]
        %v3511 = vld [vmem:[%s3507 + $0x18] sm:$0xff]
        %v3512 = vld [vmem:[%s3507 + $0x20] sm:$0xff]
        %v3513 = vld [vmem:[%s3507 + $0x28] sm:$0xff]
        %v3514 = vld [vmem:[%s3507 + $0x30] sm:$0xff]
        %v3515 = vld [vmem:[%s3507 + $0x38] sm:$0xff]
        %v3516 = vld [vmem:[%s3507 + $0x40] sm:$0xff]
        %v3517 = vld [vmem:[%s3507 + $0x48] sm:$0xff]
        %v3518 = vld [vmem:[%s3507 + $0x50] sm:$0xff]
        %v3519 = vld [vmem:[%s3507 + $0x58] sm:$0xff]
        %v3520 = vld [vmem:[%s3507 + $0x60] sm:$0xff]
        %v3521 = vld [vmem:[%s3507 + $0x68] sm:$0xff]
        %v3522 = vld [vmem:[%s3507 + $0x70] sm:$0xff]
        %v3523 = vld [vmem:[%s3507 + $0x78] sm:$0xff]
        %v3524 = vld [vmem:[%s3507 + $0x80] sm:$0xff]
        %v3525 = vld [vmem:[%s3507 + $0x88] sm:$0xff]
        %v3526 = vld [vmem:[%s3507 + $0x90] sm:$0xff]
        %v3527 = vld [vmem:[%s3507 + $0x98] sm:$0xff]
        %v3528 = vld [vmem:[%s3507 + $0xa0] sm:$0xff]
        %v3529 = vld [vmem:[%s3507 + $0xa8] sm:$0xff]
        %v3530 = vld [vmem:[%s3507 + $0xb0] sm:$0xff]
        %v3531 = vld [vmem:[%s3507 + $0xb8] sm:$0xff]
        %v3532 = vld [vmem:[%s3507 + $0xc0] sm:$0xff]
        %v3533 = vld [vmem:[%s3507 + $0xc8] sm:$0xff]
        %v3534 = vld [vmem:[%s3507 + $0xd0] sm:$0xff]
        %v3535 = vld [vmem:[%s3507 + $0xd8] sm:$0xff]
        %v3536 = vld [vmem:[%s3507 + $0xe0] sm:$0xff]
        %v3537 = vld [vmem:[%s3507 + $0xe8] sm:$0xff]
        %v3538 = vld [vmem:[%s3507 + $0xf0] sm:$0xff]
        %v3539 = vld [vmem:[%s3507 + $0xf8] sm:$0xff]
        %v3540 = vld [vmem:[#allocation3] sm:$0xff]
        %v3541 = vld [vmem:[#allocation3 + $0x8] sm:$0xff]
        %v3542 = vld [vmem:[#allocation3 + $0x10] sm:$0xff]
        %v3543 = vld [vmem:[#allocation3 + $0x18] sm:$0xff]
        %v3544 = vld [vmem:[#allocation3 + $0x20] sm:$0xff]
        %v3545 = vld [vmem:[#allocation3 + $0x28] sm:$0xff]
        %v3546 = vld [vmem:[#allocation3 + $0x30] sm:$0xff]
        %v3547 = vld [vmem:[#allocation3 + $0x38] sm:$0xff]
        %v3548 = vld [vmem:[#allocation3 + $0x40] sm:$0xff]
        %v3549 = vld [vmem:[#allocation3 + $0x48] sm:$0xff]
        %v3550 = vld [vmem:[#allocation3 + $0x50] sm:$0xff]
        %v3551 = vld [vmem:[#allocation3 + $0x58] sm:$0xff]
        %v3552 = vld [vmem:[#allocation3 + $0x60] sm:$0xff]
        %v3553 = vld [vmem:[#allocation3 + $0x68] sm:$0xff]
        %v3554 = vld [vmem:[#allocation3 + $0x70] sm:$0xff]
        %v3555 = vld [vmem:[#allocation3 + $0x78] sm:$0xff]
        %v3556 = vld [vmem:[#allocation3 + $0x80] sm:$0xff]
        %v3557 = vld [vmem:[#allocation3 + $0x88] sm:$0xff]
        %v3558 = vld [vmem:[#allocation3 + $0x90] sm:$0xff]
        %v3559 = vld [vmem:[#allocation3 + $0x98] sm:$0xff]
        %v3560 = vld [vmem:[#allocation3 + $0xa0] sm:$0xff]
        %v3561 = vld [vmem:[#allocation3 + $0xa8] sm:$0xff]
        %v3562 = vld [vmem:[#allocation3 + $0xb0] sm:$0xff]
        %v3563 = vld [vmem:[#allocation3 + $0xb8] sm:$0xff]
        %v3564 = vld [vmem:[#allocation3 + $0xc0] sm:$0xff]
        %v3565 = vld [vmem:[#allocation3 + $0xc8] sm:$0xff]
        %v3566 = vld [vmem:[#allocation3 + $0xd0] sm:$0xff]
        %v3567 = vld [vmem:[#allocation3 + $0xd8] sm:$0xff]
        %v3568 = vld [vmem:[#allocation3 + $0xe0] sm:$0xff]
        %v3569 = vld [vmem:[#allocation3 + $0xe8] sm:$0xff]
        %v3570 = vld [vmem:[#allocation3 + $0xf0] sm:$0xff]
        %v3571 = vld [vmem:[#allocation3 + $0xf8] sm:$0xff]
        %s3572 = scalar_lea.vmem %s2, 1024
        %v3573 = vld [vmem:[%s3572] sm:$0xff]
        %v3574 = vld [vmem:[%s3572 + $0x8] sm:$0xff]
        %v3575 = vld [vmem:[%s3572 + $0x10] sm:$0xff]
        %v3576 = vld [vmem:[%s3572 + $0x18] sm:$0xff]
        %v3577 = vld [vmem:[%s3572 + $0x20] sm:$0xff]
        %v3578 = vld [vmem:[%s3572 + $0x28] sm:$0xff]
        %v3579 = vld [vmem:[%s3572 + $0x30] sm:$0xff]
        %v3580 = vld [vmem:[%s3572 + $0x38] sm:$0xff]
        %v3581 = vld [vmem:[%s3572 + $0x40] sm:$0xff]
        %v3582 = vld [vmem:[%s3572 + $0x48] sm:$0xff]
        %v3583 = vld [vmem:[%s3572 + $0x50] sm:$0xff]
        %v3584 = vld [vmem:[%s3572 + $0x58] sm:$0xff]
        %v3585 = vld [vmem:[%s3572 + $0x60] sm:$0xff]
        %v3586 = vld [vmem:[%s3572 + $0x68] sm:$0xff]
        %v3587 = vld [vmem:[%s3572 + $0x70] sm:$0xff]
        %v3588 = vld [vmem:[%s3572 + $0x78] sm:$0xff]
        %3589 = vmatprep.subr.mxu0 0.0
        %3590 = vmatpush1.msra.mxu0 %v3573
        %3591 = vmatprep.subr.mxu0 0.0
        %3592 = vmatpush1.msra.mxu0 %v3574
        %3593 = vmatprep.subr.mxu0 0.0
        %3594 = vmatpush1.msra.mxu0 %v3575
        %3595 = vmatprep.subr.mxu0 0.0
        %3596 = vmatpush1.msra.mxu0 %v3576
        %3597 = vmatprep.subr.mxu0 0.0
        %3598 = vmatpush1.msra.mxu0 %v3577
        %3599 = vmatprep.subr.mxu0 0.0
        %3600 = vmatpush1.msra.mxu0 %v3578
        %3601 = vmatprep.subr.mxu0 0.0
        %3602 = vmatpush1.msra.mxu0 %v3579
        %3603 = vmatprep.subr.mxu0 0.0
        %3604 = vmatpush1.msra.mxu0 %v3580
        %3605 = vmatprep.subr.mxu0 0.0
        %3606 = vmatpush1.msra.mxu0 %v3581
        %3607 = vmatprep.subr.mxu0 0.0
        %3608 = vmatpush1.msra.mxu0 %v3582
        %3609 = vmatprep.subr.mxu0 0.0
        %3610 = vmatpush1.msra.mxu0 %v3583
        %3611 = vmatprep.subr.mxu0 0.0
        %3612 = vmatpush1.msra.mxu0 %v3584
        %3613 = vmatprep.subr.mxu0 0.0
        %3614 = vmatpush1.msra.mxu0 %v3585
        %3615 = vmatprep.subr.mxu0 0.0
        %3616 = vmatpush1.msra.mxu0 %v3586
        %3617 = vmatprep.subr.mxu0 0.0
        %3618 = vmatpush1.msra.mxu0 %v3587
        %3619 = vmatprep.subr.mxu0 0.0
        %3620 = vmatpush1.msra.mxu0 %v3588
        %3621 = vmatprep.subr.mxu0 0.0
        %3622 = vmatpush1.msra.mxu0 0.0
        %3623 = vmatprep.subr.mxu0 0.0
        %3624 = vmatpush1.msra.mxu0 0.0
        %3625 = vmatprep.subr.mxu0 0.0
        %3626 = vmatpush1.msra.mxu0 0.0
        %3627 = vmatprep.subr.mxu0 0.0
        %3628 = vmatpush1.msra.mxu0 0.0
        %3629 = vmatprep.subr.mxu0 0.0
        %3630 = vmatpush1.msra.mxu0 0.0
        %3631 = vmatprep.subr.mxu0 0.0
        %3632 = vmatpush1.msra.mxu0 0.0
        %3633 = vmatprep.subr.mxu0 0.0
        %3634 = vmatpush1.msra.mxu0 0.0
        %3635 = vmatprep.subr.mxu0 0.0
        %3636 = vmatpush1.msra.mxu0 0.0
        %3637 = vmatprep.subr.mxu0 0.0
        %3638 = vmatpush1.msra.mxu0 0.0
        %3639 = vmatprep.subr.mxu0 0.0
        %3640 = vmatpush1.msra.mxu0 0.0
        %3641 = vmatprep.subr.mxu0 0.0
        %3642 = vmatpush1.msra.mxu0 0.0
        %3643 = vmatprep.subr.mxu0 0.0
        %3644 = vmatpush1.msra.mxu0 0.0
        %3645 = vmatprep.subr.mxu0 0.0
        %3646 = vmatpush1.msra.mxu0 0.0
        %3647 = vmatprep.subr.mxu0 0.0
        %3648 = vmatpush1.msra.mxu0 0.0
        %3649 = vmatprep.subr.mxu0 0.0
        %3650 = vmatpush1.msra.mxu0 0.0
        %3651 = vmatprep.subr.mxu0 0.0
        %3652 = vmatpush1.msra.mxu0 0.0
        %3653 = vmatprep.mubr.f32.mxu0 0.0
        %3654 = vmatmul.mubr.f32.gmra.mrb[0].mxu0 %v3508
        %v3655 = vpop.f32.mrb[0].mxu0
        %v3656 = vadd.f32 0.0, %v3655
        %v3657 = vpop.f32.mrb[0].mxu0
        %3658 = vmatprep.mubr.f32.mxu0 0.0
        %3659 = vmatmul.mubr.f32.gmra.mrb[0].mxu0 %v3509
        %v3660 = vpop.f32.mrb[0].mxu0
        %v3661 = vadd.f32 0.0, %v3660
        %v3662 = vpop.f32.mrb[0].mxu0
        %3663 = vmatprep.mubr.f32.mxu0 0.0
        %3664 = vmatmul.mubr.f32.gmra.mrb[0].mxu0 %v3510
        %v3665 = vpop.f32.mrb[0].mxu0
        %v3666 = vadd.f32 0.0, %v3665
        %v3667 = vpop.f32.mrb[0].mxu0
        %3668 = vmatprep.mubr.f32.mxu0 0.0
        %3669 = vmatmul.mubr.f32.gmra.mrb[0].mxu0 %v3511
        %v3670 = vpop.f32.mrb[0].mxu0
        %v3671 = vadd.f32 0.0, %v3670
        %v3672 = vpop.f32.mrb[0].mxu0
        %3673 = vmatprep.mubr.f32.mxu0 0.0
        %3674 = vmatmul.mubr.f32.gmra.mrb[0].mxu0 %v3512
        %v3675 = vpop.f32.mrb[0].mxu0
        %v3676 = vadd.f32 0.0, %v3675
        %v3677 = vpop.f32.mrb[0].mxu0
        %3678 = vmatprep.mubr.f32.mxu0 0.0
        %3679 = vmatmul.mubr.f32.gmra.mrb[0].mxu0 %v3513
        %v3680 = vpop.f32.mrb[0].mxu0
        %v3681 = vadd.f32 0.0, %v3680
        %v3682 = vpop.f32.mrb[0].mxu0
        %3683 = vmatprep.mubr.f32.mxu0 0.0
        %3684 = vmatmul.mubr.f32.gmra.mrb[0].mxu0 %v3514
        %v3685 = vpop.f32.mrb[0].mxu0
        %v3686 = vadd.f32 0.0, %v3685
        %v3687 = vpop.f32.mrb[0].mxu0
        %3688 = vmatprep.mubr.f32.mxu0 0.0
        %3689 = vmatmul.mubr.f32.gmra.mrb[0].mxu0 %v3515
        %v3690 = vpop.f32.mrb[0].mxu0
        %v3691 = vadd.f32 0.0, %v3690
        %v3692 = vpop.f32.mrb[0].mxu0
        %3693 = vmatprep.mubr.f32.mxu0 0.0
        %3694 = vmatmul.mubr.f32.gmra.mrb[0].mxu0 %v3516
        %v3695 = vpop.f32.mrb[0].mxu0
        %v3696 = vadd.f32 0.0, %v3695
        %v3697 = vpop.f32.mrb[0].mxu0
        %3698 = vmatprep.mubr.f32.mxu0 0.0
        %3699 = vmatmul.mubr.f32.gmra.mrb[0].mxu0 %v3517
        %v3700 = vpop.f32.mrb[0].mxu0
        %v3701 = vadd.f32 0.0, %v3700
        %v3702 = vpop.f32.mrb[0].mxu0
        %3703 = vmatprep.mubr.f32.mxu0 0.0
        %3704 = vmatmul.mubr.f32.gmra.mrb[0].mxu0 %v3518
        %v3705 = vpop.f32.mrb[0].mxu0
        %v3706 = vadd.f32 0.0, %v3705
        %v3707 = vpop.f32.mrb[0].mxu0
        %3708 = vmatprep.mubr.f32.mxu0 0.0
        %3709 = vmatmul.mubr.f32.gmra.mrb[0].mxu0 %v3519
        %v3710 = vpop.f32.mrb[0].mxu0
        %v3711 = vadd.f32 0.0, %v3710
        %v3712 = vpop.f32.mrb[0].mxu0
        %3713 = vmatprep.mubr.f32.mxu0 0.0
        %3714 = vmatmul.mubr.f32.gmra.mrb[0].mxu0 %v3520
        %v3715 = vpop.f32.mrb[0].mxu0
        %v3716 = vadd.f32 0.0, %v3715
        %v3717 = vpop.f32.mrb[0].mxu0
        %3718 = vmatprep.mubr.f32.mxu0 0.0
        %3719 = vmatmul.mubr.f32.gmra.mrb[0].mxu0 %v3521
        %v3720 = vpop.f32.mrb[0].mxu0
        %v3721 = vadd.f32 0.0, %v3720
        %v3722 = vpop.f32.mrb[0].mxu0
        %3723 = vmatprep.mubr.f32.mxu0 0.0
        %3724 = vmatmul.mubr.f32.gmra.mrb[0].mxu0 %v3522
        %v3725 = vpop.f32.mrb[0].mxu0
        %v3726 = vadd.f32 0.0, %v3725
        %v3727 = vpop.f32.mrb[0].mxu0
        %3728 = vmatprep.mubr.f32.mxu0 0.0
        %3729 = vmatmul.mubr.f32.gmra.mrb[0].mxu0 %v3523
        %v3730 = vpop.f32.mrb[0].mxu0
        %v3731 = vadd.f32 0.0, %v3730
        %v3732 = vpop.f32.mrb[0].mxu0
        %3733 = vmatprep.mubr.f32.mxu0 0.0
        %3734 = vmatmul.mubr.f32.gmra.mrb[0].mxu0 %v3524
        %v3735 = vpop.f32.mrb[0].mxu0
        %v3736 = vadd.f32 0.0, %v3735
        %v3737 = vpop.f32.mrb[0].mxu0
        %3738 = vmatprep.mubr.f32.mxu0 0.0
        %3739 = vmatmul.mubr.f32.gmra.mrb[0].mxu0 %v3525
        %v3740 = vpop.f32.mrb[0].mxu0
        %v3741 = vadd.f32 0.0, %v3740
        %v3742 = vpop.f32.mrb[0].mxu0
        %3743 = vmatprep.mubr.f32.mxu0 0.0
        %3744 = vmatmul.mubr.f32.gmra.mrb[0].mxu0 %v3526
        %v3745 = vpop.f32.mrb[0].mxu0
        %v3746 = vadd.f32 0.0, %v3745
        %v3747 = vpop.f32.mrb[0].mxu0
        %3748 = vmatprep.mubr.f32.mxu0 0.0
        %3749 = vmatmul.mubr.f32.gmra.mrb[0].mxu0 %v3527
        %v3750 = vpop.f32.mrb[0].mxu0
        %v3751 = vadd.f32 0.0, %v3750
        %v3752 = vpop.f32.mrb[0].mxu0
        %3753 = vmatprep.mubr.f32.mxu0 0.0
        %3754 = vmatmul.mubr.f32.gmra.mrb[0].mxu0 %v3528
        %v3755 = vpop.f32.mrb[0].mxu0
        %v3756 = vadd.f32 0.0, %v3755
        %v3757 = vpop.f32.mrb[0].mxu0
        %3758 = vmatprep.mubr.f32.mxu0 0.0
        %3759 = vmatmul.mubr.f32.gmra.mrb[0].mxu0 %v3529
        %v3760 = vpop.f32.mrb[0].mxu0
        %v3761 = vadd.f32 0.0, %v3760
        %v3762 = vpop.f32.mrb[0].mxu0
        %3763 = vmatprep.mubr.f32.mxu0 0.0
        %3764 = vmatmul.mubr.f32.gmra.mrb[0].mxu0 %v3530
        %v3765 = vpop.f32.mrb[0].mxu0
        %v3766 = vadd.f32 0.0, %v3765
        %v3767 = vpop.f32.mrb[0].mxu0
        %3768 = vmatprep.mubr.f32.mxu0 0.0
        %3769 = vmatmul.mubr.f32.gmra.mrb[0].mxu0 %v3531
        %v3770 = vpop.f32.mrb[0].mxu0
        %v3771 = vadd.f32 0.0, %v3770
        %v3772 = vpop.f32.mrb[0].mxu0
        %3773 = vmatprep.mubr.f32.mxu0 0.0
        %3774 = vmatmul.mubr.f32.gmra.mrb[0].mxu0 %v3532
        %v3775 = vpop.f32.mrb[0].mxu0
        %v3776 = vadd.f32 0.0, %v3775
        %v3777 = vpop.f32.mrb[0].mxu0
        %3778 = vmatprep.mubr.f32.mxu0 0.0
        %3779 = vmatmul.mubr.f32.gmra.mrb[0].mxu0 %v3533
        %v3780 = vpop.f32.mrb[0].mxu0
        %v3781 = vadd.f32 0.0, %v3780
        %v3782 = vpop.f32.mrb[0].mxu0
        %3783 = vmatprep.mubr.f32.mxu0 0.0
        %3784 = vmatmul.mubr.f32.gmra.mrb[0].mxu0 %v3534
        %v3785 = vpop.f32.mrb[0].mxu0
        %v3786 = vadd.f32 0.0, %v3785
        %v3787 = vpop.f32.mrb[0].mxu0
        %3788 = vmatprep.mubr.f32.mxu0 0.0
        %3789 = vmatmul.mubr.f32.gmra.mrb[0].mxu0 %v3535
        %v3790 = vpop.f32.mrb[0].mxu0
        %v3791 = vadd.f32 0.0, %v3790
        %v3792 = vpop.f32.mrb[0].mxu0
        %3793 = vmatprep.mubr.f32.mxu0 0.0
        %3794 = vmatmul.mubr.f32.gmra.mrb[0].mxu0 %v3536
        %v3795 = vpop.f32.mrb[0].mxu0
        %v3796 = vadd.f32 0.0, %v3795
        %v3797 = vpop.f32.mrb[0].mxu0
        %3798 = vmatprep.mubr.f32.mxu0 0.0
        %3799 = vmatmul.mubr.f32.gmra.mrb[0].mxu0 %v3537
        %v3800 = vpop.f32.mrb[0].mxu0
        %v3801 = vadd.f32 0.0, %v3800
        %v3802 = vpop.f32.mrb[0].mxu0
        %3803 = vmatprep.mubr.f32.mxu0 0.0
        %3804 = vmatmul.mubr.f32.gmra.mrb[0].mxu0 %v3538
        %v3805 = vpop.f32.mrb[0].mxu0
        %v3806 = vadd.f32 0.0, %v3805
        %v3807 = vpop.f32.mrb[0].mxu0
        %3808 = vmatprep.mubr.f32.mxu0 0.0
        %3809 = vmatmul.mubr.f32.gmra.mrb[0].mxu0 %v3539
        %v3810 = vpop.f32.mrb[0].mxu0
        %v3811 = vadd.f32 0.0, %v3810
        %v3812 = vpop.f32.mrb[0].mxu0
        %3813 = vdwg.mxu0
        %v3814 = vadd.f32 %v3540, %v3656
        %v3815 = vadd.f32 %v3541, %v3661
        %v3816 = vadd.f32 %v3542, %v3666
        %v3817 = vadd.f32 %v3543, %v3671
        %v3818 = vadd.f32 %v3544, %v3676
        %v3819 = vadd.f32 %v3545, %v3681
        %v3820 = vadd.f32 %v3546, %v3686
        %v3821 = vadd.f32 %v3547, %v3691
        %v3822 = vadd.f32 %v3548, %v3696
        %v3823 = vadd.f32 %v3549, %v3701
        %v3824 = vadd.f32 %v3550, %v3706
        %v3825 = vadd.f32 %v3551, %v3711
        %v3826 = vadd.f32 %v3552, %v3716
        %v3827 = vadd.f32 %v3553, %v3721
        %v3828 = vadd.f32 %v3554, %v3726
        %v3829 = vadd.f32 %v3555, %v3731
        %v3830 = vadd.f32 %v3556, %v3736
        %v3831 = vadd.f32 %v3557, %v3741
        %v3832 = vadd.f32 %v3558, %v3746
        %v3833 = vadd.f32 %v3559, %v3751
        %v3834 = vadd.f32 %v3560, %v3756
        %v3835 = vadd.f32 %v3561, %v3761
        %v3836 = vadd.f32 %v3562, %v3766
        %v3837 = vadd.f32 %v3563, %v3771
        %v3838 = vadd.f32 %v3564, %v3776
        %v3839 = vadd.f32 %v3565, %v3781
        %v3840 = vadd.f32 %v3566, %v3786
        %v3841 = vadd.f32 %v3567, %v3791
        %v3842 = vadd.f32 %v3568, %v3796
        %v3843 = vadd.f32 %v3569, %v3801
        %v3844 = vadd.f32 %v3570, %v3806
        %v3845 = vadd.f32 %v3571, %v3811
        %3846 = vst [vmem:[#allocation3] sm:$0xff] %v3814
        %3847 = vst [vmem:[#allocation3 + $0x8] sm:$0xff] %v3815
        %3848 = vst [vmem:[#allocation3 + $0x10] sm:$0xff] %v3816
        %3849 = vst [vmem:[#allocation3 + $0x18] sm:$0xff] %v3817
        %3850 = vst [vmem:[#allocation3 + $0x20] sm:$0xff] %v3818
        %3851 = vst [vmem:[#allocation3 + $0x28] sm:$0xff] %v3819
        %3852 = vst [vmem:[#allocation3 + $0x30] sm:$0xff] %v3820
        %3853 = vst [vmem:[#allocation3 + $0x38] sm:$0xff] %v3821
        %3854 = vst [vmem:[#allocation3 + $0x40] sm:$0xff] %v3822
        %3855 = vst [vmem:[#allocation3 + $0x48] sm:$0xff] %v3823
        %3856 = vst [vmem:[#allocation3 + $0x50] sm:$0xff] %v3824
        %3857 = vst [vmem:[#allocation3 + $0x58] sm:$0xff] %v3825
        %3858 = vst [vmem:[#allocation3 + $0x60] sm:$0xff] %v3826
        %3859 = vst [vmem:[#allocation3 + $0x68] sm:$0xff] %v3827
        %3860 = vst [vmem:[#allocation3 + $0x70] sm:$0xff] %v3828
        %3861 = vst [vmem:[#allocation3 + $0x78] sm:$0xff] %v3829
        %3862 = vst [vmem:[#allocation3 + $0x80] sm:$0xff] %v3830
        %3863 = vst [vmem:[#allocation3 + $0x88] sm:$0xff] %v3831
        %3864 = vst [vmem:[#allocation3 + $0x90] sm:$0xff] %v3832
        %3865 = vst [vmem:[#allocation3 + $0x98] sm:$0xff] %v3833
        %3866 = vst [vmem:[#allocation3 + $0xa0] sm:$0xff] %v3834
        %3867 = vst [vmem:[#allocation3 + $0xa8] sm:$0xff] %v3835
        %3868 = vst [vmem:[#allocation3 + $0xb0] sm:$0xff] %v3836
        %3869 = vst [vmem:[#allocation3 + $0xb8] sm:$0xff] %v3837
        %3870 = vst [vmem:[#allocation3 + $0xc0] sm:$0xff] %v3838
        %3871 = vst [vmem:[#allocation3 + $0xc8] sm:$0xff] %v3839
        %3872 = vst [vmem:[#allocation3 + $0xd0] sm:$0xff] %v3840
        %3873 = vst [vmem:[#allocation3 + $0xd8] sm:$0xff] %v3841
        %3874 = vst [vmem:[#allocation3 + $0xe0] sm:$0xff] %v3842
        %3875 = vst [vmem:[#allocation3 + $0xe8] sm:$0xff] %v3843
        %3876 = vst [vmem:[#allocation3 + $0xf0] sm:$0xff] %v3844
        %3877 = vst [vmem:[#allocation3 + $0xf8] sm:$0xff] %v3845
        %v3878 = vld [vmem:[#allocation3] sm:$0xff]
        %v3879 = vld [vmem:[#allocation3 + $0x8] sm:$0xff]
        %v3880 = vld [vmem:[#allocation3 + $0x10] sm:$0xff]
        %v3881 = vld [vmem:[#allocation3 + $0x18] sm:$0xff]
        %v3882 = vld [vmem:[#allocation3 + $0x20] sm:$0xff]
        %v3883 = vld [vmem:[#allocation3 + $0x28] sm:$0xff]
        %v3884 = vld [vmem:[#allocation3 + $0x30] sm:$0xff]
        %v3885 = vld [vmem:[#allocation3 + $0x38] sm:$0xff]
        %v3886 = vld [vmem:[#allocation3 + $0x40] sm:$0xff]
        %v3887 = vld [vmem:[#allocation3 + $0x48] sm:$0xff]
        %v3888 = vld [vmem:[#allocation3 + $0x50] sm:$0xff]
        %v3889 = vld [vmem:[#allocation3 + $0x58] sm:$0xff]
        %v3890 = vld [vmem:[#allocation3 + $0x60] sm:$0xff]
        %v3891 = vld [vmem:[#allocation3 + $0x68] sm:$0xff]
        %v3892 = vld [vmem:[#allocation3 + $0x70] sm:$0xff]
        %v3893 = vld [vmem:[#allocation3 + $0x78] sm:$0xff]
        %v3894 = vld [vmem:[#allocation3 + $0x80] sm:$0xff]
        %v3895 = vld [vmem:[#allocation3 + $0x88] sm:$0xff]
        %v3896 = vld [vmem:[#allocation3 + $0x90] sm:$0xff]
        %v3897 = vld [vmem:[#allocation3 + $0x98] sm:$0xff]
        %v3898 = vld [vmem:[#allocation3 + $0xa0] sm:$0xff]
        %v3899 = vld [vmem:[#allocation3 + $0xa8] sm:$0xff]
        %v3900 = vld [vmem:[#allocation3 + $0xb0] sm:$0xff]
        %v3901 = vld [vmem:[#allocation3 + $0xb8] sm:$0xff]
        %v3902 = vld [vmem:[#allocation3 + $0xc0] sm:$0xff]
        %v3903 = vld [vmem:[#allocation3 + $0xc8] sm:$0xff]
        %v3904 = vld [vmem:[#allocation3 + $0xd0] sm:$0xff]
        %v3905 = vld [vmem:[#allocation3 + $0xd8] sm:$0xff]
        %v3906 = vld [vmem:[#allocation3 + $0xe0] sm:$0xff]
        %v3907 = vld [vmem:[#allocation3 + $0xe8] sm:$0xff]
        %v3908 = vld [vmem:[#allocation3 + $0xf0] sm:$0xff]
        %v3909 = vld [vmem:[#allocation3 + $0xf8] sm:$0xff]
        %3910 = vst [vmem:[%s255] sm:$0xff] %v3878
        %3911 = vst [vmem:[%s255 + $0x8] sm:$0xff] %v3879
        %3912 = vst [vmem:[%s255 + $0x10] sm:$0xff] %v3880
        %3913 = vst [vmem:[%s255 + $0x18] sm:$0xff] %v3881
        %3914 = vst [vmem:[%s255 + $0x20] sm:$0xff] %v3882
        %3915 = vst [vmem:[%s255 + $0x28] sm:$0xff] %v3883
        %3916 = vst [vmem:[%s255 + $0x30] sm:$0xff] %v3884
        %3917 = vst [vmem:[%s255 + $0x38] sm:$0xff] %v3885
        %3918 = vst [vmem:[%s255 + $0x40] sm:$0xff] %v3886
        %3919 = vst [vmem:[%s255 + $0x48] sm:$0xff] %v3887
        %3920 = vst [vmem:[%s255 + $0x50] sm:$0xff] %v3888
        %3921 = vst [vmem:[%s255 + $0x58] sm:$0xff] %v3889
        %3922 = vst [vmem:[%s255 + $0x60] sm:$0xff] %v3890
        %3923 = vst [vmem:[%s255 + $0x68] sm:$0xff] %v3891
        %3924 = vst [vmem:[%s255 + $0x70] sm:$0xff] %v3892
        %3925 = vst [vmem:[%s255 + $0x78] sm:$0xff] %v3893
        %3926 = vst [vmem:[%s255 + $0x80] sm:$0xff] %v3894
        %3927 = vst [vmem:[%s255 + $0x88] sm:$0xff] %v3895
        %3928 = vst [vmem:[%s255 + $0x90] sm:$0xff] %v3896
        %3929 = vst [vmem:[%s255 + $0x98] sm:$0xff] %v3897
        %3930 = vst [vmem:[%s255 + $0xa0] sm:$0xff] %v3898
        %3931 = vst [vmem:[%s255 + $0xa8] sm:$0xff] %v3899
        %3932 = vst [vmem:[%s255 + $0xb0] sm:$0xff] %v3900
        %3933 = vst [vmem:[%s255 + $0xb8] sm:$0xff] %v3901
        %3934 = vst [vmem:[%s255 + $0xc0] sm:$0xff] %v3902
        %3935 = vst [vmem:[%s255 + $0xc8] sm:$0xff] %v3903
        %3936 = vst [vmem:[%s255 + $0xd0] sm:$0xff] %v3904
        %3937 = vst [vmem:[%s255 + $0xd8] sm:$0xff] %v3905
        %3938 = vst [vmem:[%s255 + $0xe0] sm:$0xff] %v3906
        %3939 = vst [vmem:[%s255 + $0xe8] sm:$0xff] %v3907
        %3940 = vst [vmem:[%s255 + $0xf0] sm:$0xff] %v3908
        %3941 = vst [vmem:[%s255 + $0xf8] sm:$0xff] %v3909
        %s3942 = sand.u32 %s142, 1
        %s3943 = scalar_lea.sflag [#allocation5], %s3942
        %s3944 = sand.u32 %s142, 1
        %s3945 = smul.addr %s3944, 256
        %s3946 = scalar_lea.vmem [#allocation4], %s3945
        // Predicated region
        $region37: #{tpu_custom_call.1} parent=35 // pred_check
          %p3947 = pneg %p152
        $region38: #{tpu_custom_call.1} parent=35 // pred_check_branch
          %3949 = sbr.rel (%p3947) target = $region40
        $region39: #{tpu_custom_call.1} parent=35 // pred_region
          %s3950 = smul.u32 16, %s23
          %s3952 = ssub.s32 4096, 4096
          %3953 = vsyncadd %s3943, %s3952
          %s3954 = smul.addr %s3950, 2
          %s3955 = smul.addr %s22, 32
          %s3956 = sadd.s32 %s3954, %s3955
          %s3957 = smul.addr %s3956, 128
          %s3958 = scalar_lea.hbm %s4, %s3957
          %s3959 = sshll.u32 %s3946, 4
          %s3960 = int_to_ptr.vmem [resolvable:$true] %s3959
          %3965 = dma.vmem_to_hbm [thread:$0]  %s3960, 4096, %s3958, %s3943, 128, 128, 8
        $region40: #{tpu_custom_call.1} parent=35 // pred_fallthru
          _
      $region36: #{tpu_custom_call.1} parent=5 // pred_fallthru
        _
      %p3966 = scmp.le.s32.totalorder 2, %s13
      // Predicated region
      $region41: #{tpu_custom_call.1} parent=5 // pred_check
        %p3967 = pneg %p3966
      $region42: #{tpu_custom_call.1} parent=5 // pred_check_branch
        %3969 = sbr.rel (%p3967) target = $region44
      $region43: #{tpu_custom_call.1} parent=5 // pred_region
        %s3970 = ssub.s32 %s13, 2
        // Predicated region
        $region45: #{tpu_custom_call.1} parent=43 // pred_check
          %p3971 = pneg %p158
        $region46: #{tpu_custom_call.1} parent=43 // pred_check_branch
          %3973 = sbr.rel (%p3971) target = $region48
        $region47: #{tpu_custom_call.1} parent=43 // pred_region
          %s3974 = sand.u32 %s143, 1
          %s3975 = scalar_lea.sflag [#allocation5], %s3974
          %s3976 = sand.u32 %s143, 1
          %s3977 = smul.addr %s3976, 256
          %s3978 = scalar_lea.vmem [#allocation4], %s3977
          %3979 = dma.done %s3975, 4096
        $region48: #{tpu_custom_call.1} parent=43 // pred_fallthru
          _
      $region44: #{tpu_custom_call.1} parent=5 // pred_fallthru
        _
    $region6: #{tpu_custom_call.1} parent=1 // loop_footer
      %s17 = sadd.s32 1, %s13
    $region7: #{tpu_custom_call.1} parent=1 // loop_footer_branch
      %12 = sbr.rel target = $region3
    $region8: #{tpu_custom_call.1} parent=1 // loop_exit
      _
    %3980 = vsyncpa [#allocation5], 1
    %s3981 = scalar_lea.sflag [#allocation5], 1
    %3982 = vsyncpa %s3981, 1

</llo_original>
